<compile_context>
chip_gen: v7x
topology: tpu7x:2x2x1
jax: 0.10.0
libtpu: 0.0.40
codegen_flags: <defaults>
</compile_context>

<pallas_src>
import functools

import jax
import jax.numpy as jnp
from jax.experimental import pallas as pl
from jax.experimental.pallas import tpu as pltpu


# ----------------------------------------------------------------------------
# helpers
# ----------------------------------------------------------------------------

def _round_up(x, m):
    return (x + m - 1) // m * m


def _softplus(x):
    # nn.Softplus(beta=1, threshold=20): logaddexp(x, 0) is numerically identical
    # below the threshold and within f32 eps above it (single stable formulation,
    # exp/log go to the EUP slot).
    return jnp.logaddexp(x, 0.0)


# ----------------------------------------------------------------------------
# Pallas kernels
# ----------------------------------------------------------------------------

def _mm_bias_act_kernel(a_ref, w_ref, b_ref, o_ref, *, apply_act):
    """One M-tile of: out = softplus(a @ w + b).  a/w are bf16, acc/bias f32."""
    acc = jnp.dot(a_ref[...], w_ref[...], preferred_element_type=jnp.float32)
    acc = acc + b_ref[...]
    if apply_act:
        acc = _softplus(acc)
    o_ref[...] = acc.astype(o_ref.dtype)


def _max_reduce_kernel(x_ref, o_ref):
    """Max over the stacked pooling-window axis (axis 0)."""
    o_ref[...] = jnp.max(x_ref[...], axis=0)


def _tail_kernel(x_ref, w3_ref, b3_ref, w4_ref, b4_ref, w5_ref, b5_ref,
                 wf_ref, bf_ref, o_ref):
    """Fused conv3 -> conv4 -> conv5 -> fc at 1x1 spatial (center-tap matmuls).

    All weights are resident in VMEM across the batch grid; intermediates never
    touch HBM."""
    h = jnp.dot(x_ref[...], w3_ref[...], preferred_element_type=jnp.float32)
    h = _softplus(h + b3_ref[...])
    h = jnp.dot(h.astype(jnp.bfloat16), w4_ref[...],
                preferred_element_type=jnp.float32)
    h = _softplus(h + b4_ref[...])
    h = jnp.dot(h.astype(jnp.bfloat16), w5_ref[...],
                preferred_element_type=jnp.float32)
    h = _softplus(h + b5_ref[...])
    out = jnp.dot(h.astype(jnp.bfloat16), wf_ref[...],
                  preferred_element_type=jnp.float32)
    o_ref[...] = (out + bf_ref[...]).astype(o_ref.dtype)


# ----------------------------------------------------------------------------
# Pallas wrappers
# ----------------------------------------------------------------------------

def _matmul_bias_act(a, w, b, apply_act):
    """a: (M, K) f32, w: (K, N) f32, b: (N,) f32 -> (M, N) f32.

    M-tiled, bf16 operands, K/N zero-padded to multiples of 128 (lane-dense),
    weights/bias resident across the M grid."""
    M, K = a.shape
    Kw, N = w.shape
    assert K == Kw
    Kp = _round_up(K, 128)
    Np = _round_up(N, 128)
    tm = min(512, _round_up(M, 8))          # 512 keeps tiles small enough for v7x VMEM
    Mp = _round_up(M, tm)

    a_p = jnp.pad(a, ((0, Mp - M), (0, Kp - K))).astype(jnp.bfloat16)
    w_p = jnp.pad(w, ((0, Kp - K), (0, Np - N))).astype(jnp.bfloat16)
    b_p = jnp.pad(b.reshape(1, N).astype(jnp.float32), ((0, 0), (0, Np - N)))

    cost = pl.CostEstimate(
        flops=2 * Mp * Kp * Np,
        transcendentals=(Mp * Np) if apply_act else 0,
        bytes_accessed=2 * (Mp * Kp + Kp * Np) + 4 * (Mp * Np + Np),
    )

    out = pl.pallas_call(
        functools.partial(_mm_bias_act_kernel, apply_act=apply_act),
        out_shape=jax.ShapeDtypeStruct((Mp, Np), jnp.float32),
        grid_spec=pltpu.PrefetchScalarGridSpec(
            num_scalar_prefetch=0,
            grid=(Mp // tm,),
            in_specs=[
                pl.BlockSpec((tm, Kp), lambda i: (i, 0)),
                pl.BlockSpec((Kp, Np), lambda i: (0, 0)),
                pl.BlockSpec((1, Np), lambda i: (0, 0)),
            ],
            out_specs=pl.BlockSpec((tm, Np), lambda i: (i, 0)),
        ),
        compiler_params=pltpu.CompilerParams(
            dimension_semantics=("parallel",)),
        cost_estimate=cost,
    )(a_p, w_p, b_p)
    return out[:M, :N]


def _im2col_nhwc(x, kh, kw, stride, pad):
    """x: (N, H, W, C) -> patches (N*Ho*Wo, kh*kw*C); row index = (i*kw + j)*C + c."""
    n, h, w, c = x.shape
    xp = jnp.pad(x, ((0, 0), (pad, pad), (pad, pad), (0, 0)))
    hp, wp = h + 2 * pad, w + 2 * pad
    ho = (hp - kh) // stride + 1
    wo = (wp - kw) // stride + 1
    cols = []
    for i in range(kh):
        for j in range(kw):
            sl = jax.lax.slice(
                xp,
                (0, i, j, 0),
                (n, i + (ho - 1) * stride + 1, j + (wo - 1) * stride + 1, c),
                (1, stride, stride, 1),
            )  # (N, Ho, Wo, C)
            cols.append(sl)
    patches = jnp.concatenate(cols, axis=-1)            # (N, Ho, Wo, kh*kw*C)
    return patches.reshape(n * ho * wo, kh * kw * c), ho, wo


def conv2d_softplus_nhwc(x, w, b, *, stride, pad, apply_act=True):
    """NHWC conv2d + bias + Softplus; compute in the Pallas matmul kernel."""
    n = x.shape[0]
    cout, cin, kh, kw = w.shape
    patches, ho, wo = _im2col_nhwc(x, kh, kw, stride, pad)
    # weight rows ordered (i, j, cin) to match the patch layout above
    w2 = w.transpose(2, 3, 1, 0).reshape(kh * kw * cin, cout)
    out = _matmul_bias_act(patches, w2, b, apply_act)    # (N*Ho*Wo, Cout)
    return out.reshape(n, ho, wo, cout)


def maxpool2d_nhwc(x, k, stride):
    """NHWC max-pool (no padding).  Window extraction is glue; the max reduction
    runs in a Pallas kernel, tiled over the flattened spatial axis, C on lanes."""
    n, h, w, c = x.shape
    ho = (h - k) // stride + 1
    wo = (w - k) // stride + 1
    wins = []
    for i in range(k):
        for j in range(k):
            sl = jax.lax.slice(
                x,
                (0, i, j, 0),
                (n, i + (ho - 1) * stride + 1, j + (wo - 1) * stride + 1, c),
                (1, stride, stride, 1),
            )
            wins.append(sl.reshape(n * ho * wo, c))
    stacked = jnp.stack(wins, axis=0)                    # (k*k, P, C)
    P = n * ho * wo
    Cp = _round_up(c, 128)
    tp = min(256, _round_up(P, 8))
    Pp = _round_up(P, tp)
    stacked_p = jnp.pad(stacked, ((0, 0), (0, Pp - P), (0, Cp - c)))

    out = pl.pallas_call(
        _max_reduce_kernel,
        out_shape=jax.ShapeDtypeStruct((Pp, Cp), x.dtype),
        grid_spec=pltpu.PrefetchScalarGridSpec(
            num_scalar_prefetch=0,
            grid=(Pp // tp,),
            in_specs=[pl.BlockSpec((k * k, tp, Cp), lambda i: (0, i, 0))],
            out_specs=pl.BlockSpec((tp, Cp), lambda i: (i, 0)),
        ),
        compiler_params=pltpu.CompilerParams(
            dimension_semantics=("parallel",)),
    )(stacked_p)
    return out[:P, :c].reshape(n, ho, wo, c)


def _fused_tail(x, p):
    """Fused conv3+act3, conv4+act4, conv5+act5, (pool3==identity), flatten, fc
    for the 1x1-spatial case.  x: (N, 192) f32 -> (N, outputs) f32."""
    n, c_in = x.shape
    # 3x3 conv with pad=1 on a 1x1 map only touches the center tap of the kernel.
    w3 = p["conv3_w"][:, :, 1, 1].T                      # (192, 384)
    w4 = p["conv4_w"][:, :, 1, 1].T                      # (384, 256)
    w5 = p["conv5_w"][:, :, 1, 1].T                      # (256, 256)
    wf = p["fc_w"].T                                     # (256, outputs)
    outputs = wf.shape[1]

    Kp = _round_up(c_in, 128)                            # 192 -> 256
    Np_out = _round_up(outputs, 128)
    tm = min(512, _round_up(n, 8))
    Mp = _round_up(n, tm)

    x_p = jnp.pad(x, ((0, Mp - n), (0, Kp - c_in))).astype(jnp.bfloat16)
    w3_p = jnp.pad(w3, ((0, Kp - c_in), (0, 0))).astype(jnp.bfloat16)
    b3 = p["conv3_b"].reshape(1, -1).astype(jnp.float32)
    w4_p = w4.astype(jnp.bfloat16)
    b4 = p["conv4_b"].reshape(1, -1).astype(jnp.float32)
    w5_p = w5.astype(jnp.bfloat16)
    b5 = p["conv5_b"].reshape(1, -1).astype(jnp.float32)
    wf_p = jnp.pad(wf, ((0, 0), (0, Np_out - outputs))).astype(jnp.bfloat16)
    bf_p = jnp.pad(p["fc_b"].reshape(1, -1).astype(jnp.float32),
                   ((0, 0), (0, Np_out - outputs)))

    const = lambda i: (0, 0)   # resident weights/biases across the batch grid
    out = pl.pallas_call(
        _tail_kernel,
        out_shape=jax.ShapeDtypeStruct((Mp, Np_out), jnp.float32),
        grid_spec=pltpu.PrefetchScalarGridSpec(
            num_scalar_prefetch=0,
            grid=(Mp // tm,),
            in_specs=[
                pl.BlockSpec((tm, Kp), lambda i: (i, 0)),
                pl.BlockSpec(w3_p.shape, const), pl.BlockSpec(b3.shape, const),
                pl.BlockSpec(w4_p.shape, const), pl.BlockSpec(b4.shape, const),
                pl.BlockSpec(w5_p.shape, const), pl.BlockSpec(b5.shape, const),
                pl.BlockSpec(wf_p.shape, const), pl.BlockSpec(bf_p.shape, const),
            ],
            out_specs=pl.BlockSpec((tm, Np_out), lambda i: (i, 0)),
        ),
        compiler_params=pltpu.CompilerParams(
            dimension_semantics=("parallel",)),
    )(x_p, w3_p, b3, w4_p, b4, w5_p, b5, wf_p, bf_p)
    return out[:n, :outputs]


# ----------------------------------------------------------------------------
# AlexNet forward (activation_type='softplus', get_sig=False)
# ----------------------------------------------------------------------------

def alexnet_forward(x_nchw, p):
    x = jnp.transpose(x_nchw, (0, 2, 3, 1))                                   # NCHW -> NHWC once
    x = conv2d_softplus_nhwc(x, p["conv1_w"], p["conv1_b"], stride=4, pad=2)  # conv1 + act1
    x = maxpool2d_nhwc(x, 3, 2)                                               # pool1
    x = conv2d_softplus_nhwc(x, p["conv2_w"], p["conv2_b"], stride=1, pad=2)  # conv2 + act2
    x = maxpool2d_nhwc(x, 3, 2)                                               # pool2

    n, h, w, c = x.shape
    if h == 1 and w == 1:
        # conv3..conv5 at 1x1 spatial reduce exactly to center-tap matmuls,
        # pool3 (k=1) is the identity: fuse the whole tail into one kernel.
        return _fused_tail(x.reshape(n, c), p)

    # Generic fallback (only reachable for input sizes the torch module itself
    # could not flatten into 1*1*256).
    x = conv2d_softplus_nhwc(x, p["conv3_w"], p["conv3_b"], stride=1, pad=1)
    x = conv2d_softplus_nhwc(x, p["conv4_w"], p["conv4_b"], stride=1, pad=1)
    x = conv2d_softplus_nhwc(x, p["conv5_w"], p["conv5_b"], stride=1, pad=1)
    x = x[:, ::2, ::2, :]                                  # pool3: k=1,s=2 == strided subsample
    x = x.reshape(x.shape[0], -1)
    return _matmul_bias_act(x, p["fc_w"].T, p["fc_b"], apply_act=False)
    # TODO(synk): get_sig=True branch (second fc_sig head) and mc_dropout (stochastic
    # dropout) are not part of the default forward and are omitted.


# ----------------------------------------------------------------------------
# Deterministic parameter init (shapes follow nn.Module.__init__)
# ----------------------------------------------------------------------------

def init_params(key, inputs, outputs):
    def winit(k, shape, fan_in):
        return (jax.random.normal(k, shape, jnp.float32) / jnp.sqrt(fan_in)).astype(jnp.float32)

    keys = jax.random.split(key, 12)
    p = {}
    p["conv1_w"] = winit(keys[0], (64, inputs, 11, 11), inputs * 11 * 11)
    p["conv1_b"] = winit(keys[1], (64,), inputs * 11 * 11)
    p["conv2_w"] = winit(keys[2], (192, 64, 5, 5), 64 * 5 * 5)
    p["conv2_b"] = winit(keys[3], (192,), 64 * 5 * 5)
    p["conv3_w"] = winit(keys[4], (384, 192, 3, 3), 192 * 3 * 3)
    p["conv3_b"] = winit(keys[5], (384,), 192 * 3 * 3)
    p["conv4_w"] = winit(keys[6], (256, 384, 3, 3), 384 * 3 * 3)
    p["conv4_b"] = winit(keys[7], (256,), 384 * 3 * 3)
    p["conv5_w"] = winit(keys[8], (256, 256, 3, 3), 256 * 3 * 3)
    p["conv5_b"] = winit(keys[9], (256,), 256 * 3 * 3)
    p["fc_w"] = winit(keys[10], (outputs, 256), 256)
    p["fc_b"] = winit(keys[11], (outputs,), 256)
    return p


if __name__ == "__main__":
    key = jax.random.PRNGKey(0)
    batch, in_ch, hw = 2, 3, 32          # 32x32 is what the flatten(1*1*256) implies
    num_classes = 10

    params = init_params(key, in_ch, num_classes)
    x = jax.random.normal(jax.random.fold_in(key, 999),
                          (batch, in_ch, hw, hw), jnp.float32)

    fwd = jax.jit(lambda xx: alexnet_forward(xx, params))
    out = fwd(x)
    out = jax.block_until_ready(out)

    assert out.shape == (batch, num_classes), out.shape
    assert jnp.all(jnp.isfinite(out))
    print("KERNEL_OK")
</pallas_src>

<mosaic_0001>
module attributes {stable_mosaic.version = 11 : i64} {
  func.func @_mm_bias_act_kernel(%arg0: i32, %arg1: memref<104x384xbf16, #tpu.memory_space<vmem>>, %arg2: memref<384x128xbf16, #tpu.memory_space<vmem>>, %arg3: memref<1x128xf32, #tpu.memory_space<vmem>>, %arg4: memref<104x128xf32, #tpu.memory_space<vmem>>) attributes {dimension_semantics = [#tpu.dimension_semantics<parallel>], iteration_bounds = array<i64: 1>, scalar_prefetch = 0 : i64, scratch_operands = 0 : i64, tpu.core_type = #tpu.core_type<tc>, window_params = [{transform_indices = @transform_0, window_bounds = array<i64: 104, 384>}, {pipeline_mode = #tpu.pipeline_mode<synchronous>, transform_indices = @transform_1, window_bounds = array<i64: 384, 128>}, {pipeline_mode = #tpu.pipeline_mode<synchronous>, transform_indices = @transform_2, window_bounds = array<i64: 1, 128>}, {transform_indices = @transform_3, window_bounds = array<i64: 104, 128>}]} {
    %c0 = arith.constant 0 : index
    %c0_0 = arith.constant 0 : index
    %0 = vector.load %arg1[%c0, %c0_0] : memref<104x384xbf16, #tpu.memory_space<vmem>>, vector<104x384xbf16>
    %c0_1 = arith.constant 0 : index
    %c0_2 = arith.constant 0 : index
    %1 = vector.load %arg2[%c0_1, %c0_2] : memref<384x128xbf16, #tpu.memory_space<vmem>>, vector<384x128xbf16>
    %cst = arith.constant dense<0.000000e+00> : vector<104x128xf32>
    %2 = tpu.matmul %0, %1, %cst {dimension_numbers = #tpu.dot_dimension_numbers<[1], [0], [0], [1], [0, 0, 1, 1], [], []>} : vector<104x384xbf16>, vector<384x128xbf16>, vector<104x128xf32> -> vector<104x128xf32>
    %c0_3 = arith.constant 0 : index
    %c0_4 = arith.constant 0 : index
    %3 = vector.load %arg3[%c0_3, %c0_4] : memref<1x128xf32, #tpu.memory_space<vmem>>, vector<1x128xf32>
    %4 = vector.broadcast %3 : vector<1x128xf32> to vector<104x128xf32>
    %5 = arith.addf %2, %4 : vector<104x128xf32>
    %cst_5 = arith.constant 0.000000e+00 : f32
    %6 = vector.broadcast %cst_5 : f32 to vector<104x128xf32>
    %7 = arith.maximumf %5, %6 : vector<104x128xf32>
    %8 = vector.broadcast %cst_5 : f32 to vector<104x128xf32>
    %9 = arith.subf %5, %8 : vector<104x128xf32>
    %10 = arith.cmpf one, %9, %9 : vector<104x128xf32>
    %11 = vector.broadcast %cst_5 : f32 to vector<104x128xf32>
    %12 = arith.addf %5, %11 : vector<104x128xf32>
    %13 = math.absf %9 : vector<104x128xf32>
    %cst_6 = arith.constant 0.000000e+00 : f32
    %14 = vector.broadcast %cst_6 : f32 to vector<104x128xf32>
    %15 = arith.subf %14, %13 : vector<104x128xf32>
    %16 = math.exp %15 : vector<104x128xf32>
    %17 = math.log1p %16 : vector<104x128xf32>
    %18 = arith.addf %7, %17 : vector<104x128xf32>
    %19 = arith.select %10, %12, %18 : vector<104x128xi1>, vector<104x128xf32>
    %c0_7 = arith.constant 0 : index
    %c0_8 = arith.constant 0 : index
    %20 = vector.load %arg4[%c0_7, %c0_8] : memref<104x128xf32, #tpu.memory_space<vmem>>, vector<104x128xf32>
    tpu.vector_store %arg4[%c0_7, %c0_8], %19 {strides = array<i32>} : memref<104x128xf32, #tpu.memory_space<vmem>>, vector<104x128xf32>,
    return
  }
  func.func @transform_0(%arg0: i32) -> (i32, i32) {
    %c0_i32 = arith.constant 0 : i32
    %c0_i32_0 = arith.constant 0 : i32
    return %arg0, %c0_i32 : i32, i32
  }
  func.func @transform_1(%arg0: i32) -> (i32, i32) {
    %c0_i32 = arith.constant 0 : i32
    %c0_i32_0 = arith.constant 0 : i32
    %c0_i32_1 = arith.constant 0 : i32
    return %c0_i32, %c0_i32_0 : i32, i32
  }
  func.func @transform_2(%arg0: i32) -> (i32, i32) {
    %c0_i32 = arith.constant 0 : i32
    %c0_i32_0 = arith.constant 0 : i32
    %c0_i32_1 = arith.constant 0 : i32
    return %c0_i32, %c0_i32_0 : i32, i32
  }
  func.func @transform_3(%arg0: i32) -> (i32, i32) {
    %c0_i32 = arith.constant 0 : i32
    %c0_i32_0 = arith.constant 0 : i32
    return %arg0, %c0_i32 : i32, i32
  }
}

module attributes {stable_mosaic.version = 11 : i64} {
  func.func @_max_reduce_kernel(%arg0: i32, %arg1: memref<9x24x128xf32, #tpu.memory_space<vmem>>, %arg2: memref<24x128xf32, #tpu.memory_space<vmem>>) attributes {dimension_semantics = [#tpu.dimension_semantics<parallel>], iteration_bounds = array<i64: 1>, scalar_prefetch = 0 : i64, scratch_operands = 0 : i64, tpu.core_type = #tpu.core_type<tc>, window_params = [{transform_indices = @transform_0, window_bounds = array<i64: 9, 24, 128>}, {transform_indices = @transform_1, window_bounds = array<i64: 24, 128>}]} {
    %c0 = arith.constant 0 : index
    %c0_0 = arith.constant 0 : index
    %c0_1 = arith.constant 0 : index
    %0 = vector.load %arg1[%c0, %c0_0, %c0_1] : memref<9x24x128xf32, #tpu.memory_space<vmem>>, vector<9x24x128xf32>
    %cst = arith.constant dense<0xFF800000> : vector<24x128xf32>
    %1 = vector.multi_reduction <maximumf>, %0, %cst [0] : vector<9x24x128xf32> to vector<24x128xf32>
    %c0_2 = arith.constant 0 : index
    %c0_3 = arith.constant 0 : index
    %2 = vector.load %arg2[%c0_2, %c0_3] : memref<24x128xf32, #tpu.memory_space<vmem>>, vector<24x128xf32>
    tpu.vector_store %arg2[%c0_2, %c0_3], %1 {strides = array<i32>} : memref<24x128xf32, #tpu.memory_space<vmem>>, vector<24x128xf32>,
    return
  }
  func.func @transform_0(%arg0: i32) -> (i32, i32, i32) {
    %c0_i32 = arith.constant 0 : i32
    %c0_i32_0 = arith.constant 0 : i32
    %c0_i32_1 = arith.constant 0 : i32
    return %c0_i32, %arg0, %c0_i32_0 : i32, i32, i32
  }
  func.func @transform_1(%arg0: i32) -> (i32, i32) {
    %c0_i32 = arith.constant 0 : i32
    %c0_i32_0 = arith.constant 0 : i32
    return %arg0, %c0_i32 : i32, i32
  }
}

module attributes {stable_mosaic.version = 11 : i64} {
  func.func @_mm_bias_act_kernel(%arg0: i32, %arg1: memref<24x1664xbf16, #tpu.memory_space<vmem>>, %arg2: memref<1664x256xbf16, #tpu.memory_space<vmem>>, %arg3: memref<1x256xf32, #tpu.memory_space<vmem>>, %arg4: memref<24x256xf32, #tpu.memory_space<vmem>>) attributes {dimension_semantics = [#tpu.dimension_semantics<parallel>], iteration_bounds = array<i64: 1>, scalar_prefetch = 0 : i64, scratch_operands = 0 : i64, tpu.core_type = #tpu.core_type<tc>, window_params = [{transform_indices = @transform_0, window_bounds = array<i64: 24, 1664>}, {pipeline_mode = #tpu.pipeline_mode<synchronous>, transform_indices = @transform_1, window_bounds = array<i64: 1664, 256>}, {pipeline_mode = #tpu.pipeline_mode<synchronous>, transform_indices = @transform_2, window_bounds = array<i64: 1, 256>}, {transform_indices = @transform_3, window_bounds = array<i64: 24, 256>}]} {
    %c0 = arith.constant 0 : index
    %c0_0 = arith.constant 0 : index
    %0 = vector.load %arg1[%c0, %c0_0] : memref<24x1664xbf16, #tpu.memory_space<vmem>>, vector<24x1664xbf16>
    %c0_1 = arith.constant 0 : index
    %c0_2 = arith.constant 0 : index
    %1 = vector.load %arg2[%c0_1, %c0_2] : memref<1664x256xbf16, #tpu.memory_space<vmem>>, vector<1664x256xbf16>
    %cst = arith.constant dense<0.000000e+00> : vector<24x256xf32>
    %2 = tpu.matmul %0, %1, %cst {dimension_numbers = #tpu.dot_dimension_numbers<[1], [0], [0], [1], [0, 0, 1, 1], [], []>} : vector<24x1664xbf16>, vector<1664x256xbf16>, vector<24x256xf32> -> vector<24x256xf32>
    %c0_3 = arith.constant 0 : index
    %c0_4 = arith.constant 0 : index
    %3 = vector.load %arg3[%c0_3, %c0_4] : memref<1x256xf32, #tpu.memory_space<vmem>>, vector<1x256xf32>
    %4 = vector.broadcast %3 : vector<1x256xf32> to vector<24x256xf32>
    %5 = arith.addf %2, %4 : vector<24x256xf32>
    %cst_5 = arith.constant 0.000000e+00 : f32
    %6 = vector.broadcast %cst_5 : f32 to vector<24x256xf32>
    %7 = arith.maximumf %5, %6 : vector<24x256xf32>
    %8 = vector.broadcast %cst_5 : f32 to vector<24x256xf32>
    %9 = arith.subf %5, %8 : vector<24x256xf32>
    %10 = arith.cmpf one, %9, %9 : vector<24x256xf32>
    %11 = vector.broadcast %cst_5 : f32 to vector<24x256xf32>
    %12 = arith.addf %5, %11 : vector<24x256xf32>
    %13 = math.absf %9 : vector<24x256xf32>
    %cst_6 = arith.constant 0.000000e+00 : f32
    %14 = vector.broadcast %cst_6 : f32 to vector<24x256xf32>
    %15 = arith.subf %14, %13 : vector<24x256xf32>
    %16 = math.exp %15 : vector<24x256xf32>
    %17 = math.log1p %16 : vector<24x256xf32>
    %18 = arith.addf %7, %17 : vector<24x256xf32>
    %19 = arith.select %10, %12, %18 : vector<24x256xi1>, vector<24x256xf32>
    %c0_7 = arith.constant 0 : index
    %c0_8 = arith.constant 0 : index
    %20 = vector.load %arg4[%c0_7, %c0_8] : memref<24x256xf32, #tpu.memory_space<vmem>>, vector<24x256xf32>
    tpu.vector_store %arg4[%c0_7, %c0_8], %19 {strides = array<i32>} : memref<24x256xf32, #tpu.memory_space<vmem>>, vector<24x256xf32>,
    return
  }
  func.func @transform_0(%arg0: i32) -> (i32, i32) {
    %c0_i32 = arith.constant 0 : i32
    %c0_i32_0 = arith.constant 0 : i32
    return %arg0, %c0_i32 : i32, i32
  }
  func.func @transform_1(%arg0: i32) -> (i32, i32) {
    %c0_i32 = arith.constant 0 : i32
    %c0_i32_0 = arith.constant 0 : i32
    %c0_i32_1 = arith.constant 0 : i32
    return %c0_i32, %c0_i32_0 : i32, i32
  }
  func.func @transform_2(%arg0: i32) -> (i32, i32) {
    %c0_i32 = arith.constant 0 : i32
    %c0_i32_0 = arith.constant 0 : i32
    %c0_i32_1 = arith.constant 0 : i32
    return %c0_i32, %c0_i32_0 : i32, i32
  }
  func.func @transform_3(%arg0: i32) -> (i32, i32) {
    %c0_i32 = arith.constant 0 : i32
    %c0_i32_0 = arith.constant 0 : i32
    return %arg0, %c0_i32 : i32, i32
  }
}

module attributes {stable_mosaic.version = 11 : i64} {
  func.func @_tail_kernel(%arg0: i32, %arg1: memref<8x256xbf16, #tpu.memory_space<vmem>>, %arg2: memref<256x384xbf16, #tpu.memory_space<vmem>>, %arg3: memref<1x384xf32, #tpu.memory_space<vmem>>, %arg4: memref<384x256xbf16, #tpu.memory_space<vmem>>, %arg5: memref<1x256xf32, #tpu.memory_space<vmem>>, %arg6: memref<256x256xbf16, #tpu.memory_space<vmem>>, %arg7: memref<1x256xf32, #tpu.memory_space<vmem>>, %arg8: memref<256x128xbf16, #tpu.memory_space<vmem>>, %arg9: memref<1x128xf32, #tpu.memory_space<vmem>>, %arg10: memref<8x128xf32, #tpu.memory_space<vmem>>) attributes {dimension_semantics = [#tpu.dimension_semantics<parallel>], iteration_bounds = array<i64: 1>, scalar_prefetch = 0 : i64, scratch_operands = 0 : i64, tpu.core_type = #tpu.core_type<tc>, window_params = [{transform_indices = @transform_0, window_bounds = array<i64: 8, 256>}, {pipeline_mode = #tpu.pipeline_mode<synchronous>, transform_indices = @transform_1, window_bounds = array<i64: 256, 384>}, {pipeline_mode = #tpu.pipeline_mode<synchronous>, transform_indices = @transform_2, window_bounds = array<i64: 1, 384>}, {pipeline_mode = #tpu.pipeline_mode<synchronous>, transform_indices = @transform_3, window_bounds = array<i64: 384, 256>}, {pipeline_mode = #tpu.pipeline_mode<synchronous>, transform_indices = @transform_4, window_bounds = array<i64: 1, 256>}, {pipeline_mode = #tpu.pipeline_mode<synchronous>, transform_indices = @transform_5, window_bounds = array<i64: 256, 256>}, {pipeline_mode = #tpu.pipeline_mode<synchronous>, transform_indices = @transform_6, window_bounds = array<i64: 1, 256>}, {pipeline_mode = #tpu.pipeline_mode<synchronous>, transform_indices = @transform_7, window_bounds = array<i64: 256, 128>}, {pipeline_mode = #tpu.pipeline_mode<synchronous>, transform_indices = @transform_8, window_bounds = array<i64: 1, 128>}, {transform_indices = @transform_9, window_bounds = array<i64: 8, 128>}]} {
    %c0 = arith.constant 0 : index
    %c0_0 = arith.constant 0 : index
    %0 = vector.load %arg1[%c0, %c0_0] : memref<8x256xbf16, #tpu.memory_space<vmem>>, vector<8x256xbf16>
    %c0_1 = arith.constant 0 : index
    %c0_2 = arith.constant 0 : index
    %1 = vector.load %arg2[%c0_1, %c0_2] : memref<256x384xbf16, #tpu.memory_space<vmem>>, vector<256x384xbf16>
    %cst = arith.constant dense<0.000000e+00> : vector<8x384xf32>
    %2 = tpu.matmul %0, %1, %cst {dimension_numbers = #tpu.dot_dimension_numbers<[1], [0], [0], [1], [0, 0, 1, 1], [], []>} : vector<8x256xbf16>, vector<256x384xbf16>, vector<8x384xf32> -> vector<8x384xf32>
    %c0_3 = arith.constant 0 : index
    %c0_4 = arith.constant 0 : index
    %3 = vector.load %arg3[%c0_3, %c0_4] : memref<1x384xf32, #tpu.memory_space<vmem>>, vector<1x384xf32>
    %4 = vector.broadcast %3 : vector<1x384xf32> to vector<8x384xf32>
    %5 = arith.addf %2, %4 : vector<8x384xf32>
    %cst_5 = arith.constant 0.000000e+00 : f32
    %6 = vector.broadcast %cst_5 : f32 to vector<8x384xf32>
    %7 = arith.maximumf %5, %6 : vector<8x384xf32>
    %8 = vector.broadcast %cst_5 : f32 to vector<8x384xf32>
    %9 = arith.subf %5, %8 : vector<8x384xf32>
    %10 = arith.cmpf one, %9, %9 : vector<8x384xf32>
    %11 = vector.broadcast %cst_5 : f32 to vector<8x384xf32>
    %12 = arith.addf %5, %11 : vector<8x384xf32>
    %13 = math.absf %9 : vector<8x384xf32>
    %cst_6 = arith.constant 0.000000e+00 : f32
    %14 = vector.broadcast %cst_6 : f32 to vector<8x384xf32>
    %15 = arith.subf %14, %13 : vector<8x384xf32>
    %16 = math.exp %15 : vector<8x384xf32>
    %17 = math.log1p %16 : vector<8x384xf32>
    %18 = arith.addf %7, %17 : vector<8x384xf32>
    %19 = arith.select %10, %12, %18 : vector<8x384xi1>, vector<8x384xf32>
    %20 = arith.truncf %19 : vector<8x384xf32> to vector<8x384xbf16>
    %c0_7 = arith.constant 0 : index
    %c0_8 = arith.constant 0 : index
    %21 = vector.load %arg4[%c0_7, %c0_8] : memref<384x256xbf16, #tpu.memory_space<vmem>>, vector<384x256xbf16>
    %cst_9 = arith.constant dense<0.000000e+00> : vector<8x256xf32>
    %22 = tpu.matmul %20, %21, %cst_9 {dimension_numbers = #tpu.dot_dimension_numbers<[1], [0], [0], [1], [0, 0, 1, 1], [], []>} : vector<8x384xbf16>, vector<384x256xbf16>, vector<8x256xf32> -> vector<8x256xf32>
    %c0_10 = arith.constant 0 : index
    %c0_11 = arith.constant 0 : index
    %23 = vector.load %arg5[%c0_10, %c0_11] : memref<1x256xf32, #tpu.memory_space<vmem>>, vector<1x256xf32>
    %24 = vector.broadcast %23 : vector<1x256xf32> to vector<8x256xf32>
    %25 = arith.addf %22, %24 : vector<8x256xf32>
    %cst_12 = arith.constant 0.000000e+00 : f32
    %26 = vector.broadcast %cst_12 : f32 to vector<8x256xf32>
    %27 = arith.maximumf %25, %26 : vector<8x256xf32>
    %28 = vector.broadcast %cst_12 : f32 to vector<8x256xf32>
    %29 = arith.subf %25, %28 : vector<8x256xf32>
    %30 = arith.cmpf one, %29, %29 : vector<8x256xf32>
    %31 = vector.broadcast %cst_12 : f32 to vector<8x256xf32>
    %32 = arith.addf %25, %31 : vector<8x256xf32>
    %33 = math.absf %29 : vector<8x256xf32>
    %cst_13 = arith.constant 0.000000e+00 : f32
    %34 = vector.broadcast %cst_13 : f32 to vector<8x256xf32>
    %35 = arith.subf %34, %33 : vector<8x256xf32>
    %36 = math.exp %35 : vector<8x256xf32>
    %37 = math.log1p %36 : vector<8x256xf32>
    %38 = arith.addf %27, %37 : vector<8x256xf32>
    %39 = arith.select %30, %32, %38 : vector<8x256xi1>, vector<8x256xf32>
    %40 = arith.truncf %39 : vector<8x256xf32> to vector<8x256xbf16>
    %c0_14 = arith.constant 0 : index
    %c0_15 = arith.constant 0 : index
    %41 = vector.load %arg6[%c0_14, %c0_15] : memref<256x256xbf16, #tpu.memory_space<vmem>>, vector<256x256xbf16>
    %cst_16 = arith.constant dense<0.000000e+00> : vector<8x256xf32>
    %42 = tpu.matmul %40, %41, %cst_16 {dimension_numbers = #tpu.dot_dimension_numbers<[1], [0], [0], [1], [0, 0, 1, 1], [], []>} : vector<8x256xbf16>, vector<256x256xbf16>, vector<8x256xf32> -> vector<8x256xf32>
    %c0_17 = arith.constant 0 : index
    %c0_18 = arith.constant 0 : index
    %43 = vector.load %arg7[%c0_17, %c0_18] : memref<1x256xf32, #tpu.memory_space<vmem>>, vector<1x256xf32>
    %44 = vector.broadcast %43 : vector<1x256xf32> to vector<8x256xf32>
    %45 = arith.addf %42, %44 : vector<8x256xf32>
    %cst_19 = arith.constant 0.000000e+00 : f32
    %46 = vector.broadcast %cst_19 : f32 to vector<8x256xf32>
    %47 = arith.maximumf %45, %46 : vector<8x256xf32>
    %48 = vector.broadcast %cst_19 : f32 to vector<8x256xf32>
    %49 = arith.subf %45, %48 : vector<8x256xf32>
    %50 = arith.cmpf one, %49, %49 : vector<8x256xf32>
    %51 = vector.broadcast %cst_19 : f32 to vector<8x256xf32>
    %52 = arith.addf %45, %51 : vector<8x256xf32>
    %53 = math.absf %49 : vector<8x256xf32>
    %cst_20 = arith.constant 0.000000e+00 : f32
    %54 = vector.broadcast %cst_20 : f32 to vector<8x256xf32>
    %55 = arith.subf %54, %53 : vector<8x256xf32>
    %56 = math.exp %55 : vector<8x256xf32>
    %57 = math.log1p %56 : vector<8x256xf32>
    %58 = arith.addf %47, %57 : vector<8x256xf32>
    %59 = arith.select %50, %52, %58 : vector<8x256xi1>, vector<8x256xf32>
    %60 = arith.truncf %59 : vector<8x256xf32> to vector<8x256xbf16>
    %c0_21 = arith.constant 0 : index
    %c0_22 = arith.constant 0 : index
    %61 = vector.load %arg8[%c0_21, %c0_22] : memref<256x128xbf16, #tpu.memory_space<vmem>>, vector<256x128xbf16>
    %cst_23 = arith.constant dense<0.000000e+00> : vector<8x128xf32>
    %62 = tpu.matmul %60, %61, %cst_23 {dimension_numbers = #tpu.dot_dimension_numbers<[1], [0], [0], [1], [0, 0, 1, 1], [], []>} : vector<8x256xbf16>, vector<256x128xbf16>, vector<8x128xf32> -> vector<8x128xf32>
    %c0_24 = arith.constant 0 : index
    %c0_25 = arith.constant 0 : index
    %63 = vector.load %arg9[%c0_24, %c0_25] : memref<1x128xf32, #tpu.memory_space<vmem>>, vector<1x128xf32>
    %64 = vector.broadcast %63 : vector<1x128xf32> to vector<8x128xf32>
    %65 = arith.addf %62, %64 : vector<8x128xf32>
    %c0_26 = arith.constant 0 : index
    %c0_27 = arith.constant 0 : index
    %66 = vector.load %arg10[%c0_26, %c0_27] : memref<8x128xf32, #tpu.memory_space<vmem>>, vector<8x128xf32>
    tpu.vector_store %arg10[%c0_26, %c0_27], %65 {strides = array<i32>} : memref<8x128xf32, #tpu.memory_space<vmem>>, vector<8x128xf32>,
    return
  }
  func.func @transform_0(%arg0: i32) -> (i32, i32) {
    %c0_i32 = arith.constant 0 : i32
    %c0_i32_0 = arith.constant 0 : i32
    return %arg0, %c0_i32 : i32, i32
  }
  func.func @transform_1(%arg0: i32) -> (i32, i32) {
    %c0_i32 = arith.constant 0 : i32
    %c0_i32_0 = arith.constant 0 : i32
    %c0_i32_1 = arith.constant 0 : i32
    return %c0_i32, %c0_i32_0 : i32, i32
  }
  func.func @transform_2(%arg0: i32) -> (i32, i32) {
    %c0_i32 = arith.constant 0 : i32
    %c0_i32_0 = arith.constant 0 : i32
    %c0_i32_1 = arith.constant 0 : i32
    return %c0_i32, %c0_i32_0 : i32, i32
  }
  func.func @transform_3(%arg0: i32) -> (i32, i32) {
    %c0_i32 = arith.constant 0 : i32
    %c0_i32_0 = arith.constant 0 : i32
    %c0_i32_1 = arith.constant 0 : i32
    return %c0_i32, %c0_i32_0 : i32, i32
  }
  func.func @transform_4(%arg0: i32) -> (i32, i32) {
    %c0_i32 = arith.constant 0 : i32
    %c0_i32_0 = arith.constant 0 : i32
    %c0_i32_1 = arith.constant 0 : i32
    return %c0_i32, %c0_i32_0 : i32, i32
  }
  func.func @transform_5(%arg0: i32) -> (i32, i32) {
    %c0_i32 = arith.constant 0 : i32
    %c0_i32_0 = arith.constant 0 : i32
    %c0_i32_1 = arith.constant 0 : i32
    return %c0_i32, %c0_i32_0 : i32, i32
  }
  func.func @transform_6(%arg0: i32) -> (i32, i32) {
    %c0_i32 = arith.constant 0 : i32
    %c0_i32_0 = arith.constant 0 : i32
    %c0_i32_1 = arith.constant 0 : i32
    return %c0_i32, %c0_i32_0 : i32, i32
  }
  func.func @transform_7(%arg0: i32) -> (i32, i32) {
    %c0_i32 = arith.constant 0 : i32
    %c0_i32_0 = arith.constant 0 : i32
    %c0_i32_1 = arith.constant 0 : i32
    return %c0_i32, %c0_i32_0 : i32, i32
  }
  func.func @transform_8(%arg0: i32) -> (i32, i32) {
    %c0_i32 = arith.constant 0 : i32
    %c0_i32_0 = arith.constant 0 : i32
    %c0_i32_1 = arith.constant 0 : i32
    return %c0_i32, %c0_i32_0 : i32, i32
  }
  func.func @transform_9(%arg0: i32) -> (i32, i32) {
    %c0_i32 = arith.constant 0 : i32
    %c0_i32_0 = arith.constant 0 : i32
    return %arg0, %c0_i32 : i32, i32
  }
}

module attributes {stable_mosaic.version = 11 : i64} {
  func.func @_max_reduce_kernel(%arg0: i32, %arg1: memref<9x8x256xf32, #tpu.memory_space<vmem>>, %arg2: memref<8x256xf32, #tpu.memory_space<vmem>>) attributes {dimension_semantics = [#tpu.dimension_semantics<parallel>], iteration_bounds = array<i64: 1>, scalar_prefetch = 0 : i64, scratch_operands = 0 : i64, tpu.core_type = #tpu.core_type<tc>, window_params = [{transform_indices = @transform_0, window_bounds = array<i64: 9, 8, 256>}, {transform_indices = @transform_1, window_bounds = array<i64: 8, 256>}]} {
    %c0 = arith.constant 0 : index
    %c0_0 = arith.constant 0 : index
    %c0_1 = arith.constant 0 : index
    %0 = vector.load %arg1[%c0, %c0_0, %c0_1] : memref<9x8x256xf32, #tpu.memory_space<vmem>>, vector<9x8x256xf32>
    %cst = arith.constant dense<0xFF800000> : vector<8x256xf32>
    %1 = vector.multi_reduction <maximumf>, %0, %cst [0] : vector<9x8x256xf32> to vector<8x256xf32>
    %c0_2 = arith.constant 0 : index
    %c0_3 = arith.constant 0 : index
    %2 = vector.load %arg2[%c0_2, %c0_3] : memref<8x256xf32, #tpu.memory_space<vmem>>, vector<8x256xf32>
    tpu.vector_store %arg2[%c0_2, %c0_3], %1 {strides = array<i32>} : memref<8x256xf32, #tpu.memory_space<vmem>>, vector<8x256xf32>,
    return
  }
  func.func @transform_0(%arg0: i32) -> (i32, i32, i32) {
    %c0_i32 = arith.constant 0 : i32
    %c0_i32_0 = arith.constant 0 : i32
    %c0_i32_1 = arith.constant 0 : i32
    return %c0_i32, %arg0, %c0_i32_0 : i32, i32, i32
  }
  func.func @transform_1(%arg0: i32) -> (i32, i32) {
    %c0_i32 = arith.constant 0 : i32
    %c0_i32_0 = arith.constant 0 : i32
    return %arg0, %c0_i32 : i32, i32
  }
}

</mosaic_0001>

<llo_original>
// kernel: _lambda_.5
$region0: #{_lambda_.5}
  #allocation0 [shape = 'u32[]', space=smem, size = 0x4, offset = 0x4, fixed_abs, tag = 'smem constant byte address 0x4 - core index']
  #allocation1 [shape = 'u32[144,128]{1,0:T(1,128)}', space=vmem, size = 0x12000, scoped, tag = 'internal scratch']
  %s0 = inlined_call_operand.vmem [shape: bf16[104,384], index: 0, kind: input, shape index: {}]
  %s1 = inlined_call_operand.vmem [shape: bf16[384,128], index: 1, kind: input, shape index: {}]
  %s2 = inlined_call_operand.vmem [shape: f32[1,128], index: 2, kind: input, shape index: {}]
  %s3 = inlined_call_operand.vmem [shape: f32[104,128], index: 3, kind: output, shape index: {}]
  %s4 = sld [smem:[#allocation0]]
  $region22: #{_lambda_.5} parent=0
    _
  %s6 = ssub.s32 1, %s4
  %s7 = scalar_select 0, %s6, %s4
  // Predicated region
  $region2: #{_lambda_.5} parent=0 // pred_check
    _
  $region3: #{_lambda_.5} parent=0 // pred_check_branch
    %9 = sbr.rel (0) target = $region5
  $region4: #{_lambda_.5} parent=0 // pred_region
    _
  $region5: #{_lambda_.5} parent=0 // pred_fallthru
    _
  // Predicated region
  $region6: #{_lambda_.5} parent=0 // pred_check
    _
  $region7: #{_lambda_.5} parent=0 // pred_check_branch
    %11 = sbr.rel (0) target = $region9
  $region8: #{_lambda_.5} parent=0 // pred_region
    _
  $region9: #{_lambda_.5} parent=0 // pred_fallthru
    _
  // Predicated region
  $region10: #{_lambda_.5} parent=0 // pred_check
    _
  $region11: #{_lambda_.5} parent=0 // pred_check_branch
    %13 = sbr.rel (0) target = $region13
  $region12: #{_lambda_.5} parent=0 // pred_region
    _
  $region13: #{_lambda_.5} parent=0 // pred_fallthru
    _
  %v15 = vld [vmem:[%s0] sm:$0xff]
  %v16 = vld [vmem:[%s0 + $0x8] sm:$0xf]
  %v17 = vld [vmem:[%s0 + $0xc] sm:$0xff]
  %v18 = vld [vmem:[%s0 + $0x14] sm:$0xf]
  %v19 = vld [vmem:[%s0 + $0x18] sm:$0xff]
  %v20 = vld [vmem:[%s0 + $0x20] sm:$0xf]
  %v21 = vld [vmem:[%s0 + $0x24] sm:$0xff]
  %v22 = vld [vmem:[%s0 + $0x2c] sm:$0xf]
  %v23 = vld [vmem:[%s0 + $0x30] sm:$0xff]
  %v24 = vld [vmem:[%s0 + $0x38] sm:$0xf]
  %v25 = vld [vmem:[%s0 + $0x3c] sm:$0xff]
  %v26 = vld [vmem:[%s0 + $0x44] sm:$0xf]
  %v27 = vld [vmem:[%s0 + $0x48] sm:$0xff]
  %v28 = vld [vmem:[%s0 + $0x50] sm:$0xf]
  %v29 = vld [vmem:[%s0 + $0x54] sm:$0xff]
  %v30 = vld [vmem:[%s0 + $0x5c] sm:$0xf]
  %v31 = vld [vmem:[%s0 + $0x60] sm:$0xff]
  %v32 = vld [vmem:[%s0 + $0x68] sm:$0xf]
  %v33 = vld [vmem:[%s0 + $0x6c] sm:$0xff]
  %v34 = vld [vmem:[%s0 + $0x74] sm:$0xf]
  %v35 = vld [vmem:[%s0 + $0x78] sm:$0xff]
  %v36 = vld [vmem:[%s0 + $0x80] sm:$0xf]
  %v37 = vld [vmem:[%s0 + $0x84] sm:$0xff]
  %v38 = vld [vmem:[%s0 + $0x8c] sm:$0xf]
  %v39 = vld [vmem:[%s0 + $0x90] sm:$0xff]
  %v40 = vld [vmem:[%s0 + $0x98] sm:$0xf]
  %v41 = vld [vmem:[%s1] sm:$0xf]
  %v42 = vld [vmem:[%s1 + $0x4] sm:$0xf]
  %v43 = vld [vmem:[%s1 + $0x8] sm:$0xf]
  %v44 = vld [vmem:[%s1 + $0xc] sm:$0xf]
  %v45 = vld [vmem:[%s1 + $0x10] sm:$0xf]
  %v46 = vld [vmem:[%s1 + $0x14] sm:$0xf]
  %v47 = vld [vmem:[%s1 + $0x18] sm:$0xf]
  %v48 = vld [vmem:[%s1 + $0x1c] sm:$0xf]
  %v49 = vld [vmem:[%s1 + $0x20] sm:$0xf]
  %v50 = vld [vmem:[%s1 + $0x24] sm:$0xf]
  %v51 = vld [vmem:[%s1 + $0x28] sm:$0xf]
  %v52 = vld [vmem:[%s1 + $0x2c] sm:$0xf]
  %v53 = vld [vmem:[%s1 + $0x30] sm:$0xf]
  %v54 = vld [vmem:[%s1 + $0x34] sm:$0xf]
  %v55 = vld [vmem:[%s1 + $0x38] sm:$0xf]
  %v56 = vld [vmem:[%s1 + $0x3c] sm:$0xf]
  %v57 = vld [vmem:[%s1 + $0x40] sm:$0xf]
  %v58 = vld [vmem:[%s1 + $0x44] sm:$0xf]
  %v59 = vld [vmem:[%s1 + $0x48] sm:$0xf]
  %v60 = vld [vmem:[%s1 + $0x4c] sm:$0xf]
  %v61 = vld [vmem:[%s1 + $0x50] sm:$0xf]
  %v62 = vld [vmem:[%s1 + $0x54] sm:$0xf]
  %v63 = vld [vmem:[%s1 + $0x58] sm:$0xf]
  %v64 = vld [vmem:[%s1 + $0x5c] sm:$0xf]
  %v65 = vld [vmem:[%s1 + $0x60] sm:$0xf]
  %v66 = vld [vmem:[%s1 + $0x64] sm:$0xf]
  %v67 = vld [vmem:[%s1 + $0x68] sm:$0xf]
  %v68 = vld [vmem:[%s1 + $0x6c] sm:$0xf]
  %v69 = vld [vmem:[%s1 + $0x70] sm:$0xf]
  %v70 = vld [vmem:[%s1 + $0x74] sm:$0xf]
  %v71 = vld [vmem:[%s1 + $0x78] sm:$0xf]
  %v72 = vld [vmem:[%s1 + $0x7c] sm:$0xf]
  %v73 = vld [vmem:[%s1 + $0x80] sm:$0xf]
  %v74 = vld [vmem:[%s1 + $0x84] sm:$0xf]
  %v75 = vld [vmem:[%s1 + $0x88] sm:$0xf]
  %v76 = vld [vmem:[%s1 + $0x8c] sm:$0xf]
  %v77 = vld [vmem:[%s1 + $0x90] sm:$0xf]
  %v78 = vld [vmem:[%s1 + $0x94] sm:$0xf]
  %v79 = vld [vmem:[%s1 + $0x98] sm:$0xf]
  %v80 = vld [vmem:[%s1 + $0x9c] sm:$0xf]
  %v81 = vld [vmem:[%s1 + $0xa0] sm:$0xf]
  %v82 = vld [vmem:[%s1 + $0xa4] sm:$0xf]
  %v83 = vld [vmem:[%s1 + $0xa8] sm:$0xf]
  %v84 = vld [vmem:[%s1 + $0xac] sm:$0xf]
  %v85 = vld [vmem:[%s1 + $0xb0] sm:$0xf]
  %v86 = vld [vmem:[%s1 + $0xb4] sm:$0xf]
  %v87 = vld [vmem:[%s1 + $0xb8] sm:$0xf]
  %v88 = vld [vmem:[%s1 + $0xbc] sm:$0xf]
  %v89 = vld [vmem:[%s2] sm:$0x1]
  %v91 = vlaneseq
  %v92 = vshrl.u32 %v91, 7
  %v93 = vsub.s32 0, %v92
  %v94 = vrot.slane %v89, %v93
  %v122 = vunpack.c.l.b16 %v15
  %v123 = vunpack.c.h.b16 %v15
  %v124 = vunpack.c.l.b16 %v16
  %v125 = vunpack.c.l.b16 %v17
  %v126 = vunpack.c.h.b16 %v17
  %v127 = vunpack.c.l.b16 %v18
  %v128 = vunpack.c.l.b16 %v19
  %v129 = vunpack.c.h.b16 %v19
  %v130 = vunpack.c.l.b16 %v20
  %v131 = vunpack.c.l.b16 %v21
  %v132 = vunpack.c.h.b16 %v21
  %v133 = vunpack.c.l.b16 %v22
  %v134 = vunpack.c.l.b16 %v23
  %v135 = vunpack.c.h.b16 %v23
  %v136 = vunpack.c.l.b16 %v24
  %v137 = vunpack.c.l.b16 %v25
  %v138 = vunpack.c.h.b16 %v25
  %v139 = vunpack.c.l.b16 %v26
  %v140 = vunpack.c.l.b16 %v27
  %v141 = vunpack.c.h.b16 %v27
  %v142 = vunpack.c.l.b16 %v28
  %v143 = vunpack.c.l.b16 %v29
  %v144 = vunpack.c.h.b16 %v29
  %v145 = vunpack.c.l.b16 %v30
  %v146 = vunpack.c.l.b16 %v31
  %v147 = vunpack.c.h.b16 %v31
  %v148 = vunpack.c.l.b16 %v32
  %v149 = vunpack.c.l.b16 %v33
  %v150 = vunpack.c.h.b16 %v33
  %v151 = vunpack.c.l.b16 %v34
  %v152 = vunpack.c.l.b16 %v35
  %v153 = vunpack.c.h.b16 %v35
  %v154 = vunpack.c.l.b16 %v36
  %v155 = vunpack.c.l.b16 %v37
  %v156 = vunpack.c.h.b16 %v37
  %v157 = vunpack.c.l.b16 %v38
  %v158 = vunpack.c.l.b16 %v39
  %v159 = vunpack.c.h.b16 %v39
  %v160 = vunpack.c.l.b16 %v40
  %v161 = vpack.c.b16 %v125, %v122
  %v162 = vpack.c.b16 %v126, %v123
  %v163 = vpack.c.b16 %v127, %v124
  %v164 = vpack.c.b16 %v131, %v128
  %v165 = vpack.c.b16 %v132, %v129
  %v166 = vpack.c.b16 %v133, %v130
  %v167 = vpack.c.b16 %v137, %v134
  %v168 = vpack.c.b16 %v138, %v135
  %v169 = vpack.c.b16 %v139, %v136
  %v170 = vpack.c.b16 %v143, %v140
  %v171 = vpack.c.b16 %v144, %v141
  %v172 = vpack.c.b16 %v145, %v142
  %v173 = vpack.c.b16 %v149, %v146
  %v174 = vpack.c.b16 %v150, %v147
  %v175 = vpack.c.b16 %v151, %v148
  %v176 = vpack.c.b16 %v155, %v152
  %v177 = vpack.c.b16 %v156, %v153
  %v178 = vpack.c.b16 %v157, %v154
  %v179 = vpack.c.b16 %v158, %v158
  %v180 = vpack.c.b16 %v159, %v159
  %v181 = vpack.c.b16 %v160, %v160
  %v251 = vunpack.c.l.b16 %v41
  %v252 = vunpack.c.l.b16 %v42
  %v253 = vunpack.c.l.b16 %v43
  %v254 = vunpack.c.l.b16 %v44
  %v255 = vunpack.c.l.b16 %v45
  %v256 = vunpack.c.l.b16 %v46
  %v257 = vunpack.c.l.b16 %v47
  %v258 = vunpack.c.l.b16 %v48
  %v259 = vunpack.c.l.b16 %v49
  %v260 = vunpack.c.l.b16 %v50
  %v261 = vunpack.c.l.b16 %v51
  %v262 = vunpack.c.l.b16 %v52
  %v263 = vunpack.c.l.b16 %v53
  %v264 = vunpack.c.l.b16 %v54
  %v265 = vunpack.c.l.b16 %v55
  %v266 = vunpack.c.l.b16 %v56
  %v267 = vunpack.c.l.b16 %v57
  %v268 = vunpack.c.l.b16 %v58
  %v269 = vunpack.c.l.b16 %v59
  %v270 = vunpack.c.l.b16 %v60
  %v271 = vunpack.c.l.b16 %v61
  %v272 = vunpack.c.l.b16 %v62
  %v273 = vunpack.c.l.b16 %v63
  %v274 = vunpack.c.l.b16 %v64
  %v275 = vunpack.c.l.b16 %v65
  %v276 = vunpack.c.l.b16 %v66
  %v277 = vunpack.c.l.b16 %v67
  %v278 = vunpack.c.l.b16 %v68
  %v279 = vunpack.c.l.b16 %v69
  %v280 = vunpack.c.l.b16 %v70
  %v281 = vunpack.c.l.b16 %v71
  %v282 = vunpack.c.l.b16 %v72
  %v283 = vunpack.c.l.b16 %v73
  %v284 = vunpack.c.l.b16 %v74
  %v285 = vunpack.c.l.b16 %v75
  %v286 = vunpack.c.l.b16 %v76
  %v287 = vunpack.c.l.b16 %v77
  %v288 = vunpack.c.l.b16 %v78
  %v289 = vunpack.c.l.b16 %v79
  %v290 = vunpack.c.l.b16 %v80
  %v291 = vunpack.c.l.b16 %v81
  %v292 = vunpack.c.l.b16 %v82
  %v293 = vunpack.c.l.b16 %v83
  %v294 = vunpack.c.l.b16 %v84
  %v295 = vunpack.c.l.b16 %v85
  %v296 = vunpack.c.l.b16 %v86
  %v297 = vunpack.c.l.b16 %v87
  %v298 = vunpack.c.l.b16 %v88
  %v299 = vpack.c.b16 %v252, %v251
  %v300 = vpack.c.b16 %v254, %v253
  %v301 = vpack.c.b16 %v256, %v255
  %v302 = vpack.c.b16 %v258, %v257
  %v303 = vpack.c.b16 %v260, %v259
  %v304 = vpack.c.b16 %v262, %v261
  %v305 = vpack.c.b16 %v264, %v263
  %v306 = vpack.c.b16 %v266, %v265
  %v307 = vpack.c.b16 %v268, %v267
  %v308 = vpack.c.b16 %v270, %v269
  %v309 = vpack.c.b16 %v272, %v271
  %v310 = vpack.c.b16 %v274, %v273
  %v311 = vpack.c.b16 %v276, %v275
  %v312 = vpack.c.b16 %v278, %v277
  %v313 = vpack.c.b16 %v280, %v279
  %v314 = vpack.c.b16 %v282, %v281
  %v315 = vpack.c.b16 %v284, %v283
  %v316 = vpack.c.b16 %v286, %v285
  %v317 = vpack.c.b16 %v288, %v287
  %v318 = vpack.c.b16 %v290, %v289
  %v319 = vpack.c.b16 %v292, %v291
  %v320 = vpack.c.b16 %v294, %v293
  %v321 = vpack.c.b16 %v296, %v295
  %v322 = vpack.c.b16 %v298, %v297
  %347 = vmatprep.subr.bf16.mxu0 0
  %348 = vmatpush1.bf16.msra.mxu0 %v299
  %349 = vmatprep.subr.bf16.mxu0 0
  %350 = vmatpush1.bf16.msra.mxu0 %v300
  %351 = vmatprep.subr.bf16.mxu0 0
  %352 = vmatpush1.bf16.msra.mxu0 %v301
  %353 = vmatprep.subr.bf16.mxu0 0
  %354 = vmatpush1.bf16.msra.mxu0 %v302
  %355 = vmatprep.subr.bf16.mxu0 0
  %356 = vmatpush1.bf16.msra.mxu0 %v303
  %357 = vmatprep.subr.bf16.mxu0 0
  %358 = vmatpush1.bf16.msra.mxu0 %v304
  %359 = vmatprep.subr.bf16.mxu0 0
  %360 = vmatpush1.bf16.msra.mxu0 %v305
  %361 = vmatprep.subr.bf16.mxu0 0
  %362 = vmatpush1.bf16.msra.mxu0 %v306
  %363 = vmatprep.subr.bf16.mxu0 0
  %364 = vmatpush1.bf16.msra.mxu0 %v307
  %365 = vmatprep.subr.bf16.mxu0 0
  %366 = vmatpush1.bf16.msra.mxu0 %v308
  %367 = vmatprep.subr.bf16.mxu0 0
  %368 = vmatpush1.bf16.msra.mxu0 %v309
  %369 = vmatprep.subr.bf16.mxu0 0
  %370 = vmatpush1.bf16.msra.mxu0 %v310
  %371 = vmatprep.subr.bf16.mxu0 0
  %372 = vmatpush1.bf16.msra.mxu0 %v311
  %373 = vmatprep.subr.bf16.mxu0 0
  %374 = vmatpush1.bf16.msra.mxu0 %v312
  %375 = vmatprep.subr.bf16.mxu0 0
  %376 = vmatpush1.bf16.msra.mxu0 %v313
  %377 = vmatprep.subr.bf16.mxu0 0
  %378 = vmatpush1.bf16.msra.mxu0 %v314
  %379 = vmatprep.mubr.bf16.mxu0 %v162
  %380 = vmatmul.mubr.bf16.gmra.mrb[0].mxu0 %v161
  %v381 = vpop.f32.mrb[0].mxu0
  %v382 = vadd.f32 %v94, %v381
  %v383 = vpop.f32.mrb[0].mxu0
  %v384 = vpop.f32.mrb[0].mxu0
  %v385 = vadd.f32 %v94, %v384
  %v386 = vpop.f32.mrb[0].mxu0
  %387 = vmatprep.mubr.bf16.mxu0 %v165
  %388 = vmatmul.mubr.bf16.gmra.mrb[0].mxu0 %v164
  %v389 = vpop.f32.mrb[0].mxu0
  %v390 = vadd.f32 %v94, %v389
  %v391 = vpop.f32.mrb[0].mxu0
  %v392 = vpop.f32.mrb[0].mxu0
  %v393 = vadd.f32 %v94, %v392
  %v394 = vpop.f32.mrb[0].mxu0
  %395 = vmatprep.mubr.bf16.mxu0 %v168
  %396 = vmatmul.mubr.bf16.gmra.mrb[0].mxu0 %v167
  %v397 = vpop.f32.mrb[0].mxu0
  %v398 = vadd.f32 %v94, %v397
  %v399 = vpop.f32.mrb[0].mxu0
  %v400 = vpop.f32.mrb[0].mxu0
  %v401 = vadd.f32 %v94, %v400
  %v402 = vpop.f32.mrb[0].mxu0
  %403 = vmatprep.mubr.bf16.mxu0 %v171
  %404 = vmatmul.mubr.bf16.gmra.mrb[0].mxu0 %v170
  %v405 = vpop.f32.mrb[0].mxu0
  %v406 = vadd.f32 %v94, %v405
  %v407 = vpop.f32.mrb[0].mxu0
  %v408 = vpop.f32.mrb[0].mxu0
  %v409 = vadd.f32 %v94, %v408
  %v410 = vpop.f32.mrb[0].mxu0
  %411 = vmatprep.mubr.bf16.mxu0 %v174
  %412 = vmatmul.mubr.bf16.gmra.mrb[0].mxu0 %v173
  %v413 = vpop.f32.mrb[0].mxu0
  %v414 = vadd.f32 %v94, %v413
  %v415 = vpop.f32.mrb[0].mxu0
  %v416 = vpop.f32.mrb[0].mxu0
  %v417 = vadd.f32 %v94, %v416
  %v418 = vpop.f32.mrb[0].mxu0
  %419 = vmatprep.mubr.bf16.mxu0 %v177
  %420 = vmatmul.mubr.bf16.gmra.mrb[0].mxu0 %v176
  %v421 = vpop.f32.mrb[0].mxu0
  %v422 = vadd.f32 %v94, %v421
  %v423 = vpop.f32.mrb[0].mxu0
  %v424 = vpop.f32.mrb[0].mxu0
  %v425 = vadd.f32 %v94, %v424
  %v426 = vpop.f32.mrb[0].mxu0
  %427 = vmatprep.mubr.bf16.mxu0 %v180
  %428 = vmatmul.mubr.bf16.gmra.mrb[0].mxu0 %v179
  %v429 = vpop.f32.mrb[0].mxu0
  %v430 = vadd.f32 %v94, %v429
  %v431 = vpop.f32.mrb[0].mxu0
  %v432 = vpop.f32.mrb[0].mxu0
  %v433 = vpop.f32.mrb[0].mxu0
  %434 = vdwg.mxu0
  %435 = vmatprep.subr.bf16.mxu0 0
  %436 = vmatpush1.bf16.msra.mxu0 %v315
  %437 = vmatprep.subr.bf16.mxu0 0
  %438 = vmatpush1.bf16.msra.mxu0 %v316
  %439 = vmatprep.subr.bf16.mxu0 0
  %440 = vmatpush1.bf16.msra.mxu0 %v317
  %441 = vmatprep.subr.bf16.mxu0 0
  %442 = vmatpush1.bf16.msra.mxu0 %v318
  %443 = vmatprep.subr.bf16.mxu0 0
  %444 = vmatpush1.bf16.msra.mxu0 %v319
  %445 = vmatprep.subr.bf16.mxu0 0
  %446 = vmatpush1.bf16.msra.mxu0 %v320
  %447 = vmatprep.subr.bf16.mxu0 0
  %448 = vmatpush1.bf16.msra.mxu0 %v321
  %449 = vmatprep.subr.bf16.mxu0 0
  %450 = vmatpush1.bf16.msra.mxu0 %v322
  %451 = vmatprep.subr.bf16.mxu0 0
  %452 = vmatpush1.bf16.msra.mxu0 0
  %453 = vmatprep.subr.bf16.mxu0 0
  %454 = vmatpush1.bf16.msra.mxu0 0
  %455 = vmatprep.subr.bf16.mxu0 0
  %456 = vmatpush1.bf16.msra.mxu0 0
  %457 = vmatprep.subr.bf16.mxu0 0
  %458 = vmatpush1.bf16.msra.mxu0 0
  %459 = vmatprep.subr.bf16.mxu0 0
  %460 = vmatpush1.bf16.msra.mxu0 0
  %461 = vmatprep.subr.bf16.mxu0 0
  %462 = vmatpush1.bf16.msra.mxu0 0
  %463 = vmatprep.subr.bf16.mxu0 0
  %464 = vmatpush1.bf16.msra.mxu0 0
  %465 = vmatprep.subr.bf16.mxu0 0
  %466 = vmatpush1.bf16.msra.mxu0 0
  %467 = vmatprep.mubr.bf16.mxu0 0
  %468 = vmatmul.mubr.bf16.gmra.mrb[0].mxu0 %v163
  %v469 = vpop.f32.mrb[0].mxu0
  %v470 = vadd.f32 %v382, %v469
  %v471 = vpop.f32.mrb[0].mxu0
  %v472 = vpop.f32.mrb[0].mxu0
  %v473 = vadd.f32 %v385, %v472
  %v474 = vpop.f32.mrb[0].mxu0
  %475 = vmatprep.mubr.bf16.mxu0 0
  %476 = vmatmul.mubr.bf16.gmra.mrb[0].mxu0 %v166
  %v477 = vpop.f32.mrb[0].mxu0
  %v478 = vadd.f32 %v390, %v477
  %v479 = vpop.f32.mrb[0].mxu0
  %v480 = vpop.f32.mrb[0].mxu0
  %v481 = vadd.f32 %v393, %v480
  %v482 = vpop.f32.mrb[0].mxu0
  %483 = vmatprep.mubr.bf16.mxu0 0
  %484 = vmatmul.mubr.bf16.gmra.mrb[0].mxu0 %v169
  %v485 = vpop.f32.mrb[0].mxu0
  %v486 = vadd.f32 %v398, %v485
  %v487 = vpop.f32.mrb[0].mxu0
  %v488 = vpop.f32.mrb[0].mxu0
  %v489 = vadd.f32 %v401, %v488
  %v490 = vpop.f32.mrb[0].mxu0
  %491 = vmatprep.mubr.bf16.mxu0 0
  %492 = vmatmul.mubr.bf16.gmra.mrb[0].mxu0 %v172
  %v493 = vpop.f32.mrb[0].mxu0
  %v494 = vadd.f32 %v406, %v493
  %v495 = vpop.f32.mrb[0].mxu0
  %v496 = vpop.f32.mrb[0].mxu0
  %v497 = vadd.f32 %v409, %v496
  %v498 = vpop.f32.mrb[0].mxu0
  %499 = vmatprep.mubr.bf16.mxu0 0
  %500 = vmatmul.mubr.bf16.gmra.mrb[0].mxu0 %v175
  %v501 = vpop.f32.mrb[0].mxu0
  %v502 = vadd.f32 %v414, %v501
  %v503 = vpop.f32.mrb[0].mxu0
  %v504 = vpop.f32.mrb[0].mxu0
  %v505 = vadd.f32 %v417, %v504
  %v506 = vpop.f32.mrb[0].mxu0
  %507 = vmatprep.mubr.bf16.mxu0 0
  %508 = vmatmul.mubr.bf16.gmra.mrb[0].mxu0 %v178
  %v509 = vpop.f32.mrb[0].mxu0
  %v510 = vadd.f32 %v422, %v509
  %v511 = vpop.f32.mrb[0].mxu0
  %v512 = vpop.f32.mrb[0].mxu0
  %v513 = vadd.f32 %v425, %v512
  %v514 = vpop.f32.mrb[0].mxu0
  %515 = vmatprep.mubr.bf16.mxu0 0
  %516 = vmatmul.mubr.bf16.gmra.mrb[0].mxu0 %v181
  %v517 = vpop.f32.mrb[0].mxu0
  %v518 = vadd.f32 %v430, %v517
  %v519 = vpop.f32.mrb[0].mxu0
  %v520 = vpop.f32.mrb[0].mxu0
  %v521 = vpop.f32.mrb[0].mxu0
  %522 = vdwg.mxu0
  %v523 = vmax.f32 %v470, 0.0
  %v524 = vmax.f32 %v473, 0.0
  %v525 = vmax.f32 %v478, 0.0
  %v526 = vmax.f32 %v481, 0.0
  %v527 = vmax.f32 %v486, 0.0
  %v528 = vmax.f32 %v489, 0.0
  %v529 = vmax.f32 %v494, 0.0
  %v530 = vmax.f32 %v497, 0.0
  %v531 = vmax.f32 %v502, 0.0
  %v532 = vmax.f32 %v505, 0.0
  %v533 = vmax.f32 %v510, 0.0
  %v534 = vmax.f32 %v513, 0.0
  %v535 = vmax.f32 %v518, 0.0
  %vm536 = vcmp.ne.f32.partialorder %v470, %v470
  %vm537 = vcmp.ne.f32.partialorder %v473, %v473
  %vm538 = vcmp.ne.f32.partialorder %v478, %v478
  %vm539 = vcmp.ne.f32.partialorder %v481, %v481
  %vm540 = vcmp.ne.f32.partialorder %v486, %v486
  %vm541 = vcmp.ne.f32.partialorder %v489, %v489
  %vm542 = vcmp.ne.f32.partialorder %v494, %v494
  %vm543 = vcmp.ne.f32.partialorder %v497, %v497
  %vm544 = vcmp.ne.f32.partialorder %v502, %v502
  %vm545 = vcmp.ne.f32.partialorder %v505, %v505
  %vm546 = vcmp.ne.f32.partialorder %v510, %v510
  %vm547 = vcmp.ne.f32.partialorder %v513, %v513
  %vm548 = vcmp.ne.f32.partialorder %v518, %v518
  %v549 = vadd.f32 %v470, 0.0
  %v550 = vadd.f32 %v473, 0.0
  %v551 = vadd.f32 %v478, 0.0
  %v552 = vadd.f32 %v481, 0.0
  %v553 = vadd.f32 %v486, 0.0
  %v554 = vadd.f32 %v489, 0.0
  %v555 = vadd.f32 %v494, 0.0
  %v556 = vadd.f32 %v497, 0.0
  %v557 = vadd.f32 %v502, 0.0
  %v558 = vadd.f32 %v505, 0.0
  %v559 = vadd.f32 %v510, 0.0
  %v560 = vadd.f32 %v513, 0.0
  %v561 = vadd.f32 %v518, 0.0
  %v562 = vand.u32 2147483647, %v470
  %v563 = vand.u32 2147483647, %v473
  %v564 = vand.u32 2147483647, %v478
  %v565 = vand.u32 2147483647, %v481
  %v566 = vand.u32 2147483647, %v486
  %v567 = vand.u32 2147483647, %v489
  %v568 = vand.u32 2147483647, %v494
  %v569 = vand.u32 2147483647, %v497
  %v570 = vand.u32 2147483647, %v502
  %v571 = vand.u32 2147483647, %v505
  %v572 = vand.u32 2147483647, %v510
  %v573 = vand.u32 2147483647, %v513
  %v574 = vand.u32 2147483647, %v518
  %v575 = vsub.f32 0.0, %v562
  %v576 = vsub.f32 0.0, %v563
  %v577 = vsub.f32 0.0, %v564
  %v578 = vsub.f32 0.0, %v565
  %v579 = vsub.f32 0.0, %v566
  %v580 = vsub.f32 0.0, %v567
  %v581 = vsub.f32 0.0, %v568
  %v582 = vsub.f32 0.0, %v569
  %v583 = vsub.f32 0.0, %v570
  %v584 = vsub.f32 0.0, %v571
  %v585 = vsub.f32 0.0, %v572
  %v586 = vsub.f32 0.0, %v573
  %v587 = vsub.f32 0.0, %v574
  %v588 = vmul.f32 %v575, 1.442695
  %v589 = vpow.pop %v588
  %v590 = vmul.f32 %v576, 1.442695
  %v591 = vpow.pop %v590
  %v592 = vmul.f32 %v577, 1.442695
  %v593 = vpow.pop %v592
  %v594 = vmul.f32 %v578, 1.442695
  %v595 = vpow.pop %v594
  %v596 = vmul.f32 %v579, 1.442695
  %v597 = vpow.pop %v596
  %v598 = vmul.f32 %v580, 1.442695
  %v599 = vpow.pop %v598
  %v600 = vmul.f32 %v581, 1.442695
  %v601 = vpow.pop %v600
  %v602 = vmul.f32 %v582, 1.442695
  %v603 = vpow.pop %v602
  %v604 = vmul.f32 %v583, 1.442695
  %v605 = vpow.pop %v604
  %v606 = vmul.f32 %v584, 1.442695
  %v607 = vpow.pop %v606
  %v608 = vmul.f32 %v585, 1.442695
  %v609 = vpow.pop %v608
  %v610 = vmul.f32 %v586, 1.442695
  %v611 = vpow.pop %v610
  %v612 = vmul.f32 %v587, 1.442695
  %v613 = vpow.pop %v612
  %v614 = vadd.f32 %v589, 1.0
  %v615 = vlog2.pop %v614
  %v616 = vmul.f32 %v615, 0.6931472
  %v617 = vmul.f32 -0.5, %v589
  %v618 = vadd.f32 %v617, 1.0
  %v619 = vmul.f32 %v618, %v589
  %v620 = vand.u32 2147483647, %v589
  %vm621 = vcmp.lt.f32.partialorder %v620, 0.0004427343
  %v622 = vsel %vm621, %v619, %v616
  %v623 = vadd.f32 %v591, 1.0
  %v624 = vlog2.pop %v623
  %v625 = vmul.f32 %v624, 0.6931472
  %v626 = vmul.f32 -0.5, %v591
  %v627 = vadd.f32 %v626, 1.0
  %v628 = vmul.f32 %v627, %v591
  %v629 = vand.u32 2147483647, %v591
  %vm630 = vcmp.lt.f32.partialorder %v629, 0.0004427343
  %v631 = vsel %vm630, %v628, %v625
  %v632 = vadd.f32 %v593, 1.0
  %v633 = vlog2.pop %v632
  %v634 = vmul.f32 %v633, 0.6931472
  %v635 = vmul.f32 -0.5, %v593
  %v636 = vadd.f32 %v635, 1.0
  %v637 = vmul.f32 %v636, %v593
  %v638 = vand.u32 2147483647, %v593
  %vm639 = vcmp.lt.f32.partialorder %v638, 0.0004427343
  %v640 = vsel %vm639, %v637, %v634
  %v641 = vadd.f32 %v595, 1.0
  %v642 = vlog2.pop %v641
  %v643 = vmul.f32 %v642, 0.6931472
  %v644 = vmul.f32 -0.5, %v595
  %v645 = vadd.f32 %v644, 1.0
  %v646 = vmul.f32 %v645, %v595
  %v647 = vand.u32 2147483647, %v595
  %vm648 = vcmp.lt.f32.partialorder %v647, 0.0004427343
  %v649 = vsel %vm648, %v646, %v643
  %v650 = vadd.f32 %v597, 1.0
  %v651 = vlog2.pop %v650
  %v652 = vmul.f32 %v651, 0.6931472
  %v653 = vmul.f32 -0.5, %v597
  %v654 = vadd.f32 %v653, 1.0
  %v655 = vmul.f32 %v654, %v597
  %v656 = vand.u32 2147483647, %v597
  %vm657 = vcmp.lt.f32.partialorder %v656, 0.0004427343
  %v658 = vsel %vm657, %v655, %v652
  %v659 = vadd.f32 %v599, 1.0
  %v660 = vlog2.pop %v659
  %v661 = vmul.f32 %v660, 0.6931472
  %v662 = vmul.f32 -0.5, %v599
  %v663 = vadd.f32 %v662, 1.0
  %v664 = vmul.f32 %v663, %v599
  %v665 = vand.u32 2147483647, %v599
  %vm666 = vcmp.lt.f32.partialorder %v665, 0.0004427343
  %v667 = vsel %vm666, %v664, %v661
  %v668 = vadd.f32 %v601, 1.0
  %v669 = vlog2.pop %v668
  %v670 = vmul.f32 %v669, 0.6931472
  %v671 = vmul.f32 -0.5, %v601
  %v672 = vadd.f32 %v671, 1.0
  %v673 = vmul.f32 %v672, %v601
  %v674 = vand.u32 2147483647, %v601
  %vm675 = vcmp.lt.f32.partialorder %v674, 0.0004427343
  %v676 = vsel %vm675, %v673, %v670
  %v677 = vadd.f32 %v603, 1.0
  %v678 = vlog2.pop %v677
  %v679 = vmul.f32 %v678, 0.6931472
  %v680 = vmul.f32 -0.5, %v603
  %v681 = vadd.f32 %v680, 1.0
  %v682 = vmul.f32 %v681, %v603
  %v683 = vand.u32 2147483647, %v603
  %vm684 = vcmp.lt.f32.partialorder %v683, 0.0004427343
  %v685 = vsel %vm684, %v682, %v679
  %v686 = vadd.f32 %v605, 1.0
  %v687 = vlog2.pop %v686
  %v688 = vmul.f32 %v687, 0.6931472
  %v689 = vmul.f32 -0.5, %v605
  %v690 = vadd.f32 %v689, 1.0
  %v691 = vmul.f32 %v690, %v605
  %v692 = vand.u32 2147483647, %v605
  %vm693 = vcmp.lt.f32.partialorder %v692, 0.0004427343
  %v694 = vsel %vm693, %v691, %v688
  %v695 = vadd.f32 %v607, 1.0
  %v696 = vlog2.pop %v695
  %v697 = vmul.f32 %v696, 0.6931472
  %v698 = vmul.f32 -0.5, %v607
  %v699 = vadd.f32 %v698, 1.0
  %v700 = vmul.f32 %v699, %v607
  %v701 = vand.u32 2147483647, %v607
  %vm702 = vcmp.lt.f32.partialorder %v701, 0.0004427343
  %v703 = vsel %vm702, %v700, %v697
  %v704 = vadd.f32 %v609, 1.0
  %v705 = vlog2.pop %v704
  %v706 = vmul.f32 %v705, 0.6931472
  %v707 = vmul.f32 -0.5, %v609
  %v708 = vadd.f32 %v707, 1.0
  %v709 = vmul.f32 %v708, %v609
  %v710 = vand.u32 2147483647, %v609
  %vm711 = vcmp.lt.f32.partialorder %v710, 0.0004427343
  %v712 = vsel %vm711, %v709, %v706
  %v713 = vadd.f32 %v611, 1.0
  %v714 = vlog2.pop %v713
  %v715 = vmul.f32 %v714, 0.6931472
  %v716 = vmul.f32 -0.5, %v611
  %v717 = vadd.f32 %v716, 1.0
  %v718 = vmul.f32 %v717, %v611
  %v719 = vand.u32 2147483647, %v611
  %vm720 = vcmp.lt.f32.partialorder %v719, 0.0004427343
  %v721 = vsel %vm720, %v718, %v715
  %v722 = vadd.f32 %v613, 1.0
  %v723 = vlog2.pop %v722
  %v724 = vmul.f32 %v723, 0.6931472
  %v725 = vmul.f32 -0.5, %v613
  %v726 = vadd.f32 %v725, 1.0
  %v727 = vmul.f32 %v726, %v613
  %v728 = vand.u32 2147483647, %v613
  %vm729 = vcmp.lt.f32.partialorder %v728, 0.0004427343
  %v730 = vsel %vm729, %v727, %v724
  %v731 = vadd.f32 %v523, %v622
  %v732 = vadd.f32 %v524, %v631
  %v733 = vadd.f32 %v525, %v640
  %v734 = vadd.f32 %v526, %v649
  %v735 = vadd.f32 %v527, %v658
  %v736 = vadd.f32 %v528, %v667
  %v737 = vadd.f32 %v529, %v676
  %v738 = vadd.f32 %v530, %v685
  %v739 = vadd.f32 %v531, %v694
  %v740 = vadd.f32 %v532, %v703
  %v741 = vadd.f32 %v533, %v712
  %v742 = vadd.f32 %v534, %v721
  %v743 = vadd.f32 %v535, %v730
  %v744 = vsel %vm536, %v549, %v731
  %v745 = vsel %vm537, %v550, %v732
  %v746 = vsel %vm538, %v551, %v733
  %v747 = vsel %vm539, %v552, %v734
  %v748 = vsel %vm540, %v553, %v735
  %v749 = vsel %vm541, %v554, %v736
  %v750 = vsel %vm542, %v555, %v737
  %v751 = vsel %vm543, %v556, %v738
  %v752 = vsel %vm544, %v557, %v739
  %v753 = vsel %vm545, %v558, %v740
  %v754 = vsel %vm546, %v559, %v741
  %v755 = vsel %vm547, %v560, %v742
  %v756 = vsel %vm548, %v561, %v743
  %757 = vst [vmem:[%s3] sm:$0xff] %v744
  %758 = vst [vmem:[%s3 + $0x8] sm:$0xff] %v745
  %759 = vst [vmem:[%s3 + $0x10] sm:$0xff] %v746
  %760 = vst [vmem:[%s3 + $0x18] sm:$0xff] %v747
  %761 = vst [vmem:[%s3 + $0x20] sm:$0xff] %v748
  %762 = vst [vmem:[%s3 + $0x28] sm:$0xff] %v749
  %763 = vst [vmem:[%s3 + $0x30] sm:$0xff] %v750
  %764 = vst [vmem:[%s3 + $0x38] sm:$0xff] %v751
  %765 = vst [vmem:[%s3 + $0x40] sm:$0xff] %v752
  %766 = vst [vmem:[%s3 + $0x48] sm:$0xff] %v753
  %767 = vst [vmem:[%s3 + $0x50] sm:$0xff] %v754
  %768 = vst [vmem:[%s3 + $0x58] sm:$0xff] %v755
  %769 = vst [vmem:[%s3 + $0x60] sm:$0xff] %v756
  // Predicated region
  $region14: #{_lambda_.5} parent=0 // pred_check
    _
  $region15: #{_lambda_.5} parent=0 // pred_check_branch
    %771 = sbr.rel (0) target = $region17
  $region16: #{_lambda_.5} parent=0 // pred_region
    _
  $region17: #{_lambda_.5} parent=0 // pred_fallthru
    _
  // Predicated region
  $region18: #{_lambda_.5} parent=0 // pred_check
    _
  $region19: #{_lambda_.5} parent=0 // pred_check_branch
    %773 = sbr.rel (0) target = $region21
  $region20: #{_lambda_.5} parent=0 // pred_region
    _
  $region21: #{_lambda_.5} parent=0 // pred_fallthru
    _

// kernel: _lambda_.6
$region0: #{_lambda_.6}
  #allocation0 [shape = 'u32[]', space=smem, size = 0x4, offset = 0x4, fixed_abs, tag = 'smem constant byte address 0x4 - core index']
  #allocation1 [shape = 'u32[144,128]{1,0:T(1,128)}', space=vmem, size = 0x12000, scoped, tag = 'internal scratch']
  %s0 = inlined_call_operand.vmem [shape: f32[9,24,128], index: 0, kind: input, shape index: {}]
  %s1 = inlined_call_operand.vmem [shape: f32[24,128], index: 1, kind: output, shape index: {}]
  %s2 = sld [smem:[#allocation0]]
  $region14: #{_lambda_.6} parent=0
    _
  %s4 = ssub.s32 1, %s2
  %s5 = scalar_select 0, %s4, %s2
  // Predicated region
  $region2: #{_lambda_.6} parent=0 // pred_check
    _
  $region3: #{_lambda_.6} parent=0 // pred_check_branch
    %7 = sbr.rel (0) target = $region5
  $region4: #{_lambda_.6} parent=0 // pred_region
    _
  $region5: #{_lambda_.6} parent=0 // pred_fallthru
    _
  %v8 = vld [vmem:[%s0] sm:$0xff]
  %v9 = vld [vmem:[%s0 + $0x8] sm:$0xff]
  %v10 = vld [vmem:[%s0 + $0x10] sm:$0xff]
  %v11 = vld [vmem:[%s0 + $0x18] sm:$0xff]
  %v12 = vld [vmem:[%s0 + $0x20] sm:$0xff]
  %v13 = vld [vmem:[%s0 + $0x28] sm:$0xff]
  %v14 = vld [vmem:[%s0 + $0x30] sm:$0xff]
  %v15 = vld [vmem:[%s0 + $0x38] sm:$0xff]
  %v16 = vld [vmem:[%s0 + $0x40] sm:$0xff]
  %v17 = vld [vmem:[%s0 + $0x48] sm:$0xff]
  %v18 = vld [vmem:[%s0 + $0x50] sm:$0xff]
  %v19 = vld [vmem:[%s0 + $0x58] sm:$0xff]
  %v20 = vld [vmem:[%s0 + $0x60] sm:$0xff]
  %v21 = vld [vmem:[%s0 + $0x68] sm:$0xff]
  %v22 = vld [vmem:[%s0 + $0x70] sm:$0xff]
  %v23 = vld [vmem:[%s0 + $0x78] sm:$0xff]
  %v24 = vld [vmem:[%s0 + $0x80] sm:$0xff]
  %v25 = vld [vmem:[%s0 + $0x88] sm:$0xff]
  %v26 = vld [vmem:[%s0 + $0x90] sm:$0xff]
  %v27 = vld [vmem:[%s0 + $0x98] sm:$0xff]
  %v28 = vld [vmem:[%s0 + $0xa0] sm:$0xff]
  %v29 = vld [vmem:[%s0 + $0xa8] sm:$0xff]
  %v30 = vld [vmem:[%s0 + $0xb0] sm:$0xff]
  %v31 = vld [vmem:[%s0 + $0xb8] sm:$0xff]
  %v32 = vld [vmem:[%s0 + $0xc0] sm:$0xff]
  %v33 = vld [vmem:[%s0 + $0xc8] sm:$0xff]
  %v34 = vld [vmem:[%s0 + $0xd0] sm:$0xff]
  %v35 = vmax.f32 %v8, %v14
  %v36 = vmax.f32 %v11, %v17
  %v37 = vmax.f32 %v35, %v20
  %v38 = vmax.f32 %v36, %v23
  %v39 = vmax.f32 %v37, %v26
  %v40 = vmax.f32 %v38, %v29
  %v41 = vmax.f32 %v39, %v32
  %v42 = vmax.f32 %v41, %v40
  %v43 = vmax.f32 %v9, %v15
  %v44 = vmax.f32 %v12, %v18
  %v45 = vmax.f32 %v43, %v21
  %v46 = vmax.f32 %v44, %v24
  %v47 = vmax.f32 %v45, %v27
  %v48 = vmax.f32 %v46, %v30
  %v49 = vmax.f32 %v47, %v33
  %v50 = vmax.f32 %v49, %v48
  %v51 = vmax.f32 %v10, %v16
  %v52 = vmax.f32 %v13, %v19
  %v53 = vmax.f32 %v51, %v22
  %v54 = vmax.f32 %v52, %v25
  %v55 = vmax.f32 %v53, %v28
  %v56 = vmax.f32 %v54, %v31
  %v57 = vmax.f32 %v55, %v34
  %v58 = vmax.f32 %v57, %v56
  %59 = vst [vmem:[%s1] sm:$0xff] %v42
  %60 = vst [vmem:[%s1 + $0x8] sm:$0xff] %v50
  %61 = vst [vmem:[%s1 + $0x10] sm:$0xff] %v58
  // Predicated region
  $region6: #{_lambda_.6} parent=0 // pred_check
    _
  $region7: #{_lambda_.6} parent=0 // pred_check_branch
    %63 = sbr.rel (0) target = $region9
  $region8: #{_lambda_.6} parent=0 // pred_region
    _
  $region9: #{_lambda_.6} parent=0 // pred_fallthru
    _
  // Predicated region
  $region10: #{_lambda_.6} parent=0 // pred_check
    _
  $region11: #{_lambda_.6} parent=0 // pred_check_branch
    %65 = sbr.rel (0) target = $region13
  $region12: #{_lambda_.6} parent=0 // pred_region
    _
  $region13: #{_lambda_.6} parent=0 // pred_fallthru
    _

// kernel: _lambda_.8
$region0: #{_lambda_.8}
  #allocation0 [shape = 'u32[]', space=smem, size = 0x4, offset = 0x4, fixed_abs, tag = 'smem constant byte address 0x4 - core index']
  #allocation1 [shape = 'u32[144,128]{1,0:T(1,128)}', space=vmem, size = 0x12000, scoped, tag = 'internal scratch']
  %s0 = inlined_call_operand.vmem [shape: f32[9,8,256], index: 0, kind: input, shape index: {}]
  %s1 = inlined_call_operand.vmem [shape: f32[8,256], index: 1, kind: output, shape index: {}]
  %s2 = sld [smem:[#allocation0]]
  $region14: #{_lambda_.8} parent=0
    _
  %s4 = ssub.s32 1, %s2
  %s5 = scalar_select 0, %s4, %s2
  // Predicated region
  $region2: #{_lambda_.8} parent=0 // pred_check
    _
  $region3: #{_lambda_.8} parent=0 // pred_check_branch
    %7 = sbr.rel (0) target = $region5
  $region4: #{_lambda_.8} parent=0 // pred_region
    _
  $region5: #{_lambda_.8} parent=0 // pred_fallthru
    _
  %v8 = vld [vmem:[%s0] sm:$0xff]
  %v9 = vld [vmem:[%s0 + $0x8] sm:$0xff]
  %v10 = vld [vmem:[%s0 + $0x10] sm:$0xff]
  %v11 = vld [vmem:[%s0 + $0x18] sm:$0xff]
  %v12 = vld [vmem:[%s0 + $0x20] sm:$0xff]
  %v13 = vld [vmem:[%s0 + $0x28] sm:$0xff]
  %v14 = vld [vmem:[%s0 + $0x30] sm:$0xff]
  %v15 = vld [vmem:[%s0 + $0x38] sm:$0xff]
  %v16 = vld [vmem:[%s0 + $0x40] sm:$0xff]
  %v17 = vld [vmem:[%s0 + $0x48] sm:$0xff]
  %v18 = vld [vmem:[%s0 + $0x50] sm:$0xff]
  %v19 = vld [vmem:[%s0 + $0x58] sm:$0xff]
  %v20 = vld [vmem:[%s0 + $0x60] sm:$0xff]
  %v21 = vld [vmem:[%s0 + $0x68] sm:$0xff]
  %v22 = vld [vmem:[%s0 + $0x70] sm:$0xff]
  %v23 = vld [vmem:[%s0 + $0x78] sm:$0xff]
  %v24 = vld [vmem:[%s0 + $0x80] sm:$0xff]
  %v25 = vld [vmem:[%s0 + $0x88] sm:$0xff]
  %v26 = vmax.f32 %v8, %v12
  %v27 = vmax.f32 %v10, %v14
  %v28 = vmax.f32 %v26, %v16
  %v29 = vmax.f32 %v27, %v18
  %v30 = vmax.f32 %v28, %v20
  %v31 = vmax.f32 %v29, %v22
  %v32 = vmax.f32 %v30, %v24
  %v33 = vmax.f32 %v32, %v31
  %v34 = vmax.f32 %v9, %v13
  %v35 = vmax.f32 %v11, %v15
  %v36 = vmax.f32 %v34, %v17
  %v37 = vmax.f32 %v35, %v19
  %v38 = vmax.f32 %v36, %v21
  %v39 = vmax.f32 %v37, %v23
  %v40 = vmax.f32 %v38, %v25
  %v41 = vmax.f32 %v40, %v39
  %42 = vst [vmem:[%s1] sm:$0xff] %v33
  %43 = vst [vmem:[%s1 + $0x8] sm:$0xff] %v41
  // Predicated region
  $region6: #{_lambda_.8} parent=0 // pred_check
    _
  $region7: #{_lambda_.8} parent=0 // pred_check_branch
    %45 = sbr.rel (0) target = $region9
  $region8: #{_lambda_.8} parent=0 // pred_region
    _
  $region9: #{_lambda_.8} parent=0 // pred_fallthru
    _
  // Predicated region
  $region10: #{_lambda_.8} parent=0 // pred_check
    _
  $region11: #{_lambda_.8} parent=0 // pred_check_branch
    %47 = sbr.rel (0) target = $region13
  $region12: #{_lambda_.8} parent=0 // pred_region
    _
  $region13: #{_lambda_.8} parent=0 // pred_fallthru
    _

// kernel: _lambda_.9
$region0: #{_lambda_.9}
  #allocation0 [shape = 'u32[]', space=smem, size = 0x4, offset = 0x4, fixed_abs, tag = 'smem constant byte address 0x4 - core index']
  #allocation1 [shape = 'u32[144,128]{1,0:T(1,128)}', space=vmem, size = 0x12000, scoped, tag = 'internal scratch']
  %s0 = inlined_call_operand.vmem [shape: bf16[8,256], index: 0, kind: input, shape index: {}]
  %s1 = inlined_call_operand.vmem [shape: bf16[256,384], index: 1, kind: input, shape index: {}]
  %s2 = inlined_call_operand.vmem [shape: f32[1,384], index: 2, kind: input, shape index: {}]
  %s3 = inlined_call_operand.vmem [shape: bf16[384,256], index: 3, kind: input, shape index: {}]
  %s4 = inlined_call_operand.vmem [shape: f32[1,256], index: 4, kind: input, shape index: {}]
  %s5 = inlined_call_operand.vmem [shape: bf16[256,256], index: 5, kind: input, shape index: {}]
  %s6 = inlined_call_operand.vmem [shape: f32[1,256], index: 6, kind: input, shape index: {}]
  %s7 = inlined_call_operand.vmem [shape: bf16[256,128], index: 7, kind: input, shape index: {}]
  %s8 = inlined_call_operand.vmem [shape: f32[1,128], index: 8, kind: input, shape index: {}]
  %s9 = inlined_call_operand.vmem [shape: f32[8,128], index: 9, kind: output, shape index: {}]
  %s10 = sld [smem:[#allocation0]]
  $region46: #{_lambda_.9} parent=0
    _
  %s12 = ssub.s32 1, %s10
  %s13 = scalar_select 0, %s12, %s10
  // Predicated region
  $region2: #{_lambda_.9} parent=0 // pred_check
    _
  $region3: #{_lambda_.9} parent=0 // pred_check_branch
    %15 = sbr.rel (0) target = $region5
  $region4: #{_lambda_.9} parent=0 // pred_region
    _
  $region5: #{_lambda_.9} parent=0 // pred_fallthru
    _
  // Predicated region
  $region6: #{_lambda_.9} parent=0 // pred_check
    _
  $region7: #{_lambda_.9} parent=0 // pred_check_branch
    %17 = sbr.rel (0) target = $region9
  $region8: #{_lambda_.9} parent=0 // pred_region
    _
  $region9: #{_lambda_.9} parent=0 // pred_fallthru
    _
  // Predicated region
  $region10: #{_lambda_.9} parent=0 // pred_check
    _
  $region11: #{_lambda_.9} parent=0 // pred_check_branch
    %19 = sbr.rel (0) target = $region13
  $region12: #{_lambda_.9} parent=0 // pred_region
    _
  $region13: #{_lambda_.9} parent=0 // pred_fallthru
    _
  // Predicated region
  $region14: #{_lambda_.9} parent=0 // pred_check
    _
  $region15: #{_lambda_.9} parent=0 // pred_check_branch
    %21 = sbr.rel (0) target = $region17
  $region16: #{_lambda_.9} parent=0 // pred_region
    _
  $region17: #{_lambda_.9} parent=0 // pred_fallthru
    _
  // Predicated region
  $region18: #{_lambda_.9} parent=0 // pred_check
    _
  $region19: #{_lambda_.9} parent=0 // pred_check_branch
    %23 = sbr.rel (0) target = $region21
  $region20: #{_lambda_.9} parent=0 // pred_region
    _
  $region21: #{_lambda_.9} parent=0 // pred_fallthru
    _
  // Predicated region
  $region22: #{_lambda_.9} parent=0 // pred_check
    _
  $region23: #{_lambda_.9} parent=0 // pred_check_branch
    %25 = sbr.rel (0) target = $region25
  $region24: #{_lambda_.9} parent=0 // pred_region
    _
  $region25: #{_lambda_.9} parent=0 // pred_fallthru
    _
  // Predicated region
  $region26: #{_lambda_.9} parent=0 // pred_check
    _
  $region27: #{_lambda_.9} parent=0 // pred_check_branch
    %27 = sbr.rel (0) target = $region29
  $region28: #{_lambda_.9} parent=0 // pred_region
    _
  $region29: #{_lambda_.9} parent=0 // pred_fallthru
    _
  // Predicated region
  $region30: #{_lambda_.9} parent=0 // pred_check
    _
  $region31: #{_lambda_.9} parent=0 // pred_check_branch
    %29 = sbr.rel (0) target = $region33
  $region32: #{_lambda_.9} parent=0 // pred_region
    _
  $region33: #{_lambda_.9} parent=0 // pred_fallthru
    _
  // Predicated region
  $region34: #{_lambda_.9} parent=0 // pred_check
    _
  $region35: #{_lambda_.9} parent=0 // pred_check_branch
    %31 = sbr.rel (0) target = $region37
  $region36: #{_lambda_.9} parent=0 // pred_region
    _
  $region37: #{_lambda_.9} parent=0 // pred_fallthru
    _
  %v33 = vld [vmem:[%s0] sm:$0xff]
  %v34 = vld [vmem:[%s1] sm:$0xff]
  %v35 = vld [vmem:[%s1 + $0x8] sm:$0xf]
  %v36 = vld [vmem:[%s1 + $0xc] sm:$0xff]
  %v37 = vld [vmem:[%s1 + $0x14] sm:$0xf]
  %v38 = vld [vmem:[%s1 + $0x18] sm:$0xff]
  %v39 = vld [vmem:[%s1 + $0x20] sm:$0xf]
  %v40 = vld [vmem:[%s1 + $0x24] sm:$0xff]
  %v41 = vld [vmem:[%s1 + $0x2c] sm:$0xf]
  %v42 = vld [vmem:[%s1 + $0x30] sm:$0xff]
  %v43 = vld [vmem:[%s1 + $0x38] sm:$0xf]
  %v44 = vld [vmem:[%s1 + $0x3c] sm:$0xff]
  %v45 = vld [vmem:[%s1 + $0x44] sm:$0xf]
  %v46 = vld [vmem:[%s1 + $0x48] sm:$0xff]
  %v47 = vld [vmem:[%s1 + $0x50] sm:$0xf]
  %v48 = vld [vmem:[%s1 + $0x54] sm:$0xff]
  %v49 = vld [vmem:[%s1 + $0x5c] sm:$0xf]
  %v50 = vld [vmem:[%s1 + $0x60] sm:$0xff]
  %v51 = vld [vmem:[%s1 + $0x68] sm:$0xf]
  %v52 = vld [vmem:[%s1 + $0x6c] sm:$0xff]
  %v53 = vld [vmem:[%s1 + $0x74] sm:$0xf]
  %v54 = vld [vmem:[%s1 + $0x78] sm:$0xff]
  %v55 = vld [vmem:[%s1 + $0x80] sm:$0xf]
  %v56 = vld [vmem:[%s1 + $0x84] sm:$0xff]
  %v57 = vld [vmem:[%s1 + $0x8c] sm:$0xf]
  %v58 = vld [vmem:[%s1 + $0x90] sm:$0xff]
  %v59 = vld [vmem:[%s1 + $0x98] sm:$0xf]
  %v60 = vld [vmem:[%s1 + $0x9c] sm:$0xff]
  %v61 = vld [vmem:[%s1 + $0xa4] sm:$0xf]
  %v62 = vld [vmem:[%s1 + $0xa8] sm:$0xff]
  %v63 = vld [vmem:[%s1 + $0xb0] sm:$0xf]
  %v64 = vld [vmem:[%s1 + $0xb4] sm:$0xff]
  %v65 = vld [vmem:[%s1 + $0xbc] sm:$0xf]
  %v66 = vld [vmem:[%s1 + $0xc0] sm:$0xff]
  %v67 = vld [vmem:[%s1 + $0xc8] sm:$0xf]
  %v68 = vld [vmem:[%s1 + $0xcc] sm:$0xff]
  %v69 = vld [vmem:[%s1 + $0xd4] sm:$0xf]
  %v70 = vld [vmem:[%s1 + $0xd8] sm:$0xff]
  %v71 = vld [vmem:[%s1 + $0xe0] sm:$0xf]
  %v72 = vld [vmem:[%s1 + $0xe4] sm:$0xff]
  %v73 = vld [vmem:[%s1 + $0xec] sm:$0xf]
  %v74 = vld [vmem:[%s1 + $0xf0] sm:$0xff]
  %v75 = vld [vmem:[%s1 + $0xf8] sm:$0xf]
  %v76 = vld [vmem:[%s1 + $0xfc] sm:$0xff]
  %v77 = vld [vmem:[%s1 + $0x104] sm:$0xf]
  %v78 = vld [vmem:[%s1 + $0x108] sm:$0xff]
  %v79 = vld [vmem:[%s1 + $0x110] sm:$0xf]
  %v80 = vld [vmem:[%s1 + $0x114] sm:$0xff]
  %v81 = vld [vmem:[%s1 + $0x11c] sm:$0xf]
  %v82 = vld [vmem:[%s1 + $0x120] sm:$0xff]
  %v83 = vld [vmem:[%s1 + $0x128] sm:$0xf]
  %v84 = vld [vmem:[%s1 + $0x12c] sm:$0xff]
  %v85 = vld [vmem:[%s1 + $0x134] sm:$0xf]
  %v86 = vld [vmem:[%s1 + $0x138] sm:$0xff]
  %v87 = vld [vmem:[%s1 + $0x140] sm:$0xf]
  %v88 = vld [vmem:[%s1 + $0x144] sm:$0xff]
  %v89 = vld [vmem:[%s1 + $0x14c] sm:$0xf]
  %v90 = vld [vmem:[%s1 + $0x150] sm:$0xff]
  %v91 = vld [vmem:[%s1 + $0x158] sm:$0xf]
  %v92 = vld [vmem:[%s1 + $0x15c] sm:$0xff]
  %v93 = vld [vmem:[%s1 + $0x164] sm:$0xf]
  %v94 = vld [vmem:[%s1 + $0x168] sm:$0xff]
  %v95 = vld [vmem:[%s1 + $0x170] sm:$0xf]
  %v96 = vld [vmem:[%s1 + $0x174] sm:$0xff]
  %v97 = vld [vmem:[%s1 + $0x17c] sm:$0xf]
  %v98 = vld [vmem:[%s2] sm:$0x7]
  %v100 = vlaneseq
  %v101 = vshrl.u32 %v100, 7
  %v102 = vsub.s32 0, %v101
  %v103 = vrot.slane %v98, %v102
  %v104 = vlaneseq
  %v105 = vshrl.u32 %v104, 7
  %v106 = vsub.s32 1, %v105
  %v107 = vrot.slane %v98, %v106
  %v108 = vlaneseq
  %v109 = vshrl.u32 %v108, 7
  %v110 = vsub.s32 2, %v109
  %v111 = vrot.slane %v98, %v110
  %v116 = vunpack.c.l.b16 %v33
  %v117 = vunpack.c.h.b16 %v33
  %v118 = vpack.c.b16 %v116, %v116
  %v119 = vpack.c.b16 %v117, %v117
  %v186 = vunpack.c.l.b16 %v34
  %v187 = vunpack.c.h.b16 %v34
  %v188 = vunpack.c.l.b16 %v35
  %v189 = vunpack.c.l.b16 %v36
  %v190 = vunpack.c.h.b16 %v36
  %v191 = vunpack.c.l.b16 %v37
  %v192 = vunpack.c.l.b16 %v38
  %v193 = vunpack.c.h.b16 %v38
  %v194 = vunpack.c.l.b16 %v39
  %v195 = vunpack.c.l.b16 %v40
  %v196 = vunpack.c.h.b16 %v40
  %v197 = vunpack.c.l.b16 %v41
  %v198 = vunpack.c.l.b16 %v42
  %v199 = vunpack.c.h.b16 %v42
  %v200 = vunpack.c.l.b16 %v43
  %v201 = vunpack.c.l.b16 %v44
  %v202 = vunpack.c.h.b16 %v44
  %v203 = vunpack.c.l.b16 %v45
  %v204 = vunpack.c.l.b16 %v46
  %v205 = vunpack.c.h.b16 %v46
  %v206 = vunpack.c.l.b16 %v47
  %v207 = vunpack.c.l.b16 %v48
  %v208 = vunpack.c.h.b16 %v48
  %v209 = vunpack.c.l.b16 %v49
  %v210 = vunpack.c.l.b16 %v50
  %v211 = vunpack.c.h.b16 %v50
  %v212 = vunpack.c.l.b16 %v51
  %v213 = vunpack.c.l.b16 %v52
  %v214 = vunpack.c.h.b16 %v52
  %v215 = vunpack.c.l.b16 %v53
  %v216 = vunpack.c.l.b16 %v54
  %v217 = vunpack.c.h.b16 %v54
  %v218 = vunpack.c.l.b16 %v55
  %v219 = vunpack.c.l.b16 %v56
  %v220 = vunpack.c.h.b16 %v56
  %v221 = vunpack.c.l.b16 %v57
  %v222 = vunpack.c.l.b16 %v58
  %v223 = vunpack.c.h.b16 %v58
  %v224 = vunpack.c.l.b16 %v59
  %v225 = vunpack.c.l.b16 %v60
  %v226 = vunpack.c.h.b16 %v60
  %v227 = vunpack.c.l.b16 %v61
  %v228 = vunpack.c.l.b16 %v62
  %v229 = vunpack.c.h.b16 %v62
  %v230 = vunpack.c.l.b16 %v63
  %v231 = vunpack.c.l.b16 %v64
  %v232 = vunpack.c.h.b16 %v64
  %v233 = vunpack.c.l.b16 %v65
  %v234 = vunpack.c.l.b16 %v66
  %v235 = vunpack.c.h.b16 %v66
  %v236 = vunpack.c.l.b16 %v67
  %v237 = vunpack.c.l.b16 %v68
  %v238 = vunpack.c.h.b16 %v68
  %v239 = vunpack.c.l.b16 %v69
  %v240 = vunpack.c.l.b16 %v70
  %v241 = vunpack.c.h.b16 %v70
  %v242 = vunpack.c.l.b16 %v71
  %v243 = vunpack.c.l.b16 %v72
  %v244 = vunpack.c.h.b16 %v72
  %v245 = vunpack.c.l.b16 %v73
  %v246 = vunpack.c.l.b16 %v74
  %v247 = vunpack.c.h.b16 %v74
  %v248 = vunpack.c.l.b16 %v75
  %v249 = vunpack.c.l.b16 %v76
  %v250 = vunpack.c.h.b16 %v76
  %v251 = vunpack.c.l.b16 %v77
  %v252 = vunpack.c.l.b16 %v78
  %v253 = vunpack.c.h.b16 %v78
  %v254 = vunpack.c.l.b16 %v79
  %v255 = vunpack.c.l.b16 %v80
  %v256 = vunpack.c.h.b16 %v80
  %v257 = vunpack.c.l.b16 %v81
  %v258 = vunpack.c.l.b16 %v82
  %v259 = vunpack.c.h.b16 %v82
  %v260 = vunpack.c.l.b16 %v83
  %v261 = vunpack.c.l.b16 %v84
  %v262 = vunpack.c.h.b16 %v84
  %v263 = vunpack.c.l.b16 %v85
  %v264 = vunpack.c.l.b16 %v86
  %v265 = vunpack.c.h.b16 %v86
  %v266 = vunpack.c.l.b16 %v87
  %v267 = vunpack.c.l.b16 %v88
  %v268 = vunpack.c.h.b16 %v88
  %v269 = vunpack.c.l.b16 %v89
  %v270 = vunpack.c.l.b16 %v90
  %v271 = vunpack.c.h.b16 %v90
  %v272 = vunpack.c.l.b16 %v91
  %v273 = vunpack.c.l.b16 %v92
  %v274 = vunpack.c.h.b16 %v92
  %v275 = vunpack.c.l.b16 %v93
  %v276 = vunpack.c.l.b16 %v94
  %v277 = vunpack.c.h.b16 %v94
  %v278 = vunpack.c.l.b16 %v95
  %v279 = vunpack.c.l.b16 %v96
  %v280 = vunpack.c.h.b16 %v96
  %v281 = vunpack.c.l.b16 %v97
  %v282 = vpack.c.b16 %v189, %v186
  %v283 = vpack.c.b16 %v190, %v187
  %v284 = vpack.c.b16 %v191, %v188
  %v285 = vpack.c.b16 %v195, %v192
  %v286 = vpack.c.b16 %v196, %v193
  %v287 = vpack.c.b16 %v197, %v194
  %v288 = vpack.c.b16 %v201, %v198
  %v289 = vpack.c.b16 %v202, %v199
  %v290 = vpack.c.b16 %v203, %v200
  %v291 = vpack.c.b16 %v207, %v204
  %v292 = vpack.c.b16 %v208, %v205
  %v293 = vpack.c.b16 %v209, %v206
  %v294 = vpack.c.b16 %v213, %v210
  %v295 = vpack.c.b16 %v214, %v211
  %v296 = vpack.c.b16 %v215, %v212
  %v297 = vpack.c.b16 %v219, %v216
  %v298 = vpack.c.b16 %v220, %v217
  %v299 = vpack.c.b16 %v221, %v218
  %v300 = vpack.c.b16 %v225, %v222
  %v301 = vpack.c.b16 %v226, %v223
  %v302 = vpack.c.b16 %v227, %v224
  %v303 = vpack.c.b16 %v231, %v228
  %v304 = vpack.c.b16 %v232, %v229
  %v305 = vpack.c.b16 %v233, %v230
  %v306 = vpack.c.b16 %v237, %v234
  %v307 = vpack.c.b16 %v238, %v235
  %v308 = vpack.c.b16 %v239, %v236
  %v309 = vpack.c.b16 %v243, %v240
  %v310 = vpack.c.b16 %v244, %v241
  %v311 = vpack.c.b16 %v245, %v242
  %v312 = vpack.c.b16 %v249, %v246
  %v313 = vpack.c.b16 %v250, %v247
  %v314 = vpack.c.b16 %v251, %v248
  %v315 = vpack.c.b16 %v255, %v252
  %v316 = vpack.c.b16 %v256, %v253
  %v317 = vpack.c.b16 %v257, %v254
  %v318 = vpack.c.b16 %v261, %v258
  %v319 = vpack.c.b16 %v262, %v259
  %v320 = vpack.c.b16 %v263, %v260
  %v321 = vpack.c.b16 %v267, %v264
  %v322 = vpack.c.b16 %v268, %v265
  %v323 = vpack.c.b16 %v269, %v266
  %v324 = vpack.c.b16 %v273, %v270
  %v325 = vpack.c.b16 %v274, %v271
  %v326 = vpack.c.b16 %v275, %v272
  %v327 = vpack.c.b16 %v279, %v276
  %v328 = vpack.c.b16 %v280, %v277
  %v329 = vpack.c.b16 %v281, %v278
  %378 = vmatprep.subr.bf16.mxu0 %v283
  %379 = vmatpush1.bf16.msra.mxu0 %v282
  %380 = vmatprep.subr.bf16.mxu0 %v286
  %381 = vmatpush1.bf16.msra.mxu0 %v285
  %382 = vmatprep.subr.bf16.mxu0 %v289
  %383 = vmatpush1.bf16.msra.mxu0 %v288
  %384 = vmatprep.subr.bf16.mxu0 %v292
  %385 = vmatpush1.bf16.msra.mxu0 %v291
  %386 = vmatprep.subr.bf16.mxu0 %v295
  %387 = vmatpush1.bf16.msra.mxu0 %v294
  %388 = vmatprep.subr.bf16.mxu0 %v298
  %389 = vmatpush1.bf16.msra.mxu0 %v297
  %390 = vmatprep.subr.bf16.mxu0 %v301
  %391 = vmatpush1.bf16.msra.mxu0 %v300
  %392 = vmatprep.subr.bf16.mxu0 %v304
  %393 = vmatpush1.bf16.msra.mxu0 %v303
  %394 = vmatprep.subr.bf16.mxu0 %v307
  %395 = vmatpush1.bf16.msra.mxu0 %v306
  %396 = vmatprep.subr.bf16.mxu0 %v310
  %397 = vmatpush1.bf16.msra.mxu0 %v309
  %398 = vmatprep.subr.bf16.mxu0 %v313
  %399 = vmatpush1.bf16.msra.mxu0 %v312
  %400 = vmatprep.subr.bf16.mxu0 %v316
  %401 = vmatpush1.bf16.msra.mxu0 %v315
  %402 = vmatprep.subr.bf16.mxu0 %v319
  %403 = vmatpush1.bf16.msra.mxu0 %v318
  %404 = vmatprep.subr.bf16.mxu0 %v322
  %405 = vmatpush1.bf16.msra.mxu0 %v321
  %406 = vmatprep.subr.bf16.mxu0 %v325
  %407 = vmatpush1.bf16.msra.mxu0 %v324
  %408 = vmatprep.subr.bf16.mxu0 %v328
  %409 = vmatpush1.bf16.msra.mxu0 %v327
  %410 = vmatprep.mubr.bf16.mxu0 %v119
  %411 = vmatmul.mubr.bf16.gmra.mrb[0].mxu0 %v118
  %v412 = vpop.f32.mrb[0].mxu0
  %v413 = vadd.f32 %v103, %v412
  %v414 = vpop.f32.mrb[0].mxu0
  %v415 = vadd.f32 %v107, %v414
  %v416 = vpop.f32.mrb[0].mxu0
  %v417 = vpop.f32.mrb[0].mxu0
  %418 = vdwg.mxu0
  %419 = vmatprep.subr.bf16.mxu0 0
  %420 = vmatpush1.bf16.msra.mxu0 %v284
  %421 = vmatprep.subr.bf16.mxu0 0
  %422 = vmatpush1.bf16.msra.mxu0 %v287
  %423 = vmatprep.subr.bf16.mxu0 0
  %424 = vmatpush1.bf16.msra.mxu0 %v290
  %425 = vmatprep.subr.bf16.mxu0 0
  %426 = vmatpush1.bf16.msra.mxu0 %v293
  %427 = vmatprep.subr.bf16.mxu0 0
  %428 = vmatpush1.bf16.msra.mxu0 %v296
  %429 = vmatprep.subr.bf16.mxu0 0
  %430 = vmatpush1.bf16.msra.mxu0 %v299
  %431 = vmatprep.subr.bf16.mxu0 0
  %432 = vmatpush1.bf16.msra.mxu0 %v302
  %433 = vmatprep.subr.bf16.mxu0 0
  %434 = vmatpush1.bf16.msra.mxu0 %v305
  %435 = vmatprep.subr.bf16.mxu0 0
  %436 = vmatpush1.bf16.msra.mxu0 %v308
  %437 = vmatprep.subr.bf16.mxu0 0
  %438 = vmatpush1.bf16.msra.mxu0 %v311
  %439 = vmatprep.subr.bf16.mxu0 0
  %440 = vmatpush1.bf16.msra.mxu0 %v314
  %441 = vmatprep.subr.bf16.mxu0 0
  %442 = vmatpush1.bf16.msra.mxu0 %v317
  %443 = vmatprep.subr.bf16.mxu0 0
  %444 = vmatpush1.bf16.msra.mxu0 %v320
  %445 = vmatprep.subr.bf16.mxu0 0
  %446 = vmatpush1.bf16.msra.mxu0 %v323
  %447 = vmatprep.subr.bf16.mxu0 0
  %448 = vmatpush1.bf16.msra.mxu0 %v326
  %449 = vmatprep.subr.bf16.mxu0 0
  %450 = vmatpush1.bf16.msra.mxu0 %v329
  %451 = vmatprep.mubr.bf16.mxu0 %v119
  %452 = vmatmul.mubr.bf16.gmra.mrb[0].mxu0 %v118
  %v453 = vpop.f32.mrb[0].mxu0
  %v454 = vadd.f32 %v111, %v453
  %v455 = vpop.f32.mrb[0].mxu0
  %v456 = vpop.f32.mrb[0].mxu0
  %v457 = vpop.f32.mrb[0].mxu0
  %458 = vdwg.mxu0
  %v459 = vmax.f32 %v413, 0.0
  %v460 = vmax.f32 %v415, 0.0
  %v461 = vmax.f32 %v454, 0.0
  %vm462 = vcmp.ne.f32.partialorder %v413, %v413
  %vm463 = vcmp.ne.f32.partialorder %v415, %v415
  %vm464 = vcmp.ne.f32.partialorder %v454, %v454
  %v465 = vadd.f32 %v413, 0.0
  %v466 = vadd.f32 %v415, 0.0
  %v467 = vadd.f32 %v454, 0.0
  %v468 = vand.u32 2147483647, %v413
  %v469 = vand.u32 2147483647, %v415
  %v470 = vand.u32 2147483647, %v454
  %v471 = vsub.f32 0.0, %v468
  %v472 = vsub.f32 0.0, %v469
  %v473 = vsub.f32 0.0, %v470
  %v474 = vmul.f32 %v471, 1.442695
  %v475 = vpow.pop %v474
  %v476 = vmul.f32 %v472, 1.442695
  %v477 = vpow.pop %v476
  %v478 = vmul.f32 %v473, 1.442695
  %v479 = vpow.pop %v478
  %v480 = vadd.f32 %v475, 1.0
  %v481 = vlog2.pop %v480
  %v482 = vmul.f32 %v481, 0.6931472
  %v483 = vmul.f32 -0.5, %v475
  %v484 = vadd.f32 %v483, 1.0
  %v485 = vmul.f32 %v484, %v475
  %v486 = vand.u32 2147483647, %v475
  %vm487 = vcmp.lt.f32.partialorder %v486, 0.0004427343
  %v488 = vsel %vm487, %v485, %v482
  %v489 = vadd.f32 %v477, 1.0
  %v490 = vlog2.pop %v489
  %v491 = vmul.f32 %v490, 0.6931472
  %v492 = vmul.f32 -0.5, %v477
  %v493 = vadd.f32 %v492, 1.0
  %v494 = vmul.f32 %v493, %v477
  %v495 = vand.u32 2147483647, %v477
  %vm496 = vcmp.lt.f32.partialorder %v495, 0.0004427343
  %v497 = vsel %vm496, %v494, %v491
  %v498 = vadd.f32 %v479, 1.0
  %v499 = vlog2.pop %v498
  %v500 = vmul.f32 %v499, 0.6931472
  %v501 = vmul.f32 -0.5, %v479
  %v502 = vadd.f32 %v501, 1.0
  %v503 = vmul.f32 %v502, %v479
  %v504 = vand.u32 2147483647, %v479
  %vm505 = vcmp.lt.f32.partialorder %v504, 0.0004427343
  %v506 = vsel %vm505, %v503, %v500
  %v507 = vadd.f32 %v459, %v488
  %v508 = vadd.f32 %v460, %v497
  %v509 = vadd.f32 %v461, %v506
  %v510 = vsel %vm462, %v465, %v507
  %v511 = vsel %vm463, %v466, %v508
  %v512 = vsel %vm464, %v467, %v509
  %v513 = vpack.c.bf16 %v510, %v510
  %v514 = vpack.c.bf16 %v511, %v511
  %v515 = vpack.c.bf16 %v512, %v512
  %v516 = vld [vmem:[%s3] sm:$0xff]
  %v517 = vld [vmem:[%s3 + $0x8] sm:$0xff]
  %v518 = vld [vmem:[%s3 + $0x10] sm:$0xff]
  %v519 = vld [vmem:[%s3 + $0x18] sm:$0xff]
  %v520 = vld [vmem:[%s3 + $0x20] sm:$0xff]
  %v521 = vld [vmem:[%s3 + $0x28] sm:$0xff]
  %v522 = vld [vmem:[%s3 + $0x30] sm:$0xff]
  %v523 = vld [vmem:[%s3 + $0x38] sm:$0xff]
  %v524 = vld [vmem:[%s3 + $0x40] sm:$0xff]
  %v525 = vld [vmem:[%s3 + $0x48] sm:$0xff]
  %v526 = vld [vmem:[%s3 + $0x50] sm:$0xff]
  %v527 = vld [vmem:[%s3 + $0x58] sm:$0xff]
  %v528 = vld [vmem:[%s3 + $0x60] sm:$0xff]
  %v529 = vld [vmem:[%s3 + $0x68] sm:$0xff]
  %v530 = vld [vmem:[%s3 + $0x70] sm:$0xff]
  %v531 = vld [vmem:[%s3 + $0x78] sm:$0xff]
  %v532 = vld [vmem:[%s3 + $0x80] sm:$0xff]
  %v533 = vld [vmem:[%s3 + $0x88] sm:$0xff]
  %v534 = vld [vmem:[%s3 + $0x90] sm:$0xff]
  %v535 = vld [vmem:[%s3 + $0x98] sm:$0xff]
  %v536 = vld [vmem:[%s3 + $0xa0] sm:$0xff]
  %v537 = vld [vmem:[%s3 + $0xa8] sm:$0xff]
  %v538 = vld [vmem:[%s3 + $0xb0] sm:$0xff]
  %v539 = vld [vmem:[%s3 + $0xb8] sm:$0xff]
  %v540 = vld [vmem:[%s3 + $0xc0] sm:$0xff]
  %v541 = vld [vmem:[%s3 + $0xc8] sm:$0xff]
  %v542 = vld [vmem:[%s3 + $0xd0] sm:$0xff]
  %v543 = vld [vmem:[%s3 + $0xd8] sm:$0xff]
  %v544 = vld [vmem:[%s3 + $0xe0] sm:$0xff]
  %v545 = vld [vmem:[%s3 + $0xe8] sm:$0xff]
  %v546 = vld [vmem:[%s3 + $0xf0] sm:$0xff]
  %v547 = vld [vmem:[%s3 + $0xf8] sm:$0xff]
  %v548 = vld [vmem:[%s3 + $0x100] sm:$0xff]
  %v549 = vld [vmem:[%s3 + $0x108] sm:$0xff]
  %v550 = vld [vmem:[%s3 + $0x110] sm:$0xff]
  %v551 = vld [vmem:[%s3 + $0x118] sm:$0xff]
  %v552 = vld [vmem:[%s3 + $0x120] sm:$0xff]
  %v553 = vld [vmem:[%s3 + $0x128] sm:$0xff]
  %v554 = vld [vmem:[%s3 + $0x130] sm:$0xff]
  %v555 = vld [vmem:[%s3 + $0x138] sm:$0xff]
  %v556 = vld [vmem:[%s3 + $0x140] sm:$0xff]
  %v557 = vld [vmem:[%s3 + $0x148] sm:$0xff]
  %v558 = vld [vmem:[%s3 + $0x150] sm:$0xff]
  %v559 = vld [vmem:[%s3 + $0x158] sm:$0xff]
  %v560 = vld [vmem:[%s3 + $0x160] sm:$0xff]
  %v561 = vld [vmem:[%s3 + $0x168] sm:$0xff]
  %v562 = vld [vmem:[%s3 + $0x170] sm:$0xff]
  %v563 = vld [vmem:[%s3 + $0x178] sm:$0xff]
  %v564 = vld [vmem:[%s4] sm:$0x3]
  %v566 = vlaneseq
  %v567 = vshrl.u32 %v566, 7
  %v568 = vsub.s32 0, %v567
  %v569 = vrot.slane %v564, %v568
  %v570 = vlaneseq
  %v571 = vshrl.u32 %v570, 7
  %v572 = vsub.s32 1, %v571
  %v573 = vrot.slane %v564, %v572
  %v624 = vunpack.c.l.b16 %v516
  %v625 = vunpack.c.h.b16 %v516
  %v626 = vunpack.c.l.b16 %v517
  %v627 = vunpack.c.h.b16 %v517
  %v628 = vunpack.c.l.b16 %v518
  %v629 = vunpack.c.h.b16 %v518
  %v630 = vunpack.c.l.b16 %v519
  %v631 = vunpack.c.h.b16 %v519
  %v632 = vunpack.c.l.b16 %v520
  %v633 = vunpack.c.h.b16 %v520
  %v634 = vunpack.c.l.b16 %v521
  %v635 = vunpack.c.h.b16 %v521
  %v636 = vunpack.c.l.b16 %v522
  %v637 = vunpack.c.h.b16 %v522
  %v638 = vunpack.c.l.b16 %v523
  %v639 = vunpack.c.h.b16 %v523
  %v640 = vunpack.c.l.b16 %v524
  %v641 = vunpack.c.h.b16 %v524
  %v642 = vunpack.c.l.b16 %v525
  %v643 = vunpack.c.h.b16 %v525
  %v644 = vunpack.c.l.b16 %v526
  %v645 = vunpack.c.h.b16 %v526
  %v646 = vunpack.c.l.b16 %v527
  %v647 = vunpack.c.h.b16 %v527
  %v648 = vunpack.c.l.b16 %v528
  %v649 = vunpack.c.h.b16 %v528
  %v650 = vunpack.c.l.b16 %v529
  %v651 = vunpack.c.h.b16 %v529
  %v652 = vunpack.c.l.b16 %v530
  %v653 = vunpack.c.h.b16 %v530
  %v654 = vunpack.c.l.b16 %v531
  %v655 = vunpack.c.h.b16 %v531
  %v656 = vunpack.c.l.b16 %v532
  %v657 = vunpack.c.h.b16 %v532
  %v658 = vunpack.c.l.b16 %v533
  %v659 = vunpack.c.h.b16 %v533
  %v660 = vunpack.c.l.b16 %v534
  %v661 = vunpack.c.h.b16 %v534
  %v662 = vunpack.c.l.b16 %v535
  %v663 = vunpack.c.h.b16 %v535
  %v664 = vunpack.c.l.b16 %v536
  %v665 = vunpack.c.h.b16 %v536
  %v666 = vunpack.c.l.b16 %v537
  %v667 = vunpack.c.h.b16 %v537
  %v668 = vunpack.c.l.b16 %v538
  %v669 = vunpack.c.h.b16 %v538
  %v670 = vunpack.c.l.b16 %v539
  %v671 = vunpack.c.h.b16 %v539
  %v672 = vunpack.c.l.b16 %v540
  %v673 = vunpack.c.h.b16 %v540
  %v674 = vunpack.c.l.b16 %v541
  %v675 = vunpack.c.h.b16 %v541
  %v676 = vunpack.c.l.b16 %v542
  %v677 = vunpack.c.h.b16 %v542
  %v678 = vunpack.c.l.b16 %v543
  %v679 = vunpack.c.h.b16 %v543
  %v680 = vunpack.c.l.b16 %v544
  %v681 = vunpack.c.h.b16 %v544
  %v682 = vunpack.c.l.b16 %v545
  %v683 = vunpack.c.h.b16 %v545
  %v684 = vunpack.c.l.b16 %v546
  %v685 = vunpack.c.h.b16 %v546
  %v686 = vunpack.c.l.b16 %v547
  %v687 = vunpack.c.h.b16 %v547
  %v688 = vunpack.c.l.b16 %v548
  %v689 = vunpack.c.h.b16 %v548
  %v690 = vunpack.c.l.b16 %v549
  %v691 = vunpack.c.h.b16 %v549
  %v692 = vunpack.c.l.b16 %v550
  %v693 = vunpack.c.h.b16 %v550
  %v694 = vunpack.c.l.b16 %v551
  %v695 = vunpack.c.h.b16 %v551
  %v696 = vunpack.c.l.b16 %v552
  %v697 = vunpack.c.h.b16 %v552
  %v698 = vunpack.c.l.b16 %v553
  %v699 = vunpack.c.h.b16 %v553
  %v700 = vunpack.c.l.b16 %v554
  %v701 = vunpack.c.h.b16 %v554
  %v702 = vunpack.c.l.b16 %v555
  %v703 = vunpack.c.h.b16 %v555
  %v704 = vunpack.c.l.b16 %v556
  %v705 = vunpack.c.h.b16 %v556
  %v706 = vunpack.c.l.b16 %v557
  %v707 = vunpack.c.h.b16 %v557
  %v708 = vunpack.c.l.b16 %v558
  %v709 = vunpack.c.h.b16 %v558
  %v710 = vunpack.c.l.b16 %v559
  %v711 = vunpack.c.h.b16 %v559
  %v712 = vunpack.c.l.b16 %v560
  %v713 = vunpack.c.h.b16 %v560
  %v714 = vunpack.c.l.b16 %v561
  %v715 = vunpack.c.h.b16 %v561
  %v716 = vunpack.c.l.b16 %v562
  %v717 = vunpack.c.h.b16 %v562
  %v718 = vunpack.c.l.b16 %v563
  %v719 = vunpack.c.h.b16 %v563
  %v720 = vpack.c.b16 %v626, %v624
  %v721 = vpack.c.b16 %v627, %v625
  %v722 = vpack.c.b16 %v630, %v628
  %v723 = vpack.c.b16 %v631, %v629
  %v724 = vpack.c.b16 %v634, %v632
  %v725 = vpack.c.b16 %v635, %v633
  %v726 = vpack.c.b16 %v638, %v636
  %v727 = vpack.c.b16 %v639, %v637
  %v728 = vpack.c.b16 %v642, %v640
  %v729 = vpack.c.b16 %v643, %v641
  %v730 = vpack.c.b16 %v646, %v644
  %v731 = vpack.c.b16 %v647, %v645
  %v732 = vpack.c.b16 %v650, %v648
  %v733 = vpack.c.b16 %v651, %v649
  %v734 = vpack.c.b16 %v654, %v652
  %v735 = vpack.c.b16 %v655, %v653
  %v736 = vpack.c.b16 %v658, %v656
  %v737 = vpack.c.b16 %v659, %v657
  %v738 = vpack.c.b16 %v662, %v660
  %v739 = vpack.c.b16 %v663, %v661
  %v740 = vpack.c.b16 %v666, %v664
  %v741 = vpack.c.b16 %v667, %v665
  %v742 = vpack.c.b16 %v670, %v668
  %v743 = vpack.c.b16 %v671, %v669
  %v744 = vpack.c.b16 %v674, %v672
  %v745 = vpack.c.b16 %v675, %v673
  %v746 = vpack.c.b16 %v678, %v676
  %v747 = vpack.c.b16 %v679, %v677
  %v748 = vpack.c.b16 %v682, %v680
  %v749 = vpack.c.b16 %v683, %v681
  %v750 = vpack.c.b16 %v686, %v684
  %v751 = vpack.c.b16 %v687, %v685
  %v752 = vpack.c.b16 %v690, %v688
  %v753 = vpack.c.b16 %v691, %v689
  %v754 = vpack.c.b16 %v694, %v692
  %v755 = vpack.c.b16 %v695, %v693
  %v756 = vpack.c.b16 %v698, %v696
  %v757 = vpack.c.b16 %v699, %v697
  %v758 = vpack.c.b16 %v702, %v700
  %v759 = vpack.c.b16 %v703, %v701
  %v760 = vpack.c.b16 %v706, %v704
  %v761 = vpack.c.b16 %v707, %v705
  %v762 = vpack.c.b16 %v710, %v708
  %v763 = vpack.c.b16 %v711, %v709
  %v764 = vpack.c.b16 %v714, %v712
  %v765 = vpack.c.b16 %v715, %v713
  %v766 = vpack.c.b16 %v718, %v716
  %v767 = vpack.c.b16 %v719, %v717
  %816 = vmatprep.subr.bf16.mxu0 %v721
  %817 = vmatpush1.bf16.msra.mxu0 %v720
  %818 = vmatprep.subr.bf16.mxu0 %v723
  %819 = vmatpush1.bf16.msra.mxu0 %v722
  %820 = vmatprep.subr.bf16.mxu0 %v725
  %821 = vmatpush1.bf16.msra.mxu0 %v724
  %822 = vmatprep.subr.bf16.mxu0 %v727
  %823 = vmatpush1.bf16.msra.mxu0 %v726
  %824 = vmatprep.subr.bf16.mxu0 %v729
  %825 = vmatpush1.bf16.msra.mxu0 %v728
  %826 = vmatprep.subr.bf16.mxu0 %v731
  %827 = vmatpush1.bf16.msra.mxu0 %v730
  %828 = vmatprep.subr.bf16.mxu0 %v733
  %829 = vmatpush1.bf16.msra.mxu0 %v732
  %830 = vmatprep.subr.bf16.mxu0 %v735
  %831 = vmatpush1.bf16.msra.mxu0 %v734
  %832 = vmatprep.subr.bf16.mxu0 %v737
  %833 = vmatpush1.bf16.msra.mxu0 %v736
  %834 = vmatprep.subr.bf16.mxu0 %v739
  %835 = vmatpush1.bf16.msra.mxu0 %v738
  %836 = vmatprep.subr.bf16.mxu0 %v741
  %837 = vmatpush1.bf16.msra.mxu0 %v740
  %838 = vmatprep.subr.bf16.mxu0 %v743
  %839 = vmatpush1.bf16.msra.mxu0 %v742
  %840 = vmatprep.subr.bf16.mxu0 %v745
  %841 = vmatpush1.bf16.msra.mxu0 %v744
  %842 = vmatprep.subr.bf16.mxu0 %v747
  %843 = vmatpush1.bf16.msra.mxu0 %v746
  %844 = vmatprep.subr.bf16.mxu0 %v749
  %845 = vmatpush1.bf16.msra.mxu0 %v748
  %846 = vmatprep.subr.bf16.mxu0 %v751
  %847 = vmatpush1.bf16.msra.mxu0 %v750
  %848 = vmatprep.mubr.bf16.mxu0 %v514
  %849 = vmatmul.mubr.bf16.gmra.mrb[0].mxu0 %v513
  %v850 = vpop.f32.mrb[0].mxu0
  %v851 = vadd.f32 %v569, %v850
  %v852 = vpop.f32.mrb[0].mxu0
  %v853 = vadd.f32 %v573, %v852
  %v854 = vpop.f32.mrb[0].mxu0
  %v855 = vpop.f32.mrb[0].mxu0
  %856 = vdwg.mxu0
  %857 = vmatprep.subr.bf16.mxu0 %v753
  %858 = vmatpush1.bf16.msra.mxu0 %v752
  %859 = vmatprep.subr.bf16.mxu0 %v755
  %860 = vmatpush1.bf16.msra.mxu0 %v754
  %861 = vmatprep.subr.bf16.mxu0 %v757
  %862 = vmatpush1.bf16.msra.mxu0 %v756
  %863 = vmatprep.subr.bf16.mxu0 %v759
  %864 = vmatpush1.bf16.msra.mxu0 %v758
  %865 = vmatprep.subr.bf16.mxu0 %v761
  %866 = vmatpush1.bf16.msra.mxu0 %v760
  %867 = vmatprep.subr.bf16.mxu0 %v763
  %868 = vmatpush1.bf16.msra.mxu0 %v762
  %869 = vmatprep.subr.bf16.mxu0 %v765
  %870 = vmatpush1.bf16.msra.mxu0 %v764
  %871 = vmatprep.subr.bf16.mxu0 %v767
  %872 = vmatpush1.bf16.msra.mxu0 %v766
  %873 = vmatprep.subr.bf16.mxu0 0
  %874 = vmatpush1.bf16.msra.mxu0 0
  %875 = vmatprep.subr.bf16.mxu0 0
  %876 = vmatpush1.bf16.msra.mxu0 0
  %877 = vmatprep.subr.bf16.mxu0 0
  %878 = vmatpush1.bf16.msra.mxu0 0
  %879 = vmatprep.subr.bf16.mxu0 0
  %880 = vmatpush1.bf16.msra.mxu0 0
  %881 = vmatprep.subr.bf16.mxu0 0
  %882 = vmatpush1.bf16.msra.mxu0 0
  %883 = vmatprep.subr.bf16.mxu0 0
  %884 = vmatpush1.bf16.msra.mxu0 0
  %885 = vmatprep.subr.bf16.mxu0 0
  %886 = vmatpush1.bf16.msra.mxu0 0
  %887 = vmatprep.subr.bf16.mxu0 0
  %888 = vmatpush1.bf16.msra.mxu0 0
  %889 = vmatprep.mubr.bf16.mxu0 0
  %890 = vmatmul.mubr.bf16.gmra.mrb[0].mxu0 %v515
  %v891 = vpop.f32.mrb[0].mxu0
  %v892 = vadd.f32 %v851, %v891
  %v893 = vpop.f32.mrb[0].mxu0
  %v894 = vadd.f32 %v853, %v893
  %v895 = vpop.f32.mrb[0].mxu0
  %v896 = vpop.f32.mrb[0].mxu0
  %897 = vdwg.mxu0
  %v898 = vmax.f32 %v892, 0.0
  %v899 = vmax.f32 %v894, 0.0
  %vm900 = vcmp.ne.f32.partialorder %v892, %v892
  %vm901 = vcmp.ne.f32.partialorder %v894, %v894
  %v902 = vadd.f32 %v892, 0.0
  %v903 = vadd.f32 %v894, 0.0
  %v904 = vand.u32 2147483647, %v892
  %v905 = vand.u32 2147483647, %v894
  %v906 = vsub.f32 0.0, %v904
  %v907 = vsub.f32 0.0, %v905
  %v908 = vmul.f32 %v906, 1.442695
  %v909 = vpow.pop %v908
  %v910 = vmul.f32 %v907, 1.442695
  %v911 = vpow.pop %v910
  %v912 = vadd.f32 %v909, 1.0
  %v913 = vlog2.pop %v912
  %v914 = vmul.f32 %v913, 0.6931472
  %v915 = vmul.f32 -0.5, %v909
  %v916 = vadd.f32 %v915, 1.0
  %v917 = vmul.f32 %v916, %v909
  %v918 = vand.u32 2147483647, %v909
  %vm919 = vcmp.lt.f32.partialorder %v918, 0.0004427343
  %v920 = vsel %vm919, %v917, %v914
  %v921 = vadd.f32 %v911, 1.0
  %v922 = vlog2.pop %v921
  %v923 = vmul.f32 %v922, 0.6931472
  %v924 = vmul.f32 -0.5, %v911
  %v925 = vadd.f32 %v924, 1.0
  %v926 = vmul.f32 %v925, %v911
  %v927 = vand.u32 2147483647, %v911
  %vm928 = vcmp.lt.f32.partialorder %v927, 0.0004427343
  %v929 = vsel %vm928, %v926, %v923
  %v930 = vadd.f32 %v898, %v920
  %v931 = vadd.f32 %v899, %v929
  %v932 = vsel %vm900, %v902, %v930
  %v933 = vsel %vm901, %v903, %v931
  %v934 = vpack.c.bf16 %v932, %v932
  %v935 = vpack.c.bf16 %v933, %v933
  %v936 = vld [vmem:[%s5] sm:$0xff]
  %v937 = vld [vmem:[%s5 + $0x8] sm:$0xff]
  %v938 = vld [vmem:[%s5 + $0x10] sm:$0xff]
  %v939 = vld [vmem:[%s5 + $0x18] sm:$0xff]
  %v940 = vld [vmem:[%s5 + $0x20] sm:$0xff]
  %v941 = vld [vmem:[%s5 + $0x28] sm:$0xff]
  %v942 = vld [vmem:[%s5 + $0x30] sm:$0xff]
  %v943 = vld [vmem:[%s5 + $0x38] sm:$0xff]
  %v944 = vld [vmem:[%s5 + $0x40] sm:$0xff]
  %v945 = vld [vmem:[%s5 + $0x48] sm:$0xff]
  %v946 = vld [vmem:[%s5 + $0x50] sm:$0xff]
  %v947 = vld [vmem:[%s5 + $0x58] sm:$0xff]
  %v948 = vld [vmem:[%s5 + $0x60] sm:$0xff]
  %v949 = vld [vmem:[%s5 + $0x68] sm:$0xff]
  %v950 = vld [vmem:[%s5 + $0x70] sm:$0xff]
  %v951 = vld [vmem:[%s5 + $0x78] sm:$0xff]
  %v952 = vld [vmem:[%s5 + $0x80] sm:$0xff]
  %v953 = vld [vmem:[%s5 + $0x88] sm:$0xff]
  %v954 = vld [vmem:[%s5 + $0x90] sm:$0xff]
  %v955 = vld [vmem:[%s5 + $0x98] sm:$0xff]
  %v956 = vld [vmem:[%s5 + $0xa0] sm:$0xff]
  %v957 = vld [vmem:[%s5 + $0xa8] sm:$0xff]
  %v958 = vld [vmem:[%s5 + $0xb0] sm:$0xff]
  %v959 = vld [vmem:[%s5 + $0xb8] sm:$0xff]
  %v960 = vld [vmem:[%s5 + $0xc0] sm:$0xff]
  %v961 = vld [vmem:[%s5 + $0xc8] sm:$0xff]
  %v962 = vld [vmem:[%s5 + $0xd0] sm:$0xff]
  %v963 = vld [vmem:[%s5 + $0xd8] sm:$0xff]
  %v964 = vld [vmem:[%s5 + $0xe0] sm:$0xff]
  %v965 = vld [vmem:[%s5 + $0xe8] sm:$0xff]
  %v966 = vld [vmem:[%s5 + $0xf0] sm:$0xff]
  %v967 = vld [vmem:[%s5 + $0xf8] sm:$0xff]
  %v968 = vld [vmem:[%s6] sm:$0x3]
  %v970 = vlaneseq
  %v971 = vshrl.u32 %v970, 7
  %v972 = vsub.s32 0, %v971
  %v973 = vrot.slane %v968, %v972
  %v974 = vlaneseq
  %v975 = vshrl.u32 %v974, 7
  %v976 = vsub.s32 1, %v975
  %v977 = vrot.slane %v968, %v976
  %v1012 = vunpack.c.l.b16 %v936
  %v1013 = vunpack.c.h.b16 %v936
  %v1014 = vunpack.c.l.b16 %v937
  %v1015 = vunpack.c.h.b16 %v937
  %v1016 = vunpack.c.l.b16 %v938
  %v1017 = vunpack.c.h.b16 %v938
  %v1018 = vunpack.c.l.b16 %v939
  %v1019 = vunpack.c.h.b16 %v939
  %v1020 = vunpack.c.l.b16 %v940
  %v1021 = vunpack.c.h.b16 %v940
  %v1022 = vunpack.c.l.b16 %v941
  %v1023 = vunpack.c.h.b16 %v941
  %v1024 = vunpack.c.l.b16 %v942
  %v1025 = vunpack.c.h.b16 %v942
  %v1026 = vunpack.c.l.b16 %v943
  %v1027 = vunpack.c.h.b16 %v943
  %v1028 = vunpack.c.l.b16 %v944
  %v1029 = vunpack.c.h.b16 %v944
  %v1030 = vunpack.c.l.b16 %v945
  %v1031 = vunpack.c.h.b16 %v945
  %v1032 = vunpack.c.l.b16 %v946
  %v1033 = vunpack.c.h.b16 %v946
  %v1034 = vunpack.c.l.b16 %v947
  %v1035 = vunpack.c.h.b16 %v947
  %v1036 = vunpack.c.l.b16 %v948
  %v1037 = vunpack.c.h.b16 %v948
  %v1038 = vunpack.c.l.b16 %v949
  %v1039 = vunpack.c.h.b16 %v949
  %v1040 = vunpack.c.l.b16 %v950
  %v1041 = vunpack.c.h.b16 %v950
  %v1042 = vunpack.c.l.b16 %v951
  %v1043 = vunpack.c.h.b16 %v951
  %v1044 = vunpack.c.l.b16 %v952
  %v1045 = vunpack.c.h.b16 %v952
  %v1046 = vunpack.c.l.b16 %v953
  %v1047 = vunpack.c.h.b16 %v953
  %v1048 = vunpack.c.l.b16 %v954
  %v1049 = vunpack.c.h.b16 %v954
  %v1050 = vunpack.c.l.b16 %v955
  %v1051 = vunpack.c.h.b16 %v955
  %v1052 = vunpack.c.l.b16 %v956
  %v1053 = vunpack.c.h.b16 %v956
  %v1054 = vunpack.c.l.b16 %v957
  %v1055 = vunpack.c.h.b16 %v957
  %v1056 = vunpack.c.l.b16 %v958
  %v1057 = vunpack.c.h.b16 %v958
  %v1058 = vunpack.c.l.b16 %v959
  %v1059 = vunpack.c.h.b16 %v959
  %v1060 = vunpack.c.l.b16 %v960
  %v1061 = vunpack.c.h.b16 %v960
  %v1062 = vunpack.c.l.b16 %v961
  %v1063 = vunpack.c.h.b16 %v961
  %v1064 = vunpack.c.l.b16 %v962
  %v1065 = vunpack.c.h.b16 %v962
  %v1066 = vunpack.c.l.b16 %v963
  %v1067 = vunpack.c.h.b16 %v963
  %v1068 = vunpack.c.l.b16 %v964
  %v1069 = vunpack.c.h.b16 %v964
  %v1070 = vunpack.c.l.b16 %v965
  %v1071 = vunpack.c.h.b16 %v965
  %v1072 = vunpack.c.l.b16 %v966
  %v1073 = vunpack.c.h.b16 %v966
  %v1074 = vunpack.c.l.b16 %v967
  %v1075 = vunpack.c.h.b16 %v967
  %v1076 = vpack.c.b16 %v1014, %v1012
  %v1077 = vpack.c.b16 %v1015, %v1013
  %v1078 = vpack.c.b16 %v1018, %v1016
  %v1079 = vpack.c.b16 %v1019, %v1017
  %v1080 = vpack.c.b16 %v1022, %v1020
  %v1081 = vpack.c.b16 %v1023, %v1021
  %v1082 = vpack.c.b16 %v1026, %v1024
  %v1083 = vpack.c.b16 %v1027, %v1025
  %v1084 = vpack.c.b16 %v1030, %v1028
  %v1085 = vpack.c.b16 %v1031, %v1029
  %v1086 = vpack.c.b16 %v1034, %v1032
  %v1087 = vpack.c.b16 %v1035, %v1033
  %v1088 = vpack.c.b16 %v1038, %v1036
  %v1089 = vpack.c.b16 %v1039, %v1037
  %v1090 = vpack.c.b16 %v1042, %v1040
  %v1091 = vpack.c.b16 %v1043, %v1041
  %v1092 = vpack.c.b16 %v1046, %v1044
  %v1093 = vpack.c.b16 %v1047, %v1045
  %v1094 = vpack.c.b16 %v1050, %v1048
  %v1095 = vpack.c.b16 %v1051, %v1049
  %v1096 = vpack.c.b16 %v1054, %v1052
  %v1097 = vpack.c.b16 %v1055, %v1053
  %v1098 = vpack.c.b16 %v1058, %v1056
  %v1099 = vpack.c.b16 %v1059, %v1057
  %v1100 = vpack.c.b16 %v1062, %v1060
  %v1101 = vpack.c.b16 %v1063, %v1061
  %v1102 = vpack.c.b16 %v1066, %v1064
  %v1103 = vpack.c.b16 %v1067, %v1065
  %v1104 = vpack.c.b16 %v1070, %v1068
  %v1105 = vpack.c.b16 %v1071, %v1069
  %v1106 = vpack.c.b16 %v1074, %v1072
  %v1107 = vpack.c.b16 %v1075, %v1073
  %1140 = vmatprep.subr.bf16.mxu0 %v1077
  %1141 = vmatpush1.bf16.msra.mxu0 %v1076
  %1142 = vmatprep.subr.bf16.mxu0 %v1079
  %1143 = vmatpush1.bf16.msra.mxu0 %v1078
  %1144 = vmatprep.subr.bf16.mxu0 %v1081
  %1145 = vmatpush1.bf16.msra.mxu0 %v1080
  %1146 = vmatprep.subr.bf16.mxu0 %v1083
  %1147 = vmatpush1.bf16.msra.mxu0 %v1082
  %1148 = vmatprep.subr.bf16.mxu0 %v1085
  %1149 = vmatpush1.bf16.msra.mxu0 %v1084
  %1150 = vmatprep.subr.bf16.mxu0 %v1087
  %1151 = vmatpush1.bf16.msra.mxu0 %v1086
  %1152 = vmatprep.subr.bf16.mxu0 %v1089
  %1153 = vmatpush1.bf16.msra.mxu0 %v1088
  %1154 = vmatprep.subr.bf16.mxu0 %v1091
  %1155 = vmatpush1.bf16.msra.mxu0 %v1090
  %1156 = vmatprep.subr.bf16.mxu0 %v1093
  %1157 = vmatpush1.bf16.msra.mxu0 %v1092
  %1158 = vmatprep.subr.bf16.mxu0 %v1095
  %1159 = vmatpush1.bf16.msra.mxu0 %v1094
  %1160 = vmatprep.subr.bf16.mxu0 %v1097
  %1161 = vmatpush1.bf16.msra.mxu0 %v1096
  %1162 = vmatprep.subr.bf16.mxu0 %v1099
  %1163 = vmatpush1.bf16.msra.mxu0 %v1098
  %1164 = vmatprep.subr.bf16.mxu0 %v1101
  %1165 = vmatpush1.bf16.msra.mxu0 %v1100
  %1166 = vmatprep.subr.bf16.mxu0 %v1103
  %1167 = vmatpush1.bf16.msra.mxu0 %v1102
  %1168 = vmatprep.subr.bf16.mxu0 %v1105
  %1169 = vmatpush1.bf16.msra.mxu0 %v1104
  %1170 = vmatprep.subr.bf16.mxu0 %v1107
  %1171 = vmatpush1.bf16.msra.mxu0 %v1106
  %1172 = vmatprep.mubr.bf16.mxu0 %v935
  %1173 = vmatmul.mubr.bf16.gmra.mrb[0].mxu0 %v934
  %v1174 = vpop.f32.mrb[0].mxu0
  %v1175 = vadd.f32 %v973, %v1174
  %v1176 = vpop.f32.mrb[0].mxu0
  %v1177 = vadd.f32 %v977, %v1176
  %v1178 = vpop.f32.mrb[0].mxu0
  %v1179 = vpop.f32.mrb[0].mxu0
  %1180 = vdwg.mxu0
  %v1181 = vmax.f32 %v1175, 0.0
  %v1182 = vmax.f32 %v1177, 0.0
  %vm1183 = vcmp.ne.f32.partialorder %v1175, %v1175
  %vm1184 = vcmp.ne.f32.partialorder %v1177, %v1177
  %v1185 = vadd.f32 %v1175, 0.0
  %v1186 = vadd.f32 %v1177, 0.0
  %v1187 = vand.u32 2147483647, %v1175
  %v1188 = vand.u32 2147483647, %v1177
  %v1189 = vsub.f32 0.0, %v1187
  %v1190 = vsub.f32 0.0, %v1188
  %v1191 = vmul.f32 %v1189, 1.442695
  %v1192 = vpow.pop %v1191
  %v1193 = vmul.f32 %v1190, 1.442695
  %v1194 = vpow.pop %v1193
  %v1195 = vadd.f32 %v1192, 1.0
  %v1196 = vlog2.pop %v1195
  %v1197 = vmul.f32 %v1196, 0.6931472
  %v1198 = vmul.f32 -0.5, %v1192
  %v1199 = vadd.f32 %v1198, 1.0
  %v1200 = vmul.f32 %v1199, %v1192
  %v1201 = vand.u32 2147483647, %v1192
  %vm1202 = vcmp.lt.f32.partialorder %v1201, 0.0004427343
  %v1203 = vsel %vm1202, %v1200, %v1197
  %v1204 = vadd.f32 %v1194, 1.0
  %v1205 = vlog2.pop %v1204
  %v1206 = vmul.f32 %v1205, 0.6931472
  %v1207 = vmul.f32 -0.5, %v1194
  %v1208 = vadd.f32 %v1207, 1.0
  %v1209 = vmul.f32 %v1208, %v1194
  %v1210 = vand.u32 2147483647, %v1194
  %vm1211 = vcmp.lt.f32.partialorder %v1210, 0.0004427343
  %v1212 = vsel %vm1211, %v1209, %v1206
  %v1213 = vadd.f32 %v1181, %v1203
  %v1214 = vadd.f32 %v1182, %v1212
  %v1215 = vsel %vm1183, %v1185, %v1213
  %v1216 = vsel %vm1184, %v1186, %v1214
  %v1217 = vpack.c.bf16 %v1215, %v1215
  %v1218 = vpack.c.bf16 %v1216, %v1216
  %v1219 = vld [vmem:[%s7] sm:$0xf]
  %v1220 = vld [vmem:[%s7 + $0x4] sm:$0xf]
  %v1221 = vld [vmem:[%s7 + $0x8] sm:$0xf]
  %v1222 = vld [vmem:[%s7 + $0xc] sm:$0xf]
  %v1223 = vld [vmem:[%s7 + $0x10] sm:$0xf]
  %v1224 = vld [vmem:[%s7 + $0x14] sm:$0xf]
  %v1225 = vld [vmem:[%s7 + $0x18] sm:$0xf]
  %v1226 = vld [vmem:[%s7 + $0x1c] sm:$0xf]
  %v1227 = vld [vmem:[%s7 + $0x20] sm:$0xf]
  %v1228 = vld [vmem:[%s7 + $0x24] sm:$0xf]
  %v1229 = vld [vmem:[%s7 + $0x28] sm:$0xf]
  %v1230 = vld [vmem:[%s7 + $0x2c] sm:$0xf]
  %v1231 = vld [vmem:[%s7 + $0x30] sm:$0xf]
  %v1232 = vld [vmem:[%s7 + $0x34] sm:$0xf]
  %v1233 = vld [vmem:[%s7 + $0x38] sm:$0xf]
  %v1234 = vld [vmem:[%s7 + $0x3c] sm:$0xf]
  %v1235 = vld [vmem:[%s7 + $0x40] sm:$0xf]
  %v1236 = vld [vmem:[%s7 + $0x44] sm:$0xf]
  %v1237 = vld [vmem:[%s7 + $0x48] sm:$0xf]
  %v1238 = vld [vmem:[%s7 + $0x4c] sm:$0xf]
  %v1239 = vld [vmem:[%s7 + $0x50] sm:$0xf]
  %v1240 = vld [vmem:[%s7 + $0x54] sm:$0xf]
  %v1241 = vld [vmem:[%s7 + $0x58] sm:$0xf]
  %v1242 = vld [vmem:[%s7 + $0x5c] sm:$0xf]
  %v1243 = vld [vmem:[%s7 + $0x60] sm:$0xf]
  %v1244 = vld [vmem:[%s7 + $0x64] sm:$0xf]
  %v1245 = vld [vmem:[%s7 + $0x68] sm:$0xf]
  %v1246 = vld [vmem:[%s7 + $0x6c] sm:$0xf]
  %v1247 = vld [vmem:[%s7 + $0x70] sm:$0xf]
  %v1248 = vld [vmem:[%s7 + $0x74] sm:$0xf]
  %v1249 = vld [vmem:[%s7 + $0x78] sm:$0xf]
  %v1250 = vld [vmem:[%s7 + $0x7c] sm:$0xf]
  %v1251 = vld [vmem:[%s8] sm:$0x1]
  %v1253 = vlaneseq
  %v1254 = vshrl.u32 %v1253, 7
  %v1255 = vsub.s32 0, %v1254
  %v1256 = vrot.slane %v1251, %v1255
  %v1290 = vunpack.c.l.b16 %v1219
  %v1291 = vunpack.c.l.b16 %v1220
  %v1292 = vunpack.c.l.b16 %v1221
  %v1293 = vunpack.c.l.b16 %v1222
  %v1294 = vunpack.c.l.b16 %v1223
  %v1295 = vunpack.c.l.b16 %v1224
  %v1296 = vunpack.c.l.b16 %v1225
  %v1297 = vunpack.c.l.b16 %v1226
  %v1298 = vunpack.c.l.b16 %v1227
  %v1299 = vunpack.c.l.b16 %v1228
  %v1300 = vunpack.c.l.b16 %v1229
  %v1301 = vunpack.c.l.b16 %v1230
  %v1302 = vunpack.c.l.b16 %v1231
  %v1303 = vunpack.c.l.b16 %v1232
  %v1304 = vunpack.c.l.b16 %v1233
  %v1305 = vunpack.c.l.b16 %v1234
  %v1306 = vunpack.c.l.b16 %v1235
  %v1307 = vunpack.c.l.b16 %v1236
  %v1308 = vunpack.c.l.b16 %v1237
  %v1309 = vunpack.c.l.b16 %v1238
  %v1310 = vunpack.c.l.b16 %v1239
  %v1311 = vunpack.c.l.b16 %v1240
  %v1312 = vunpack.c.l.b16 %v1241
  %v1313 = vunpack.c.l.b16 %v1242
  %v1314 = vunpack.c.l.b16 %v1243
  %v1315 = vunpack.c.l.b16 %v1244
  %v1316 = vunpack.c.l.b16 %v1245
  %v1317 = vunpack.c.l.b16 %v1246
  %v1318 = vunpack.c.l.b16 %v1247
  %v1319 = vunpack.c.l.b16 %v1248
  %v1320 = vunpack.c.l.b16 %v1249
  %v1321 = vunpack.c.l.b16 %v1250
  %v1322 = vpack.c.b16 %v1291, %v1290
  %v1323 = vpack.c.b16 %v1293, %v1292
  %v1324 = vpack.c.b16 %v1295, %v1294
  %v1325 = vpack.c.b16 %v1297, %v1296
  %v1326 = vpack.c.b16 %v1299, %v1298
  %v1327 = vpack.c.b16 %v1301, %v1300
  %v1328 = vpack.c.b16 %v1303, %v1302
  %v1329 = vpack.c.b16 %v1305, %v1304
  %v1330 = vpack.c.b16 %v1307, %v1306
  %v1331 = vpack.c.b16 %v1309, %v1308
  %v1332 = vpack.c.b16 %v1311, %v1310
  %v1333 = vpack.c.b16 %v1313, %v1312
  %v1334 = vpack.c.b16 %v1315, %v1314
  %v1335 = vpack.c.b16 %v1317, %v1316
  %v1336 = vpack.c.b16 %v1319, %v1318
  %v1337 = vpack.c.b16 %v1321, %v1320
  %1354 = vmatprep.subr.bf16.mxu0 0
  %1355 = vmatpush1.bf16.msra.mxu0 %v1322
  %1356 = vmatprep.subr.bf16.mxu0 0
  %1357 = vmatpush1.bf16.msra.mxu0 %v1323
  %1358 = vmatprep.subr.bf16.mxu0 0
  %1359 = vmatpush1.bf16.msra.mxu0 %v1324
  %1360 = vmatprep.subr.bf16.mxu0 0
  %1361 = vmatpush1.bf16.msra.mxu0 %v1325
  %1362 = vmatprep.subr.bf16.mxu0 0
  %1363 = vmatpush1.bf16.msra.mxu0 %v1326
  %1364 = vmatprep.subr.bf16.mxu0 0
  %1365 = vmatpush1.bf16.msra.mxu0 %v1327
  %1366 = vmatprep.subr.bf16.mxu0 0
  %1367 = vmatpush1.bf16.msra.mxu0 %v1328
  %1368 = vmatprep.subr.bf16.mxu0 0
  %1369 = vmatpush1.bf16.msra.mxu0 %v1329
  %1370 = vmatprep.subr.bf16.mxu0 0
  %1371 = vmatpush1.bf16.msra.mxu0 %v1330
  %1372 = vmatprep.subr.bf16.mxu0 0
  %1373 = vmatpush1.bf16.msra.mxu0 %v1331
  %1374 = vmatprep.subr.bf16.mxu0 0
  %1375 = vmatpush1.bf16.msra.mxu0 %v1332
  %1376 = vmatprep.subr.bf16.mxu0 0
  %1377 = vmatpush1.bf16.msra.mxu0 %v1333
  %1378 = vmatprep.subr.bf16.mxu0 0
  %1379 = vmatpush1.bf16.msra.mxu0 %v1334
  %1380 = vmatprep.subr.bf16.mxu0 0
  %1381 = vmatpush1.bf16.msra.mxu0 %v1335
  %1382 = vmatprep.subr.bf16.mxu0 0
  %1383 = vmatpush1.bf16.msra.mxu0 %v1336
  %1384 = vmatprep.subr.bf16.mxu0 0
  %1385 = vmatpush1.bf16.msra.mxu0 %v1337
  %1386 = vmatprep.mubr.bf16.mxu0 %v1218
  %1387 = vmatmul.mubr.bf16.gmra.mrb[0].mxu0 %v1217
  %v1388 = vpop.f32.mrb[0].mxu0
  %v1389 = vadd.f32 %v1256, %v1388
  %v1390 = vpop.f32.mrb[0].mxu0
  %v1391 = vpop.f32.mrb[0].mxu0
  %v1392 = vpop.f32.mrb[0].mxu0
  %1393 = vdwg.mxu0
  %1394 = vst [vmem:[%s9] sm:$0xff] %v1389
  // Predicated region
  $region38: #{_lambda_.9} parent=0 // pred_check
    _
  $region39: #{_lambda_.9} parent=0 // pred_check_branch
    %1396 = sbr.rel (0) target = $region41
  $region40: #{_lambda_.9} parent=0 // pred_region
    _
  $region41: #{_lambda_.9} parent=0 // pred_fallthru
    _
  // Predicated region
  $region42: #{_lambda_.9} parent=0 // pred_check
    _
  $region43: #{_lambda_.9} parent=0 // pred_check_branch
    %1398 = sbr.rel (0) target = $region45
  $region44: #{_lambda_.9} parent=0 // pred_region
    _
  $region45: #{_lambda_.9} parent=0 // pred_fallthru
    _

// kernel: _lambda_.7
$region0: #{_lambda_.7}
  #allocation0 [shape = 'u32[]', space=smem, size = 0x4, offset = 0x4, fixed_abs, tag = 'smem constant byte address 0x4 - core index']
  #allocation1 [shape = 'u32[144,128]{1,0:T(1,128)}', space=vmem, size = 0x12000, scoped, tag = 'internal scratch']
  %s0 = inlined_call_operand.vmem [shape: bf16[24,1664], index: 0, kind: input, shape index: {}]
  %s1 = inlined_call_operand.vmem [shape: bf16[1664,256], index: 1, kind: input, shape index: {}]
  %s2 = inlined_call_operand.vmem [shape: f32[1,256], index: 2, kind: input, shape index: {}]
  %s3 = inlined_call_operand.vmem [shape: f32[24,256], index: 3, kind: output, shape index: {}]
  %s4 = sld [smem:[#allocation0]]
  $region22: #{_lambda_.7} parent=0
    _
  %s6 = ssub.s32 1, %s4
  %s7 = scalar_select 0, %s6, %s4
  // Predicated region
  $region2: #{_lambda_.7} parent=0 // pred_check
    _
  $region3: #{_lambda_.7} parent=0 // pred_check_branch
    %9 = sbr.rel (0) target = $region5
  $region4: #{_lambda_.7} parent=0 // pred_region
    _
  $region5: #{_lambda_.7} parent=0 // pred_fallthru
    _
  // Predicated region
  $region6: #{_lambda_.7} parent=0 // pred_check
    _
  $region7: #{_lambda_.7} parent=0 // pred_check_branch
    %11 = sbr.rel (0) target = $region9
  $region8: #{_lambda_.7} parent=0 // pred_region
    _
  $region9: #{_lambda_.7} parent=0 // pred_fallthru
    _
  // Predicated region
  $region10: #{_lambda_.7} parent=0 // pred_check
    _
  $region11: #{_lambda_.7} parent=0 // pred_check_branch
    %13 = sbr.rel (0) target = $region13
  $region12: #{_lambda_.7} parent=0 // pred_region
    _
  $region13: #{_lambda_.7} parent=0 // pred_fallthru
    _
  %v15 = vld [vmem:[%s0] sm:$0xff]
  %v16 = vld [vmem:[%s0 + $0x8] sm:$0xff]
  %v17 = vld [vmem:[%s0 + $0x10] sm:$0xff]
  %v18 = vld [vmem:[%s0 + $0x18] sm:$0xff]
  %v19 = vld [vmem:[%s0 + $0x20] sm:$0xff]
  %v20 = vld [vmem:[%s0 + $0x28] sm:$0xff]
  %v21 = vld [vmem:[%s0 + $0x30] sm:$0xf]
  %v22 = vld [vmem:[%s0 + $0x34] sm:$0xff]
  %v23 = vld [vmem:[%s0 + $0x3c] sm:$0xff]
  %v24 = vld [vmem:[%s0 + $0x44] sm:$0xff]
  %v25 = vld [vmem:[%s0 + $0x4c] sm:$0xff]
  %v26 = vld [vmem:[%s0 + $0x54] sm:$0xff]
  %v27 = vld [vmem:[%s0 + $0x5c] sm:$0xff]
  %v28 = vld [vmem:[%s0 + $0x64] sm:$0xf]
  %v29 = vld [vmem:[%s0 + $0x68] sm:$0xff]
  %v30 = vld [vmem:[%s0 + $0x70] sm:$0xff]
  %v31 = vld [vmem:[%s0 + $0x78] sm:$0xff]
  %v32 = vld [vmem:[%s0 + $0x80] sm:$0xff]
  %v33 = vld [vmem:[%s0 + $0x88] sm:$0xff]
  %v34 = vld [vmem:[%s0 + $0x90] sm:$0xff]
  %v35 = vld [vmem:[%s0 + $0x98] sm:$0xf]
  %v36 = vld [vmem:[%s1] sm:$0xff]
  %v37 = vld [vmem:[%s1 + $0x8] sm:$0xff]
  %v38 = vld [vmem:[%s1 + $0x10] sm:$0xff]
  %v39 = vld [vmem:[%s1 + $0x18] sm:$0xff]
  %v40 = vld [vmem:[%s1 + $0x20] sm:$0xff]
  %v41 = vld [vmem:[%s1 + $0x28] sm:$0xff]
  %v42 = vld [vmem:[%s1 + $0x30] sm:$0xff]
  %v43 = vld [vmem:[%s1 + $0x38] sm:$0xff]
  %v44 = vld [vmem:[%s1 + $0x40] sm:$0xff]
  %v45 = vld [vmem:[%s1 + $0x48] sm:$0xff]
  %v46 = vld [vmem:[%s1 + $0x50] sm:$0xff]
  %v47 = vld [vmem:[%s1 + $0x58] sm:$0xff]
  %v48 = vld [vmem:[%s1 + $0x60] sm:$0xff]
  %v49 = vld [vmem:[%s1 + $0x68] sm:$0xff]
  %v50 = vld [vmem:[%s1 + $0x70] sm:$0xff]
  %v51 = vld [vmem:[%s1 + $0x78] sm:$0xff]
  %v52 = vld [vmem:[%s1 + $0x80] sm:$0xff]
  %v53 = vld [vmem:[%s1 + $0x88] sm:$0xff]
  %v54 = vld [vmem:[%s1 + $0x90] sm:$0xff]
  %v55 = vld [vmem:[%s1 + $0x98] sm:$0xff]
  %v56 = vld [vmem:[%s1 + $0xa0] sm:$0xff]
  %v57 = vld [vmem:[%s1 + $0xa8] sm:$0xff]
  %v58 = vld [vmem:[%s1 + $0xb0] sm:$0xff]
  %v59 = vld [vmem:[%s1 + $0xb8] sm:$0xff]
  %v60 = vld [vmem:[%s1 + $0xc0] sm:$0xff]
  %v61 = vld [vmem:[%s1 + $0xc8] sm:$0xff]
  %v62 = vld [vmem:[%s1 + $0xd0] sm:$0xff]
  %v63 = vld [vmem:[%s1 + $0xd8] sm:$0xff]
  %v64 = vld [vmem:[%s1 + $0xe0] sm:$0xff]
  %v65 = vld [vmem:[%s1 + $0xe8] sm:$0xff]
  %v66 = vld [vmem:[%s1 + $0xf0] sm:$0xff]
  %v67 = vld [vmem:[%s1 + $0xf8] sm:$0xff]
  %v68 = vld [vmem:[%s1 + $0x100] sm:$0xff]
  %v69 = vld [vmem:[%s1 + $0x108] sm:$0xff]
  %v70 = vld [vmem:[%s1 + $0x110] sm:$0xff]
  %v71 = vld [vmem:[%s1 + $0x118] sm:$0xff]
  %v72 = vld [vmem:[%s1 + $0x120] sm:$0xff]
  %v73 = vld [vmem:[%s1 + $0x128] sm:$0xff]
  %v74 = vld [vmem:[%s1 + $0x130] sm:$0xff]
  %v75 = vld [vmem:[%s1 + $0x138] sm:$0xff]
  %v76 = vld [vmem:[%s1 + $0x140] sm:$0xff]
  %v77 = vld [vmem:[%s1 + $0x148] sm:$0xff]
  %v78 = vld [vmem:[%s1 + $0x150] sm:$0xff]
  %v79 = vld [vmem:[%s1 + $0x158] sm:$0xff]
  %v80 = vld [vmem:[%s1 + $0x160] sm:$0xff]
  %v81 = vld [vmem:[%s1 + $0x168] sm:$0xff]
  %v82 = vld [vmem:[%s1 + $0x170] sm:$0xff]
  %v83 = vld [vmem:[%s1 + $0x178] sm:$0xff]
  %v84 = vld [vmem:[%s1 + $0x180] sm:$0xff]
  %v85 = vld [vmem:[%s1 + $0x188] sm:$0xff]
  %v86 = vld [vmem:[%s1 + $0x190] sm:$0xff]
  %v87 = vld [vmem:[%s1 + $0x198] sm:$0xff]
  %v88 = vld [vmem:[%s1 + $0x1a0] sm:$0xff]
  %v89 = vld [vmem:[%s1 + $0x1a8] sm:$0xff]
  %v90 = vld [vmem:[%s1 + $0x1b0] sm:$0xff]
  %v91 = vld [vmem:[%s1 + $0x1b8] sm:$0xff]
  %v92 = vld [vmem:[%s1 + $0x1c0] sm:$0xff]
  %v93 = vld [vmem:[%s1 + $0x1c8] sm:$0xff]
  %v94 = vld [vmem:[%s1 + $0x1d0] sm:$0xff]
  %v95 = vld [vmem:[%s1 + $0x1d8] sm:$0xff]
  %v96 = vld [vmem:[%s1 + $0x1e0] sm:$0xff]
  %v97 = vld [vmem:[%s1 + $0x1e8] sm:$0xff]
  %v98 = vld [vmem:[%s1 + $0x1f0] sm:$0xff]
  %v99 = vld [vmem:[%s1 + $0x1f8] sm:$0xff]
  %v100 = vld [vmem:[%s1 + $0x200] sm:$0xff]
  %v101 = vld [vmem:[%s1 + $0x208] sm:$0xff]
  %v102 = vld [vmem:[%s1 + $0x210] sm:$0xff]
  %v103 = vld [vmem:[%s1 + $0x218] sm:$0xff]
  %v104 = vld [vmem:[%s1 + $0x220] sm:$0xff]
  %v105 = vld [vmem:[%s1 + $0x228] sm:$0xff]
  %v106 = vld [vmem:[%s1 + $0x230] sm:$0xff]
  %v107 = vld [vmem:[%s1 + $0x238] sm:$0xff]
  %v108 = vld [vmem:[%s1 + $0x240] sm:$0xff]
  %v109 = vld [vmem:[%s1 + $0x248] sm:$0xff]
  %v110 = vld [vmem:[%s1 + $0x250] sm:$0xff]
  %v111 = vld [vmem:[%s1 + $0x258] sm:$0xff]
  %v112 = vld [vmem:[%s1 + $0x260] sm:$0xff]
  %v113 = vld [vmem:[%s1 + $0x268] sm:$0xff]
  %v114 = vld [vmem:[%s1 + $0x270] sm:$0xff]
  %v115 = vld [vmem:[%s1 + $0x278] sm:$0xff]
  %v116 = vld [vmem:[%s1 + $0x280] sm:$0xff]
  %v117 = vld [vmem:[%s1 + $0x288] sm:$0xff]
  %v118 = vld [vmem:[%s1 + $0x290] sm:$0xff]
  %v119 = vld [vmem:[%s1 + $0x298] sm:$0xff]
  %v120 = vld [vmem:[%s1 + $0x2a0] sm:$0xff]
  %v121 = vld [vmem:[%s1 + $0x2a8] sm:$0xff]
  %v122 = vld [vmem:[%s1 + $0x2b0] sm:$0xff]
  %v123 = vld [vmem:[%s1 + $0x2b8] sm:$0xff]
  %v124 = vld [vmem:[%s1 + $0x2c0] sm:$0xff]
  %v125 = vld [vmem:[%s1 + $0x2c8] sm:$0xff]
  %v126 = vld [vmem:[%s1 + $0x2d0] sm:$0xff]
  %v127 = vld [vmem:[%s1 + $0x2d8] sm:$0xff]
  %v128 = vld [vmem:[%s1 + $0x2e0] sm:$0xff]
  %v129 = vld [vmem:[%s1 + $0x2e8] sm:$0xff]
  %v130 = vld [vmem:[%s1 + $0x2f0] sm:$0xff]
  %v131 = vld [vmem:[%s1 + $0x2f8] sm:$0xff]
  %v132 = vld [vmem:[%s1 + $0x300] sm:$0xff]
  %v133 = vld [vmem:[%s1 + $0x308] sm:$0xff]
  %v134 = vld [vmem:[%s1 + $0x310] sm:$0xff]
  %v135 = vld [vmem:[%s1 + $0x318] sm:$0xff]
  %v136 = vld [vmem:[%s1 + $0x320] sm:$0xff]
  %v137 = vld [vmem:[%s1 + $0x328] sm:$0xff]
  %v138 = vld [vmem:[%s1 + $0x330] sm:$0xff]
  %v139 = vld [vmem:[%s1 + $0x338] sm:$0xff]
  %v140 = vld [vmem:[%s1 + $0x340] sm:$0xff]
  %v141 = vld [vmem:[%s1 + $0x348] sm:$0xff]
  %v142 = vld [vmem:[%s1 + $0x350] sm:$0xff]
  %v143 = vld [vmem:[%s1 + $0x358] sm:$0xff]
  %v144 = vld [vmem:[%s1 + $0x360] sm:$0xff]
  %v145 = vld [vmem:[%s1 + $0x368] sm:$0xff]
  %v146 = vld [vmem:[%s1 + $0x370] sm:$0xff]
  %v147 = vld [vmem:[%s1 + $0x378] sm:$0xff]
  %v148 = vld [vmem:[%s1 + $0x380] sm:$0xff]
  %v149 = vld [vmem:[%s1 + $0x388] sm:$0xff]
  %v150 = vld [vmem:[%s1 + $0x390] sm:$0xff]
  %v151 = vld [vmem:[%s1 + $0x398] sm:$0xff]
  %v152 = vld [vmem:[%s1 + $0x3a0] sm:$0xff]
  %v153 = vld [vmem:[%s1 + $0x3a8] sm:$0xff]
  %v154 = vld [vmem:[%s1 + $0x3b0] sm:$0xff]
  %v155 = vld [vmem:[%s1 + $0x3b8] sm:$0xff]
  %v156 = vld [vmem:[%s1 + $0x3c0] sm:$0xff]
  %v157 = vld [vmem:[%s1 + $0x3c8] sm:$0xff]
  %v158 = vld [vmem:[%s1 + $0x3d0] sm:$0xff]
  %v159 = vld [vmem:[%s1 + $0x3d8] sm:$0xff]
  %v160 = vld [vmem:[%s1 + $0x3e0] sm:$0xff]
  %v161 = vld [vmem:[%s1 + $0x3e8] sm:$0xff]
  %v162 = vld [vmem:[%s1 + $0x3f0] sm:$0xff]
  %v163 = vld [vmem:[%s1 + $0x3f8] sm:$0xff]
  %v164 = vld [vmem:[%s1 + $0x400] sm:$0xff]
  %v165 = vld [vmem:[%s1 + $0x408] sm:$0xff]
  %v166 = vld [vmem:[%s1 + $0x410] sm:$0xff]
  %v167 = vld [vmem:[%s1 + $0x418] sm:$0xff]
  %v168 = vld [vmem:[%s1 + $0x420] sm:$0xff]
  %v169 = vld [vmem:[%s1 + $0x428] sm:$0xff]
  %v170 = vld [vmem:[%s1 + $0x430] sm:$0xff]
  %v171 = vld [vmem:[%s1 + $0x438] sm:$0xff]
  %v172 = vld [vmem:[%s1 + $0x440] sm:$0xff]
  %v173 = vld [vmem:[%s1 + $0x448] sm:$0xff]
  %v174 = vld [vmem:[%s1 + $0x450] sm:$0xff]
  %v175 = vld [vmem:[%s1 + $0x458] sm:$0xff]
  %v176 = vld [vmem:[%s1 + $0x460] sm:$0xff]
  %v177 = vld [vmem:[%s1 + $0x468] sm:$0xff]
  %v178 = vld [vmem:[%s1 + $0x470] sm:$0xff]
  %v179 = vld [vmem:[%s1 + $0x478] sm:$0xff]
  %v180 = vld [vmem:[%s1 + $0x480] sm:$0xff]
  %v181 = vld [vmem:[%s1 + $0x488] sm:$0xff]
  %v182 = vld [vmem:[%s1 + $0x490] sm:$0xff]
  %v183 = vld [vmem:[%s1 + $0x498] sm:$0xff]
  %v184 = vld [vmem:[%s1 + $0x4a0] sm:$0xff]
  %v185 = vld [vmem:[%s1 + $0x4a8] sm:$0xff]
  %v186 = vld [vmem:[%s1 + $0x4b0] sm:$0xff]
  %v187 = vld [vmem:[%s1 + $0x4b8] sm:$0xff]
  %v188 = vld [vmem:[%s1 + $0x4c0] sm:$0xff]
  %v189 = vld [vmem:[%s1 + $0x4c8] sm:$0xff]
  %v190 = vld [vmem:[%s1 + $0x4d0] sm:$0xff]
  %v191 = vld [vmem:[%s1 + $0x4d8] sm:$0xff]
  %v192 = vld [vmem:[%s1 + $0x4e0] sm:$0xff]
  %v193 = vld [vmem:[%s1 + $0x4e8] sm:$0xff]
  %v194 = vld [vmem:[%s1 + $0x4f0] sm:$0xff]
  %v195 = vld [vmem:[%s1 + $0x4f8] sm:$0xff]
  %v196 = vld [vmem:[%s1 + $0x500] sm:$0xff]
  %v197 = vld [vmem:[%s1 + $0x508] sm:$0xff]
  %v198 = vld [vmem:[%s1 + $0x510] sm:$0xff]
  %v199 = vld [vmem:[%s1 + $0x518] sm:$0xff]
  %v200 = vld [vmem:[%s1 + $0x520] sm:$0xff]
  %v201 = vld [vmem:[%s1 + $0x528] sm:$0xff]
  %v202 = vld [vmem:[%s1 + $0x530] sm:$0xff]
  %v203 = vld [vmem:[%s1 + $0x538] sm:$0xff]
  %v204 = vld [vmem:[%s1 + $0x540] sm:$0xff]
  %v205 = vld [vmem:[%s1 + $0x548] sm:$0xff]
  %v206 = vld [vmem:[%s1 + $0x550] sm:$0xff]
  %v207 = vld [vmem:[%s1 + $0x558] sm:$0xff]
  %v208 = vld [vmem:[%s1 + $0x560] sm:$0xff]
  %v209 = vld [vmem:[%s1 + $0x568] sm:$0xff]
  %v210 = vld [vmem:[%s1 + $0x570] sm:$0xff]
  %v211 = vld [vmem:[%s1 + $0x578] sm:$0xff]
  %v212 = vld [vmem:[%s1 + $0x580] sm:$0xff]
  %v213 = vld [vmem:[%s1 + $0x588] sm:$0xff]
  %v214 = vld [vmem:[%s1 + $0x590] sm:$0xff]
  %v215 = vld [vmem:[%s1 + $0x598] sm:$0xff]
  %v216 = vld [vmem:[%s1 + $0x5a0] sm:$0xff]
  %v217 = vld [vmem:[%s1 + $0x5a8] sm:$0xff]
  %v218 = vld [vmem:[%s1 + $0x5b0] sm:$0xff]
  %v219 = vld [vmem:[%s1 + $0x5b8] sm:$0xff]
  %v220 = vld [vmem:[%s1 + $0x5c0] sm:$0xff]
  %v221 = vld [vmem:[%s1 + $0x5c8] sm:$0xff]
  %v222 = vld [vmem:[%s1 + $0x5d0] sm:$0xff]
  %v223 = vld [vmem:[%s1 + $0x5d8] sm:$0xff]
  %v224 = vld [vmem:[%s1 + $0x5e0] sm:$0xff]
  %v225 = vld [vmem:[%s1 + $0x5e8] sm:$0xff]
  %v226 = vld [vmem:[%s1 + $0x5f0] sm:$0xff]
  %v227 = vld [vmem:[%s1 + $0x5f8] sm:$0xff]
  %v228 = vld [vmem:[%s1 + $0x600] sm:$0xff]
  %v229 = vld [vmem:[%s1 + $0x608] sm:$0xff]
  %v230 = vld [vmem:[%s1 + $0x610] sm:$0xff]
  %v231 = vld [vmem:[%s1 + $0x618] sm:$0xff]
  %v232 = vld [vmem:[%s1 + $0x620] sm:$0xff]
  %v233 = vld [vmem:[%s1 + $0x628] sm:$0xff]
  %v234 = vld [vmem:[%s1 + $0x630] sm:$0xff]
  %v235 = vld [vmem:[%s1 + $0x638] sm:$0xff]
  %v236 = vld [vmem:[%s1 + $0x640] sm:$0xff]
  %v237 = vld [vmem:[%s1 + $0x648] sm:$0xff]
  %v238 = vld [vmem:[%s1 + $0x650] sm:$0xff]
  %v239 = vld [vmem:[%s1 + $0x658] sm:$0xff]
  %v240 = vld [vmem:[%s1 + $0x660] sm:$0xff]
  %v241 = vld [vmem:[%s1 + $0x668] sm:$0xff]
  %v242 = vld [vmem:[%s1 + $0x670] sm:$0xff]
  %v243 = vld [vmem:[%s1 + $0x678] sm:$0xff]
  %v244 = vld [vmem:[%s2] sm:$0x3]
  %v246 = vlaneseq
  %v247 = vshrl.u32 %v246, 7
  %v248 = vsub.s32 0, %v247
  %v249 = vrot.slane %v244, %v248
  %v250 = vlaneseq
  %v251 = vshrl.u32 %v250, 7
  %v252 = vsub.s32 1, %v251
  %v253 = vrot.slane %v244, %v252
  %v277 = vunpack.c.l.b16 %v15
  %v278 = vunpack.c.h.b16 %v15
  %v279 = vunpack.c.l.b16 %v16
  %v280 = vunpack.c.h.b16 %v16
  %v281 = vunpack.c.l.b16 %v17
  %v282 = vunpack.c.h.b16 %v17
  %v283 = vunpack.c.l.b16 %v18
  %v284 = vunpack.c.h.b16 %v18
  %v285 = vunpack.c.l.b16 %v19
  %v286 = vunpack.c.h.b16 %v19
  %v287 = vunpack.c.l.b16 %v20
  %v288 = vunpack.c.h.b16 %v20
  %v289 = vunpack.c.l.b16 %v21
  %v290 = vunpack.c.l.b16 %v22
  %v291 = vunpack.c.h.b16 %v22
  %v292 = vunpack.c.l.b16 %v23
  %v293 = vunpack.c.h.b16 %v23
  %v294 = vunpack.c.l.b16 %v24
  %v295 = vunpack.c.h.b16 %v24
  %v296 = vunpack.c.l.b16 %v25
  %v297 = vunpack.c.h.b16 %v25
  %v298 = vunpack.c.l.b16 %v26
  %v299 = vunpack.c.h.b16 %v26
  %v300 = vunpack.c.l.b16 %v27
  %v301 = vunpack.c.h.b16 %v27
  %v302 = vunpack.c.l.b16 %v28
  %v303 = vunpack.c.l.b16 %v29
  %v304 = vunpack.c.h.b16 %v29
  %v305 = vunpack.c.l.b16 %v30
  %v306 = vunpack.c.h.b16 %v30
  %v307 = vunpack.c.l.b16 %v31
  %v308 = vunpack.c.h.b16 %v31
  %v309 = vunpack.c.l.b16 %v32
  %v310 = vunpack.c.h.b16 %v32
  %v311 = vunpack.c.l.b16 %v33
  %v312 = vunpack.c.h.b16 %v33
  %v313 = vunpack.c.l.b16 %v34
  %v314 = vunpack.c.h.b16 %v34
  %v315 = vunpack.c.l.b16 %v35
  %v316 = vpack.c.b16 %v290, %v277
  %v317 = vpack.c.b16 %v291, %v278
  %v318 = vpack.c.b16 %v292, %v279
  %v319 = vpack.c.b16 %v293, %v280
  %v320 = vpack.c.b16 %v294, %v281
  %v321 = vpack.c.b16 %v295, %v282
  %v322 = vpack.c.b16 %v296, %v283
  %v323 = vpack.c.b16 %v297, %v284
  %v324 = vpack.c.b16 %v298, %v285
  %v325 = vpack.c.b16 %v299, %v286
  %v326 = vpack.c.b16 %v300, %v287
  %v327 = vpack.c.b16 %v301, %v288
  %v328 = vpack.c.b16 %v302, %v289
  %v329 = vpack.c.b16 %v303, %v303
  %v330 = vpack.c.b16 %v304, %v304
  %v331 = vpack.c.b16 %v305, %v305
  %v332 = vpack.c.b16 %v306, %v306
  %v333 = vpack.c.b16 %v307, %v307
  %v334 = vpack.c.b16 %v308, %v308
  %v335 = vpack.c.b16 %v309, %v309
  %v336 = vpack.c.b16 %v310, %v310
  %v337 = vpack.c.b16 %v311, %v311
  %v338 = vpack.c.b16 %v312, %v312
  %v339 = vpack.c.b16 %v313, %v313
  %v340 = vpack.c.b16 %v314, %v314
  %v341 = vpack.c.b16 %v315, %v315
  %v576 = vunpack.c.l.b16 %v36
  %v577 = vunpack.c.h.b16 %v36
  %v578 = vunpack.c.l.b16 %v37
  %v579 = vunpack.c.h.b16 %v37
  %v580 = vunpack.c.l.b16 %v38
  %v581 = vunpack.c.h.b16 %v38
  %v582 = vunpack.c.l.b16 %v39
  %v583 = vunpack.c.h.b16 %v39
  %v584 = vunpack.c.l.b16 %v40
  %v585 = vunpack.c.h.b16 %v40
  %v586 = vunpack.c.l.b16 %v41
  %v587 = vunpack.c.h.b16 %v41
  %v588 = vunpack.c.l.b16 %v42
  %v589 = vunpack.c.h.b16 %v42
  %v590 = vunpack.c.l.b16 %v43
  %v591 = vunpack.c.h.b16 %v43
  %v592 = vunpack.c.l.b16 %v44
  %v593 = vunpack.c.h.b16 %v44
  %v594 = vunpack.c.l.b16 %v45
  %v595 = vunpack.c.h.b16 %v45
  %v596 = vunpack.c.l.b16 %v46
  %v597 = vunpack.c.h.b16 %v46
  %v598 = vunpack.c.l.b16 %v47
  %v599 = vunpack.c.h.b16 %v47
  %v600 = vunpack.c.l.b16 %v48
  %v601 = vunpack.c.h.b16 %v48
  %v602 = vunpack.c.l.b16 %v49
  %v603 = vunpack.c.h.b16 %v49
  %v604 = vunpack.c.l.b16 %v50
  %v605 = vunpack.c.h.b16 %v50
  %v606 = vunpack.c.l.b16 %v51
  %v607 = vunpack.c.h.b16 %v51
  %v608 = vunpack.c.l.b16 %v52
  %v609 = vunpack.c.h.b16 %v52
  %v610 = vunpack.c.l.b16 %v53
  %v611 = vunpack.c.h.b16 %v53
  %v612 = vunpack.c.l.b16 %v54
  %v613 = vunpack.c.h.b16 %v54
  %v614 = vunpack.c.l.b16 %v55
  %v615 = vunpack.c.h.b16 %v55
  %v616 = vunpack.c.l.b16 %v56
  %v617 = vunpack.c.h.b16 %v56
  %v618 = vunpack.c.l.b16 %v57
  %v619 = vunpack.c.h.b16 %v57
  %v620 = vunpack.c.l.b16 %v58
  %v621 = vunpack.c.h.b16 %v58
  %v622 = vunpack.c.l.b16 %v59
  %v623 = vunpack.c.h.b16 %v59
  %v624 = vunpack.c.l.b16 %v60
  %v625 = vunpack.c.h.b16 %v60
  %v626 = vunpack.c.l.b16 %v61
  %v627 = vunpack.c.h.b16 %v61
  %v628 = vunpack.c.l.b16 %v62
  %v629 = vunpack.c.h.b16 %v62
  %v630 = vunpack.c.l.b16 %v63
  %v631 = vunpack.c.h.b16 %v63
  %v632 = vunpack.c.l.b16 %v64
  %v633 = vunpack.c.h.b16 %v64
  %v634 = vunpack.c.l.b16 %v65
  %v635 = vunpack.c.h.b16 %v65
  %v636 = vunpack.c.l.b16 %v66
  %v637 = vunpack.c.h.b16 %v66
  %v638 = vunpack.c.l.b16 %v67
  %v639 = vunpack.c.h.b16 %v67
  %v640 = vunpack.c.l.b16 %v68
  %v641 = vunpack.c.h.b16 %v68
  %v642 = vunpack.c.l.b16 %v69
  %v643 = vunpack.c.h.b16 %v69
  %v644 = vunpack.c.l.b16 %v70
  %v645 = vunpack.c.h.b16 %v70
  %v646 = vunpack.c.l.b16 %v71
  %v647 = vunpack.c.h.b16 %v71
  %v648 = vunpack.c.l.b16 %v72
  %v649 = vunpack.c.h.b16 %v72
  %v650 = vunpack.c.l.b16 %v73
  %v651 = vunpack.c.h.b16 %v73
  %v652 = vunpack.c.l.b16 %v74
  %v653 = vunpack.c.h.b16 %v74
  %v654 = vunpack.c.l.b16 %v75
  %v655 = vunpack.c.h.b16 %v75
  %v656 = vunpack.c.l.b16 %v76
  %v657 = vunpack.c.h.b16 %v76
  %v658 = vunpack.c.l.b16 %v77
  %v659 = vunpack.c.h.b16 %v77
  %v660 = vunpack.c.l.b16 %v78
  %v661 = vunpack.c.h.b16 %v78
  %v662 = vunpack.c.l.b16 %v79
  %v663 = vunpack.c.h.b16 %v79
  %v664 = vunpack.c.l.b16 %v80
  %v665 = vunpack.c.h.b16 %v80
  %v666 = vunpack.c.l.b16 %v81
  %v667 = vunpack.c.h.b16 %v81
  %v668 = vunpack.c.l.b16 %v82
  %v669 = vunpack.c.h.b16 %v82
  %v670 = vunpack.c.l.b16 %v83
  %v671 = vunpack.c.h.b16 %v83
  %v672 = vunpack.c.l.b16 %v84
  %v673 = vunpack.c.h.b16 %v84
  %v674 = vunpack.c.l.b16 %v85
  %v675 = vunpack.c.h.b16 %v85
  %v676 = vunpack.c.l.b16 %v86
  %v677 = vunpack.c.h.b16 %v86
  %v678 = vunpack.c.l.b16 %v87
  %v679 = vunpack.c.h.b16 %v87
  %v680 = vunpack.c.l.b16 %v88
  %v681 = vunpack.c.h.b16 %v88
  %v682 = vunpack.c.l.b16 %v89
  %v683 = vunpack.c.h.b16 %v89
  %v684 = vunpack.c.l.b16 %v90
  %v685 = vunpack.c.h.b16 %v90
  %v686 = vunpack.c.l.b16 %v91
  %v687 = vunpack.c.h.b16 %v91
  %v688 = vunpack.c.l.b16 %v92
  %v689 = vunpack.c.h.b16 %v92
  %v690 = vunpack.c.l.b16 %v93
  %v691 = vunpack.c.h.b16 %v93
  %v692 = vunpack.c.l.b16 %v94
  %v693 = vunpack.c.h.b16 %v94
  %v694 = vunpack.c.l.b16 %v95
  %v695 = vunpack.c.h.b16 %v95
  %v696 = vunpack.c.l.b16 %v96
  %v697 = vunpack.c.h.b16 %v96
  %v698 = vunpack.c.l.b16 %v97
  %v699 = vunpack.c.h.b16 %v97
  %v700 = vunpack.c.l.b16 %v98
  %v701 = vunpack.c.h.b16 %v98
  %v702 = vunpack.c.l.b16 %v99
  %v703 = vunpack.c.h.b16 %v99
  %v704 = vunpack.c.l.b16 %v100
  %v705 = vunpack.c.h.b16 %v100
  %v706 = vunpack.c.l.b16 %v101
  %v707 = vunpack.c.h.b16 %v101
  %v708 = vunpack.c.l.b16 %v102
  %v709 = vunpack.c.h.b16 %v102
  %v710 = vunpack.c.l.b16 %v103
  %v711 = vunpack.c.h.b16 %v103
  %v712 = vunpack.c.l.b16 %v104
  %v713 = vunpack.c.h.b16 %v104
  %v714 = vunpack.c.l.b16 %v105
  %v715 = vunpack.c.h.b16 %v105
  %v716 = vunpack.c.l.b16 %v106
  %v717 = vunpack.c.h.b16 %v106
  %v718 = vunpack.c.l.b16 %v107
  %v719 = vunpack.c.h.b16 %v107
  %v720 = vunpack.c.l.b16 %v108
  %v721 = vunpack.c.h.b16 %v108
  %v722 = vunpack.c.l.b16 %v109
  %v723 = vunpack.c.h.b16 %v109
  %v724 = vunpack.c.l.b16 %v110
  %v725 = vunpack.c.h.b16 %v110
  %v726 = vunpack.c.l.b16 %v111
  %v727 = vunpack.c.h.b16 %v111
  %v728 = vunpack.c.l.b16 %v112
  %v729 = vunpack.c.h.b16 %v112
  %v730 = vunpack.c.l.b16 %v113
  %v731 = vunpack.c.h.b16 %v113
  %v732 = vunpack.c.l.b16 %v114
  %v733 = vunpack.c.h.b16 %v114
  %v734 = vunpack.c.l.b16 %v115
  %v735 = vunpack.c.h.b16 %v115
  %v736 = vunpack.c.l.b16 %v116
  %v737 = vunpack.c.h.b16 %v116
  %v738 = vunpack.c.l.b16 %v117
  %v739 = vunpack.c.h.b16 %v117
  %v740 = vunpack.c.l.b16 %v118
  %v741 = vunpack.c.h.b16 %v118
  %v742 = vunpack.c.l.b16 %v119
  %v743 = vunpack.c.h.b16 %v119
  %v744 = vunpack.c.l.b16 %v120
  %v745 = vunpack.c.h.b16 %v120
  %v746 = vunpack.c.l.b16 %v121
  %v747 = vunpack.c.h.b16 %v121
  %v748 = vunpack.c.l.b16 %v122
  %v749 = vunpack.c.h.b16 %v122
  %v750 = vunpack.c.l.b16 %v123
  %v751 = vunpack.c.h.b16 %v123
  %v752 = vunpack.c.l.b16 %v124
  %v753 = vunpack.c.h.b16 %v124
  %v754 = vunpack.c.l.b16 %v125
  %v755 = vunpack.c.h.b16 %v125
  %v756 = vunpack.c.l.b16 %v126
  %v757 = vunpack.c.h.b16 %v126
  %v758 = vunpack.c.l.b16 %v127
  %v759 = vunpack.c.h.b16 %v127
  %v760 = vunpack.c.l.b16 %v128
  %v761 = vunpack.c.h.b16 %v128
  %v762 = vunpack.c.l.b16 %v129
  %v763 = vunpack.c.h.b16 %v129
  %v764 = vunpack.c.l.b16 %v130
  %v765 = vunpack.c.h.b16 %v130
  %v766 = vunpack.c.l.b16 %v131
  %v767 = vunpack.c.h.b16 %v131
  %v768 = vunpack.c.l.b16 %v132
  %v769 = vunpack.c.h.b16 %v132
  %v770 = vunpack.c.l.b16 %v133
  %v771 = vunpack.c.h.b16 %v133
  %v772 = vunpack.c.l.b16 %v134
  %v773 = vunpack.c.h.b16 %v134
  %v774 = vunpack.c.l.b16 %v135
  %v775 = vunpack.c.h.b16 %v135
  %v776 = vunpack.c.l.b16 %v136
  %v777 = vunpack.c.h.b16 %v136
  %v778 = vunpack.c.l.b16 %v137
  %v779 = vunpack.c.h.b16 %v137
  %v780 = vunpack.c.l.b16 %v138
  %v781 = vunpack.c.h.b16 %v138
  %v782 = vunpack.c.l.b16 %v139
  %v783 = vunpack.c.h.b16 %v139
  %v784 = vunpack.c.l.b16 %v140
  %v785 = vunpack.c.h.b16 %v140
  %v786 = vunpack.c.l.b16 %v141
  %v787 = vunpack.c.h.b16 %v141
  %v788 = vunpack.c.l.b16 %v142
  %v789 = vunpack.c.h.b16 %v142
  %v790 = vunpack.c.l.b16 %v143
  %v791 = vunpack.c.h.b16 %v143
  %v792 = vunpack.c.l.b16 %v144
  %v793 = vunpack.c.h.b16 %v144
  %v794 = vunpack.c.l.b16 %v145
  %v795 = vunpack.c.h.b16 %v145
  %v796 = vunpack.c.l.b16 %v146
  %v797 = vunpack.c.h.b16 %v146
  %v798 = vunpack.c.l.b16 %v147
  %v799 = vunpack.c.h.b16 %v147
  %v800 = vunpack.c.l.b16 %v148
  %v801 = vunpack.c.h.b16 %v148
  %v802 = vunpack.c.l.b16 %v149
  %v803 = vunpack.c.h.b16 %v149
  %v804 = vunpack.c.l.b16 %v150
  %v805 = vunpack.c.h.b16 %v150
  %v806 = vunpack.c.l.b16 %v151
  %v807 = vunpack.c.h.b16 %v151
  %v808 = vunpack.c.l.b16 %v152
  %v809 = vunpack.c.h.b16 %v152
  %v810 = vunpack.c.l.b16 %v153
  %v811 = vunpack.c.h.b16 %v153
  %v812 = vunpack.c.l.b16 %v154
  %v813 = vunpack.c.h.b16 %v154
  %v814 = vunpack.c.l.b16 %v155
  %v815 = vunpack.c.h.b16 %v155
  %v816 = vunpack.c.l.b16 %v156
  %v817 = vunpack.c.h.b16 %v156
  %v818 = vunpack.c.l.b16 %v157
  %v819 = vunpack.c.h.b16 %v157
  %v820 = vunpack.c.l.b16 %v158
  %v821 = vunpack.c.h.b16 %v158
  %v822 = vunpack.c.l.b16 %v159
  %v823 = vunpack.c.h.b16 %v159
  %v824 = vunpack.c.l.b16 %v160
  %v825 = vunpack.c.h.b16 %v160
  %v826 = vunpack.c.l.b16 %v161
  %v827 = vunpack.c.h.b16 %v161
  %v828 = vunpack.c.l.b16 %v162
  %v829 = vunpack.c.h.b16 %v162
  %v830 = vunpack.c.l.b16 %v163
  %v831 = vunpack.c.h.b16 %v163
  %v832 = vunpack.c.l.b16 %v164
  %v833 = vunpack.c.h.b16 %v164
  %v834 = vunpack.c.l.b16 %v165
  %v835 = vunpack.c.h.b16 %v165
  %v836 = vunpack.c.l.b16 %v166
  %v837 = vunpack.c.h.b16 %v166
  %v838 = vunpack.c.l.b16 %v167
  %v839 = vunpack.c.h.b16 %v167
  %v840 = vunpack.c.l.b16 %v168
  %v841 = vunpack.c.h.b16 %v168
  %v842 = vunpack.c.l.b16 %v169
  %v843 = vunpack.c.h.b16 %v169
  %v844 = vunpack.c.l.b16 %v170
  %v845 = vunpack.c.h.b16 %v170
  %v846 = vunpack.c.l.b16 %v171
  %v847 = vunpack.c.h.b16 %v171
  %v848 = vunpack.c.l.b16 %v172
  %v849 = vunpack.c.h.b16 %v172
  %v850 = vunpack.c.l.b16 %v173
  %v851 = vunpack.c.h.b16 %v173
  %v852 = vunpack.c.l.b16 %v174
  %v853 = vunpack.c.h.b16 %v174
  %v854 = vunpack.c.l.b16 %v175
  %v855 = vunpack.c.h.b16 %v175
  %v856 = vunpack.c.l.b16 %v176
  %v857 = vunpack.c.h.b16 %v176
  %v858 = vunpack.c.l.b16 %v177
  %v859 = vunpack.c.h.b16 %v177
  %v860 = vunpack.c.l.b16 %v178
  %v861 = vunpack.c.h.b16 %v178
  %v862 = vunpack.c.l.b16 %v179
  %v863 = vunpack.c.h.b16 %v179
  %v864 = vunpack.c.l.b16 %v180
  %v865 = vunpack.c.h.b16 %v180
  %v866 = vunpack.c.l.b16 %v181
  %v867 = vunpack.c.h.b16 %v181
  %v868 = vunpack.c.l.b16 %v182
  %v869 = vunpack.c.h.b16 %v182
  %v870 = vunpack.c.l.b16 %v183
  %v871 = vunpack.c.h.b16 %v183
  %v872 = vunpack.c.l.b16 %v184
  %v873 = vunpack.c.h.b16 %v184
  %v874 = vunpack.c.l.b16 %v185
  %v875 = vunpack.c.h.b16 %v185
  %v876 = vunpack.c.l.b16 %v186
  %v877 = vunpack.c.h.b16 %v186
  %v878 = vunpack.c.l.b16 %v187
  %v879 = vunpack.c.h.b16 %v187
  %v880 = vunpack.c.l.b16 %v188
  %v881 = vunpack.c.h.b16 %v188
  %v882 = vunpack.c.l.b16 %v189
  %v883 = vunpack.c.h.b16 %v189
  %v884 = vunpack.c.l.b16 %v190
  %v885 = vunpack.c.h.b16 %v190
  %v886 = vunpack.c.l.b16 %v191
  %v887 = vunpack.c.h.b16 %v191
  %v888 = vunpack.c.l.b16 %v192
  %v889 = vunpack.c.h.b16 %v192
  %v890 = vunpack.c.l.b16 %v193
  %v891 = vunpack.c.h.b16 %v193
  %v892 = vunpack.c.l.b16 %v194
  %v893 = vunpack.c.h.b16 %v194
  %v894 = vunpack.c.l.b16 %v195
  %v895 = vunpack.c.h.b16 %v195
  %v896 = vunpack.c.l.b16 %v196
  %v897 = vunpack.c.h.b16 %v196
  %v898 = vunpack.c.l.b16 %v197
  %v899 = vunpack.c.h.b16 %v197
  %v900 = vunpack.c.l.b16 %v198
  %v901 = vunpack.c.h.b16 %v198
  %v902 = vunpack.c.l.b16 %v199
  %v903 = vunpack.c.h.b16 %v199
  %v904 = vunpack.c.l.b16 %v200
  %v905 = vunpack.c.h.b16 %v200
  %v906 = vunpack.c.l.b16 %v201
  %v907 = vunpack.c.h.b16 %v201
  %v908 = vunpack.c.l.b16 %v202
  %v909 = vunpack.c.h.b16 %v202
  %v910 = vunpack.c.l.b16 %v203
  %v911 = vunpack.c.h.b16 %v203
  %v912 = vunpack.c.l.b16 %v204
  %v913 = vunpack.c.h.b16 %v204
  %v914 = vunpack.c.l.b16 %v205
  %v915 = vunpack.c.h.b16 %v205
  %v916 = vunpack.c.l.b16 %v206
  %v917 = vunpack.c.h.b16 %v206
  %v918 = vunpack.c.l.b16 %v207
  %v919 = vunpack.c.h.b16 %v207
  %v920 = vunpack.c.l.b16 %v208
  %v921 = vunpack.c.h.b16 %v208
  %v922 = vunpack.c.l.b16 %v209
  %v923 = vunpack.c.h.b16 %v209
  %v924 = vunpack.c.l.b16 %v210
  %v925 = vunpack.c.h.b16 %v210
  %v926 = vunpack.c.l.b16 %v211
  %v927 = vunpack.c.h.b16 %v211
  %v928 = vunpack.c.l.b16 %v212
  %v929 = vunpack.c.h.b16 %v212
  %v930 = vunpack.c.l.b16 %v213
  %v931 = vunpack.c.h.b16 %v213
  %v932 = vunpack.c.l.b16 %v214
  %v933 = vunpack.c.h.b16 %v214
  %v934 = vunpack.c.l.b16 %v215
  %v935 = vunpack.c.h.b16 %v215
  %v936 = vunpack.c.l.b16 %v216
  %v937 = vunpack.c.h.b16 %v216
  %v938 = vunpack.c.l.b16 %v217
  %v939 = vunpack.c.h.b16 %v217
  %v940 = vunpack.c.l.b16 %v218
  %v941 = vunpack.c.h.b16 %v218
  %v942 = vunpack.c.l.b16 %v219
  %v943 = vunpack.c.h.b16 %v219
  %v944 = vunpack.c.l.b16 %v220
  %v945 = vunpack.c.h.b16 %v220
  %v946 = vunpack.c.l.b16 %v221
  %v947 = vunpack.c.h.b16 %v221
  %v948 = vunpack.c.l.b16 %v222
  %v949 = vunpack.c.h.b16 %v222
  %v950 = vunpack.c.l.b16 %v223
  %v951 = vunpack.c.h.b16 %v223
  %v952 = vunpack.c.l.b16 %v224
  %v953 = vunpack.c.h.b16 %v224
  %v954 = vunpack.c.l.b16 %v225
  %v955 = vunpack.c.h.b16 %v225
  %v956 = vunpack.c.l.b16 %v226
  %v957 = vunpack.c.h.b16 %v226
  %v958 = vunpack.c.l.b16 %v227
  %v959 = vunpack.c.h.b16 %v227
  %v960 = vunpack.c.l.b16 %v228
  %v961 = vunpack.c.h.b16 %v228
  %v962 = vunpack.c.l.b16 %v229
  %v963 = vunpack.c.h.b16 %v229
  %v964 = vunpack.c.l.b16 %v230
  %v965 = vunpack.c.h.b16 %v230
  %v966 = vunpack.c.l.b16 %v231
  %v967 = vunpack.c.h.b16 %v231
  %v968 = vunpack.c.l.b16 %v232
  %v969 = vunpack.c.h.b16 %v232
  %v970 = vunpack.c.l.b16 %v233
  %v971 = vunpack.c.h.b16 %v233
  %v972 = vunpack.c.l.b16 %v234
  %v973 = vunpack.c.h.b16 %v234
  %v974 = vunpack.c.l.b16 %v235
  %v975 = vunpack.c.h.b16 %v235
  %v976 = vunpack.c.l.b16 %v236
  %v977 = vunpack.c.h.b16 %v236
  %v978 = vunpack.c.l.b16 %v237
  %v979 = vunpack.c.h.b16 %v237
  %v980 = vunpack.c.l.b16 %v238
  %v981 = vunpack.c.h.b16 %v238
  %v982 = vunpack.c.l.b16 %v239
  %v983 = vunpack.c.h.b16 %v239
  %v984 = vunpack.c.l.b16 %v240
  %v985 = vunpack.c.h.b16 %v240
  %v986 = vunpack.c.l.b16 %v241
  %v987 = vunpack.c.h.b16 %v241
  %v988 = vunpack.c.l.b16 %v242
  %v989 = vunpack.c.h.b16 %v242
  %v990 = vunpack.c.l.b16 %v243
  %v991 = vunpack.c.h.b16 %v243
  %v992 = vpack.c.b16 %v578, %v576
  %v993 = vpack.c.b16 %v579, %v577
  %v994 = vpack.c.b16 %v582, %v580
  %v995 = vpack.c.b16 %v583, %v581
  %v996 = vpack.c.b16 %v586, %v584
  %v997 = vpack.c.b16 %v587, %v585
  %v998 = vpack.c.b16 %v590, %v588
  %v999 = vpack.c.b16 %v591, %v589
  %v1000 = vpack.c.b16 %v594, %v592
  %v1001 = vpack.c.b16 %v595, %v593
  %v1002 = vpack.c.b16 %v598, %v596
  %v1003 = vpack.c.b16 %v599, %v597
  %v1004 = vpack.c.b16 %v602, %v600
  %v1005 = vpack.c.b16 %v603, %v601
  %v1006 = vpack.c.b16 %v606, %v604
  %v1007 = vpack.c.b16 %v607, %v605
  %v1008 = vpack.c.b16 %v610, %v608
  %v1009 = vpack.c.b16 %v611, %v609
  %v1010 = vpack.c.b16 %v614, %v612
  %v1011 = vpack.c.b16 %v615, %v613
  %v1012 = vpack.c.b16 %v618, %v616
  %v1013 = vpack.c.b16 %v619, %v617
  %v1014 = vpack.c.b16 %v622, %v620
  %v1015 = vpack.c.b16 %v623, %v621
  %v1016 = vpack.c.b16 %v626, %v624
  %v1017 = vpack.c.b16 %v627, %v625
  %v1018 = vpack.c.b16 %v630, %v628
  %v1019 = vpack.c.b16 %v631, %v629
  %v1020 = vpack.c.b16 %v634, %v632
  %v1021 = vpack.c.b16 %v635, %v633
  %v1022 = vpack.c.b16 %v638, %v636
  %v1023 = vpack.c.b16 %v639, %v637
  %v1024 = vpack.c.b16 %v642, %v640
  %v1025 = vpack.c.b16 %v643, %v641
  %v1026 = vpack.c.b16 %v646, %v644
  %v1027 = vpack.c.b16 %v647, %v645
  %v1028 = vpack.c.b16 %v650, %v648
  %v1029 = vpack.c.b16 %v651, %v649
  %v1030 = vpack.c.b16 %v654, %v652
  %v1031 = vpack.c.b16 %v655, %v653
  %v1032 = vpack.c.b16 %v658, %v656
  %v1033 = vpack.c.b16 %v659, %v657
  %v1034 = vpack.c.b16 %v662, %v660
  %v1035 = vpack.c.b16 %v663, %v661
  %v1036 = vpack.c.b16 %v666, %v664
  %v1037 = vpack.c.b16 %v667, %v665
  %v1038 = vpack.c.b16 %v670, %v668
  %v1039 = vpack.c.b16 %v671, %v669
  %v1040 = vpack.c.b16 %v674, %v672
  %v1041 = vpack.c.b16 %v675, %v673
  %v1042 = vpack.c.b16 %v678, %v676
  %v1043 = vpack.c.b16 %v679, %v677
  %v1044 = vpack.c.b16 %v682, %v680
  %v1045 = vpack.c.b16 %v683, %v681
  %v1046 = vpack.c.b16 %v686, %v684
  %v1047 = vpack.c.b16 %v687, %v685
  %v1048 = vpack.c.b16 %v690, %v688
  %v1049 = vpack.c.b16 %v691, %v689
  %v1050 = vpack.c.b16 %v694, %v692
  %v1051 = vpack.c.b16 %v695, %v693
  %v1052 = vpack.c.b16 %v698, %v696
  %v1053 = vpack.c.b16 %v699, %v697
  %v1054 = vpack.c.b16 %v702, %v700
  %v1055 = vpack.c.b16 %v703, %v701
  %v1056 = vpack.c.b16 %v706, %v704
  %v1057 = vpack.c.b16 %v707, %v705
  %v1058 = vpack.c.b16 %v710, %v708
  %v1059 = vpack.c.b16 %v711, %v709
  %v1060 = vpack.c.b16 %v714, %v712
  %v1061 = vpack.c.b16 %v715, %v713
  %v1062 = vpack.c.b16 %v718, %v716
  %v1063 = vpack.c.b16 %v719, %v717
  %v1064 = vpack.c.b16 %v722, %v720
  %v1065 = vpack.c.b16 %v723, %v721
  %v1066 = vpack.c.b16 %v726, %v724
  %v1067 = vpack.c.b16 %v727, %v725
  %v1068 = vpack.c.b16 %v730, %v728
  %v1069 = vpack.c.b16 %v731, %v729
  %v1070 = vpack.c.b16 %v734, %v732
  %v1071 = vpack.c.b16 %v735, %v733
  %v1072 = vpack.c.b16 %v738, %v736
  %v1073 = vpack.c.b16 %v739, %v737
  %v1074 = vpack.c.b16 %v742, %v740
  %v1075 = vpack.c.b16 %v743, %v741
  %v1076 = vpack.c.b16 %v746, %v744
  %v1077 = vpack.c.b16 %v747, %v745
  %v1078 = vpack.c.b16 %v750, %v748
  %v1079 = vpack.c.b16 %v751, %v749
  %v1080 = vpack.c.b16 %v754, %v752
  %v1081 = vpack.c.b16 %v755, %v753
  %v1082 = vpack.c.b16 %v758, %v756
  %v1083 = vpack.c.b16 %v759, %v757
  %v1084 = vpack.c.b16 %v762, %v760
  %v1085 = vpack.c.b16 %v763, %v761
  %v1086 = vpack.c.b16 %v766, %v764
  %v1087 = vpack.c.b16 %v767, %v765
  %v1088 = vpack.c.b16 %v770, %v768
  %v1089 = vpack.c.b16 %v771, %v769
  %v1090 = vpack.c.b16 %v774, %v772
  %v1091 = vpack.c.b16 %v775, %v773
  %v1092 = vpack.c.b16 %v778, %v776
  %v1093 = vpack.c.b16 %v779, %v777
  %v1094 = vpack.c.b16 %v782, %v780
  %v1095 = vpack.c.b16 %v783, %v781
  %v1096 = vpack.c.b16 %v786, %v784
  %v1097 = vpack.c.b16 %v787, %v785
  %v1098 = vpack.c.b16 %v790, %v788
  %v1099 = vpack.c.b16 %v791, %v789
  %v1100 = vpack.c.b16 %v794, %v792
  %v1101 = vpack.c.b16 %v795, %v793
  %v1102 = vpack.c.b16 %v798, %v796
  %v1103 = vpack.c.b16 %v799, %v797
  %v1104 = vpack.c.b16 %v802, %v800
  %v1105 = vpack.c.b16 %v803, %v801
  %v1106 = vpack.c.b16 %v806, %v804
  %v1107 = vpack.c.b16 %v807, %v805
  %v1108 = vpack.c.b16 %v810, %v808
  %v1109 = vpack.c.b16 %v811, %v809
  %v1110 = vpack.c.b16 %v814, %v812
  %v1111 = vpack.c.b16 %v815, %v813
  %v1112 = vpack.c.b16 %v818, %v816
  %v1113 = vpack.c.b16 %v819, %v817
  %v1114 = vpack.c.b16 %v822, %v820
  %v1115 = vpack.c.b16 %v823, %v821
  %v1116 = vpack.c.b16 %v826, %v824
  %v1117 = vpack.c.b16 %v827, %v825
  %v1118 = vpack.c.b16 %v830, %v828
  %v1119 = vpack.c.b16 %v831, %v829
  %v1120 = vpack.c.b16 %v834, %v832
  %v1121 = vpack.c.b16 %v835, %v833
  %v1122 = vpack.c.b16 %v838, %v836
  %v1123 = vpack.c.b16 %v839, %v837
  %v1124 = vpack.c.b16 %v842, %v840
  %v1125 = vpack.c.b16 %v843, %v841
  %v1126 = vpack.c.b16 %v846, %v844
  %v1127 = vpack.c.b16 %v847, %v845
  %v1128 = vpack.c.b16 %v850, %v848
  %v1129 = vpack.c.b16 %v851, %v849
  %v1130 = vpack.c.b16 %v854, %v852
  %v1131 = vpack.c.b16 %v855, %v853
  %v1132 = vpack.c.b16 %v858, %v856
  %v1133 = vpack.c.b16 %v859, %v857
  %v1134 = vpack.c.b16 %v862, %v860
  %v1135 = vpack.c.b16 %v863, %v861
  %v1136 = vpack.c.b16 %v866, %v864
  %v1137 = vpack.c.b16 %v867, %v865
  %v1138 = vpack.c.b16 %v870, %v868
  %v1139 = vpack.c.b16 %v871, %v869
  %v1140 = vpack.c.b16 %v874, %v872
  %v1141 = vpack.c.b16 %v875, %v873
  %v1142 = vpack.c.b16 %v878, %v876
  %v1143 = vpack.c.b16 %v879, %v877
  %v1144 = vpack.c.b16 %v882, %v880
  %v1145 = vpack.c.b16 %v883, %v881
  %v1146 = vpack.c.b16 %v886, %v884
  %v1147 = vpack.c.b16 %v887, %v885
  %v1148 = vpack.c.b16 %v890, %v888
  %v1149 = vpack.c.b16 %v891, %v889
  %v1150 = vpack.c.b16 %v894, %v892
  %v1151 = vpack.c.b16 %v895, %v893
  %v1152 = vpack.c.b16 %v898, %v896
  %v1153 = vpack.c.b16 %v899, %v897
  %v1154 = vpack.c.b16 %v902, %v900
  %v1155 = vpack.c.b16 %v903, %v901
  %v1156 = vpack.c.b16 %v906, %v904
  %v1157 = vpack.c.b16 %v907, %v905
  %v1158 = vpack.c.b16 %v910, %v908
  %v1159 = vpack.c.b16 %v911, %v909
  %v1160 = vpack.c.b16 %v914, %v912
  %v1161 = vpack.c.b16 %v915, %v913
  %v1162 = vpack.c.b16 %v918, %v916
  %v1163 = vpack.c.b16 %v919, %v917
  %v1164 = vpack.c.b16 %v922, %v920
  %v1165 = vpack.c.b16 %v923, %v921
  %v1166 = vpack.c.b16 %v926, %v924
  %v1167 = vpack.c.b16 %v927, %v925
  %v1168 = vpack.c.b16 %v930, %v928
  %v1169 = vpack.c.b16 %v931, %v929
  %v1170 = vpack.c.b16 %v934, %v932
  %v1171 = vpack.c.b16 %v935, %v933
  %v1172 = vpack.c.b16 %v938, %v936
  %v1173 = vpack.c.b16 %v939, %v937
  %v1174 = vpack.c.b16 %v942, %v940
  %v1175 = vpack.c.b16 %v943, %v941
  %v1176 = vpack.c.b16 %v946, %v944
  %v1177 = vpack.c.b16 %v947, %v945
  %v1178 = vpack.c.b16 %v950, %v948
  %v1179 = vpack.c.b16 %v951, %v949
  %v1180 = vpack.c.b16 %v954, %v952
  %v1181 = vpack.c.b16 %v955, %v953
  %v1182 = vpack.c.b16 %v958, %v956
  %v1183 = vpack.c.b16 %v959, %v957
  %v1184 = vpack.c.b16 %v962, %v960
  %v1185 = vpack.c.b16 %v963, %v961
  %v1186 = vpack.c.b16 %v966, %v964
  %v1187 = vpack.c.b16 %v967, %v965
  %v1188 = vpack.c.b16 %v970, %v968
  %v1189 = vpack.c.b16 %v971, %v969
  %v1190 = vpack.c.b16 %v974, %v972
  %v1191 = vpack.c.b16 %v975, %v973
  %v1192 = vpack.c.b16 %v978, %v976
  %v1193 = vpack.c.b16 %v979, %v977
  %v1194 = vpack.c.b16 %v982, %v980
  %v1195 = vpack.c.b16 %v983, %v981
  %v1196 = vpack.c.b16 %v986, %v984
  %v1197 = vpack.c.b16 %v987, %v985
  %v1198 = vpack.c.b16 %v990, %v988
  %v1199 = vpack.c.b16 %v991, %v989
  %1408 = vmatprep.subr.bf16.mxu0 %v993
  %1409 = vmatpush1.bf16.msra.mxu0 %v992
  %1410 = vmatprep.subr.bf16.mxu0 %v995
  %1411 = vmatpush1.bf16.msra.mxu0 %v994
  %1412 = vmatprep.subr.bf16.mxu0 %v997
  %1413 = vmatpush1.bf16.msra.mxu0 %v996
  %1414 = vmatprep.subr.bf16.mxu0 %v999
  %1415 = vmatpush1.bf16.msra.mxu0 %v998
  %1416 = vmatprep.subr.bf16.mxu0 %v1001
  %1417 = vmatpush1.bf16.msra.mxu0 %v1000
  %1418 = vmatprep.subr.bf16.mxu0 %v1003
  %1419 = vmatpush1.bf16.msra.mxu0 %v1002
  %1420 = vmatprep.subr.bf16.mxu0 %v1005
  %1421 = vmatpush1.bf16.msra.mxu0 %v1004
  %1422 = vmatprep.subr.bf16.mxu0 %v1007
  %1423 = vmatpush1.bf16.msra.mxu0 %v1006
  %1424 = vmatprep.subr.bf16.mxu0 %v1009
  %1425 = vmatpush1.bf16.msra.mxu0 %v1008
  %1426 = vmatprep.subr.bf16.mxu0 %v1011
  %1427 = vmatpush1.bf16.msra.mxu0 %v1010
  %1428 = vmatprep.subr.bf16.mxu0 %v1013
  %1429 = vmatpush1.bf16.msra.mxu0 %v1012
  %1430 = vmatprep.subr.bf16.mxu0 %v1015
  %1431 = vmatpush1.bf16.msra.mxu0 %v1014
  %1432 = vmatprep.subr.bf16.mxu0 %v1017
  %1433 = vmatpush1.bf16.msra.mxu0 %v1016
  %1434 = vmatprep.subr.bf16.mxu0 %v1019
  %1435 = vmatpush1.bf16.msra.mxu0 %v1018
  %1436 = vmatprep.subr.bf16.mxu0 %v1021
  %1437 = vmatpush1.bf16.msra.mxu0 %v1020
  %1438 = vmatprep.subr.bf16.mxu0 %v1023
  %1439 = vmatpush1.bf16.msra.mxu0 %v1022
  %1440 = vmatprep.mubr.bf16.mxu0 %v317
  %1441 = vmatmul.mubr.bf16.gmra.mrb[0].mxu0 %v316
  %v1442 = vpop.f32.mrb[0].mxu0
  %v1443 = vadd.f32 %v249, %v1442
  %v1444 = vpop.f32.mrb[0].mxu0
  %v1445 = vadd.f32 %v253, %v1444
  %v1446 = vpop.f32.mrb[0].mxu0
  %v1447 = vadd.f32 %v249, %v1446
  %v1448 = vpop.f32.mrb[0].mxu0
  %v1449 = vadd.f32 %v253, %v1448
  %1450 = vmatprep.mubr.bf16.mxu0 %v330
  %1451 = vmatmul.mubr.bf16.gmra.mrb[0].mxu0 %v329
  %v1452 = vpop.f32.mrb[0].mxu0
  %v1453 = vadd.f32 %v249, %v1452
  %v1454 = vpop.f32.mrb[0].mxu0
  %v1455 = vadd.f32 %v253, %v1454
  %v1456 = vpop.f32.mrb[0].mxu0
  %v1457 = vpop.f32.mrb[0].mxu0
  %1458 = vdwg.mxu0
  %1459 = vmatprep.subr.bf16.mxu0 %v1025
  %1460 = vmatpush1.bf16.msra.mxu0 %v1024
  %1461 = vmatprep.subr.bf16.mxu0 %v1027
  %1462 = vmatpush1.bf16.msra.mxu0 %v1026
  %1463 = vmatprep.subr.bf16.mxu0 %v1029
  %1464 = vmatpush1.bf16.msra.mxu0 %v1028
  %1465 = vmatprep.subr.bf16.mxu0 %v1031
  %1466 = vmatpush1.bf16.msra.mxu0 %v1030
  %1467 = vmatprep.subr.bf16.mxu0 %v1033
  %1468 = vmatpush1.bf16.msra.mxu0 %v1032
  %1469 = vmatprep.subr.bf16.mxu0 %v1035
  %1470 = vmatpush1.bf16.msra.mxu0 %v1034
  %1471 = vmatprep.subr.bf16.mxu0 %v1037
  %1472 = vmatpush1.bf16.msra.mxu0 %v1036
  %1473 = vmatprep.subr.bf16.mxu0 %v1039
  %1474 = vmatpush1.bf16.msra.mxu0 %v1038
  %1475 = vmatprep.subr.bf16.mxu0 %v1041
  %1476 = vmatpush1.bf16.msra.mxu0 %v1040
  %1477 = vmatprep.subr.bf16.mxu0 %v1043
  %1478 = vmatpush1.bf16.msra.mxu0 %v1042
  %1479 = vmatprep.subr.bf16.mxu0 %v1045
  %1480 = vmatpush1.bf16.msra.mxu0 %v1044
  %1481 = vmatprep.subr.bf16.mxu0 %v1047
  %1482 = vmatpush1.bf16.msra.mxu0 %v1046
  %1483 = vmatprep.subr.bf16.mxu0 %v1049
  %1484 = vmatpush1.bf16.msra.mxu0 %v1048
  %1485 = vmatprep.subr.bf16.mxu0 %v1051
  %1486 = vmatpush1.bf16.msra.mxu0 %v1050
  %1487 = vmatprep.subr.bf16.mxu0 %v1053
  %1488 = vmatpush1.bf16.msra.mxu0 %v1052
  %1489 = vmatprep.subr.bf16.mxu0 %v1055
  %1490 = vmatpush1.bf16.msra.mxu0 %v1054
  %1491 = vmatprep.mubr.bf16.mxu0 %v319
  %1492 = vmatmul.mubr.bf16.gmra.mrb[0].mxu0 %v318
  %v1493 = vpop.f32.mrb[0].mxu0
  %v1494 = vadd.f32 %v1443, %v1493
  %v1495 = vpop.f32.mrb[0].mxu0
  %v1496 = vadd.f32 %v1445, %v1495
  %v1497 = vpop.f32.mrb[0].mxu0
  %v1498 = vadd.f32 %v1447, %v1497
  %v1499 = vpop.f32.mrb[0].mxu0
  %v1500 = vadd.f32 %v1449, %v1499
  %1501 = vmatprep.mubr.bf16.mxu0 %v332
  %1502 = vmatmul.mubr.bf16.gmra.mrb[0].mxu0 %v331
  %v1503 = vpop.f32.mrb[0].mxu0
  %v1504 = vadd.f32 %v1453, %v1503
  %v1505 = vpop.f32.mrb[0].mxu0
  %v1506 = vadd.f32 %v1455, %v1505
  %v1507 = vpop.f32.mrb[0].mxu0
  %v1508 = vpop.f32.mrb[0].mxu0
  %1509 = vdwg.mxu0
  %1510 = vmatprep.subr.bf16.mxu0 %v1057
  %1511 = vmatpush1.bf16.msra.mxu0 %v1056
  %1512 = vmatprep.subr.bf16.mxu0 %v1059
  %1513 = vmatpush1.bf16.msra.mxu0 %v1058
  %1514 = vmatprep.subr.bf16.mxu0 %v1061
  %1515 = vmatpush1.bf16.msra.mxu0 %v1060
  %1516 = vmatprep.subr.bf16.mxu0 %v1063
  %1517 = vmatpush1.bf16.msra.mxu0 %v1062
  %1518 = vmatprep.subr.bf16.mxu0 %v1065
  %1519 = vmatpush1.bf16.msra.mxu0 %v1064
  %1520 = vmatprep.subr.bf16.mxu0 %v1067
  %1521 = vmatpush1.bf16.msra.mxu0 %v1066
  %1522 = vmatprep.subr.bf16.mxu0 %v1069
  %1523 = vmatpush1.bf16.msra.mxu0 %v1068
  %1524 = vmatprep.subr.bf16.mxu0 %v1071
  %1525 = vmatpush1.bf16.msra.mxu0 %v1070
  %1526 = vmatprep.subr.bf16.mxu0 %v1073
  %1527 = vmatpush1.bf16.msra.mxu0 %v1072
  %1528 = vmatprep.subr.bf16.mxu0 %v1075
  %1529 = vmatpush1.bf16.msra.mxu0 %v1074
  %1530 = vmatprep.subr.bf16.mxu0 %v1077
  %1531 = vmatpush1.bf16.msra.mxu0 %v1076
  %1532 = vmatprep.subr.bf16.mxu0 %v1079
  %1533 = vmatpush1.bf16.msra.mxu0 %v1078
  %1534 = vmatprep.subr.bf16.mxu0 %v1081
  %1535 = vmatpush1.bf16.msra.mxu0 %v1080
  %1536 = vmatprep.subr.bf16.mxu0 %v1083
  %1537 = vmatpush1.bf16.msra.mxu0 %v1082
  %1538 = vmatprep.subr.bf16.mxu0 %v1085
  %1539 = vmatpush1.bf16.msra.mxu0 %v1084
  %1540 = vmatprep.subr.bf16.mxu0 %v1087
  %1541 = vmatpush1.bf16.msra.mxu0 %v1086
  %1542 = vmatprep.mubr.bf16.mxu0 %v321
  %1543 = vmatmul.mubr.bf16.gmra.mrb[0].mxu0 %v320
  %v1544 = vpop.f32.mrb[0].mxu0
  %v1545 = vadd.f32 %v1494, %v1544
  %v1546 = vpop.f32.mrb[0].mxu0
  %v1547 = vadd.f32 %v1496, %v1546
  %v1548 = vpop.f32.mrb[0].mxu0
  %v1549 = vadd.f32 %v1498, %v1548
  %v1550 = vpop.f32.mrb[0].mxu0
  %v1551 = vadd.f32 %v1500, %v1550
  %1552 = vmatprep.mubr.bf16.mxu0 %v334
  %1553 = vmatmul.mubr.bf16.gmra.mrb[0].mxu0 %v333
  %v1554 = vpop.f32.mrb[0].mxu0
  %v1555 = vadd.f32 %v1504, %v1554
  %v1556 = vpop.f32.mrb[0].mxu0
  %v1557 = vadd.f32 %v1506, %v1556
  %v1558 = vpop.f32.mrb[0].mxu0
  %v1559 = vpop.f32.mrb[0].mxu0
  %1560 = vdwg.mxu0
  %1561 = vmatprep.subr.bf16.mxu0 %v1089
  %1562 = vmatpush1.bf16.msra.mxu0 %v1088
  %1563 = vmatprep.subr.bf16.mxu0 %v1091
  %1564 = vmatpush1.bf16.msra.mxu0 %v1090
  %1565 = vmatprep.subr.bf16.mxu0 %v1093
  %1566 = vmatpush1.bf16.msra.mxu0 %v1092
  %1567 = vmatprep.subr.bf16.mxu0 %v1095
  %1568 = vmatpush1.bf16.msra.mxu0 %v1094
  %1569 = vmatprep.subr.bf16.mxu0 %v1097
  %1570 = vmatpush1.bf16.msra.mxu0 %v1096
  %1571 = vmatprep.subr.bf16.mxu0 %v1099
  %1572 = vmatpush1.bf16.msra.mxu0 %v1098
  %1573 = vmatprep.subr.bf16.mxu0 %v1101
  %1574 = vmatpush1.bf16.msra.mxu0 %v1100
  %1575 = vmatprep.subr.bf16.mxu0 %v1103
  %1576 = vmatpush1.bf16.msra.mxu0 %v1102
  %1577 = vmatprep.subr.bf16.mxu0 %v1105
  %1578 = vmatpush1.bf16.msra.mxu0 %v1104
  %1579 = vmatprep.subr.bf16.mxu0 %v1107
  %1580 = vmatpush1.bf16.msra.mxu0 %v1106
  %1581 = vmatprep.subr.bf16.mxu0 %v1109
  %1582 = vmatpush1.bf16.msra.mxu0 %v1108
  %1583 = vmatprep.subr.bf16.mxu0 %v1111
  %1584 = vmatpush1.bf16.msra.mxu0 %v1110
  %1585 = vmatprep.subr.bf16.mxu0 %v1113
  %1586 = vmatpush1.bf16.msra.mxu0 %v1112
  %1587 = vmatprep.subr.bf16.mxu0 %v1115
  %1588 = vmatpush1.bf16.msra.mxu0 %v1114
  %1589 = vmatprep.subr.bf16.mxu0 %v1117
  %1590 = vmatpush1.bf16.msra.mxu0 %v1116
  %1591 = vmatprep.subr.bf16.mxu0 %v1119
  %1592 = vmatpush1.bf16.msra.mxu0 %v1118
  %1593 = vmatprep.mubr.bf16.mxu0 %v323
  %1594 = vmatmul.mubr.bf16.gmra.mrb[0].mxu0 %v322
  %v1595 = vpop.f32.mrb[0].mxu0
  %v1596 = vadd.f32 %v1545, %v1595
  %v1597 = vpop.f32.mrb[0].mxu0
  %v1598 = vadd.f32 %v1547, %v1597
  %v1599 = vpop.f32.mrb[0].mxu0
  %v1600 = vadd.f32 %v1549, %v1599
  %v1601 = vpop.f32.mrb[0].mxu0
  %v1602 = vadd.f32 %v1551, %v1601
  %1603 = vmatprep.mubr.bf16.mxu0 %v336
  %1604 = vmatmul.mubr.bf16.gmra.mrb[0].mxu0 %v335
  %v1605 = vpop.f32.mrb[0].mxu0
  %v1606 = vadd.f32 %v1555, %v1605
  %v1607 = vpop.f32.mrb[0].mxu0
  %v1608 = vadd.f32 %v1557, %v1607
  %v1609 = vpop.f32.mrb[0].mxu0
  %v1610 = vpop.f32.mrb[0].mxu0
  %1611 = vdwg.mxu0
  %1612 = vmatprep.subr.bf16.mxu0 %v1121
  %1613 = vmatpush1.bf16.msra.mxu0 %v1120
  %1614 = vmatprep.subr.bf16.mxu0 %v1123
  %1615 = vmatpush1.bf16.msra.mxu0 %v1122
  %1616 = vmatprep.subr.bf16.mxu0 %v1125
  %1617 = vmatpush1.bf16.msra.mxu0 %v1124
  %1618 = vmatprep.subr.bf16.mxu0 %v1127
  %1619 = vmatpush1.bf16.msra.mxu0 %v1126
  %1620 = vmatprep.subr.bf16.mxu0 %v1129
  %1621 = vmatpush1.bf16.msra.mxu0 %v1128
  %1622 = vmatprep.subr.bf16.mxu0 %v1131
  %1623 = vmatpush1.bf16.msra.mxu0 %v1130
  %1624 = vmatprep.subr.bf16.mxu0 %v1133
  %1625 = vmatpush1.bf16.msra.mxu0 %v1132
  %1626 = vmatprep.subr.bf16.mxu0 %v1135
  %1627 = vmatpush1.bf16.msra.mxu0 %v1134
  %1628 = vmatprep.subr.bf16.mxu0 %v1137
  %1629 = vmatpush1.bf16.msra.mxu0 %v1136
  %1630 = vmatprep.subr.bf16.mxu0 %v1139
  %1631 = vmatpush1.bf16.msra.mxu0 %v1138
  %1632 = vmatprep.subr.bf16.mxu0 %v1141
  %1633 = vmatpush1.bf16.msra.mxu0 %v1140
  %1634 = vmatprep.subr.bf16.mxu0 %v1143
  %1635 = vmatpush1.bf16.msra.mxu0 %v1142
  %1636 = vmatprep.subr.bf16.mxu0 %v1145
  %1637 = vmatpush1.bf16.msra.mxu0 %v1144
  %1638 = vmatprep.subr.bf16.mxu0 %v1147
  %1639 = vmatpush1.bf16.msra.mxu0 %v1146
  %1640 = vmatprep.subr.bf16.mxu0 %v1149
  %1641 = vmatpush1.bf16.msra.mxu0 %v1148
  %1642 = vmatprep.subr.bf16.mxu0 %v1151
  %1643 = vmatpush1.bf16.msra.mxu0 %v1150
  %1644 = vmatprep.mubr.bf16.mxu0 %v325
  %1645 = vmatmul.mubr.bf16.gmra.mrb[0].mxu0 %v324
  %v1646 = vpop.f32.mrb[0].mxu0
  %v1647 = vadd.f32 %v1596, %v1646
  %v1648 = vpop.f32.mrb[0].mxu0
  %v1649 = vadd.f32 %v1598, %v1648
  %v1650 = vpop.f32.mrb[0].mxu0
  %v1651 = vadd.f32 %v1600, %v1650
  %v1652 = vpop.f32.mrb[0].mxu0
  %v1653 = vadd.f32 %v1602, %v1652
  %1654 = vmatprep.mubr.bf16.mxu0 %v338
  %1655 = vmatmul.mubr.bf16.gmra.mrb[0].mxu0 %v337
  %v1656 = vpop.f32.mrb[0].mxu0
  %v1657 = vadd.f32 %v1606, %v1656
  %v1658 = vpop.f32.mrb[0].mxu0
  %v1659 = vadd.f32 %v1608, %v1658
  %v1660 = vpop.f32.mrb[0].mxu0
  %v1661 = vpop.f32.mrb[0].mxu0
  %1662 = vdwg.mxu0
  %1663 = vmatprep.subr.bf16.mxu0 %v1153
  %1664 = vmatpush1.bf16.msra.mxu0 %v1152
  %1665 = vmatprep.subr.bf16.mxu0 %v1155
  %1666 = vmatpush1.bf16.msra.mxu0 %v1154
  %1667 = vmatprep.subr.bf16.mxu0 %v1157
  %1668 = vmatpush1.bf16.msra.mxu0 %v1156
  %1669 = vmatprep.subr.bf16.mxu0 %v1159
  %1670 = vmatpush1.bf16.msra.mxu0 %v1158
  %1671 = vmatprep.subr.bf16.mxu0 %v1161
  %1672 = vmatpush1.bf16.msra.mxu0 %v1160
  %1673 = vmatprep.subr.bf16.mxu0 %v1163
  %1674 = vmatpush1.bf16.msra.mxu0 %v1162
  %1675 = vmatprep.subr.bf16.mxu0 %v1165
  %1676 = vmatpush1.bf16.msra.mxu0 %v1164
  %1677 = vmatprep.subr.bf16.mxu0 %v1167
  %1678 = vmatpush1.bf16.msra.mxu0 %v1166
  %1679 = vmatprep.subr.bf16.mxu0 %v1169
  %1680 = vmatpush1.bf16.msra.mxu0 %v1168
  %1681 = vmatprep.subr.bf16.mxu0 %v1171
  %1682 = vmatpush1.bf16.msra.mxu0 %v1170
  %1683 = vmatprep.subr.bf16.mxu0 %v1173
  %1684 = vmatpush1.bf16.msra.mxu0 %v1172
  %1685 = vmatprep.subr.bf16.mxu0 %v1175
  %1686 = vmatpush1.bf16.msra.mxu0 %v1174
  %1687 = vmatprep.subr.bf16.mxu0 %v1177
  %1688 = vmatpush1.bf16.msra.mxu0 %v1176
  %1689 = vmatprep.subr.bf16.mxu0 %v1179
  %1690 = vmatpush1.bf16.msra.mxu0 %v1178
  %1691 = vmatprep.subr.bf16.mxu0 %v1181
  %1692 = vmatpush1.bf16.msra.mxu0 %v1180
  %1693 = vmatprep.subr.bf16.mxu0 %v1183
  %1694 = vmatpush1.bf16.msra.mxu0 %v1182
  %1695 = vmatprep.mubr.bf16.mxu0 %v327
  %1696 = vmatmul.mubr.bf16.gmra.mrb[0].mxu0 %v326
  %v1697 = vpop.f32.mrb[0].mxu0
  %v1698 = vadd.f32 %v1647, %v1697
  %v1699 = vpop.f32.mrb[0].mxu0
  %v1700 = vadd.f32 %v1649, %v1699
  %v1701 = vpop.f32.mrb[0].mxu0
  %v1702 = vadd.f32 %v1651, %v1701
  %v1703 = vpop.f32.mrb[0].mxu0
  %v1704 = vadd.f32 %v1653, %v1703
  %1705 = vmatprep.mubr.bf16.mxu0 %v340
  %1706 = vmatmul.mubr.bf16.gmra.mrb[0].mxu0 %v339
  %v1707 = vpop.f32.mrb[0].mxu0
  %v1708 = vadd.f32 %v1657, %v1707
  %v1709 = vpop.f32.mrb[0].mxu0
  %v1710 = vadd.f32 %v1659, %v1709
  %v1711 = vpop.f32.mrb[0].mxu0
  %v1712 = vpop.f32.mrb[0].mxu0
  %1713 = vdwg.mxu0
  %1714 = vmatprep.subr.bf16.mxu0 %v1185
  %1715 = vmatpush1.bf16.msra.mxu0 %v1184
  %1716 = vmatprep.subr.bf16.mxu0 %v1187
  %1717 = vmatpush1.bf16.msra.mxu0 %v1186
  %1718 = vmatprep.subr.bf16.mxu0 %v1189
  %1719 = vmatpush1.bf16.msra.mxu0 %v1188
  %1720 = vmatprep.subr.bf16.mxu0 %v1191
  %1721 = vmatpush1.bf16.msra.mxu0 %v1190
  %1722 = vmatprep.subr.bf16.mxu0 %v1193
  %1723 = vmatpush1.bf16.msra.mxu0 %v1192
  %1724 = vmatprep.subr.bf16.mxu0 %v1195
  %1725 = vmatpush1.bf16.msra.mxu0 %v1194
  %1726 = vmatprep.subr.bf16.mxu0 %v1197
  %1727 = vmatpush1.bf16.msra.mxu0 %v1196
  %1728 = vmatprep.subr.bf16.mxu0 %v1199
  %1729 = vmatpush1.bf16.msra.mxu0 %v1198
  %1730 = vmatprep.subr.bf16.mxu0 0
  %1731 = vmatpush1.bf16.msra.mxu0 0
  %1732 = vmatprep.subr.bf16.mxu0 0
  %1733 = vmatpush1.bf16.msra.mxu0 0
  %1734 = vmatprep.subr.bf16.mxu0 0
  %1735 = vmatpush1.bf16.msra.mxu0 0
  %1736 = vmatprep.subr.bf16.mxu0 0
  %1737 = vmatpush1.bf16.msra.mxu0 0
  %1738 = vmatprep.subr.bf16.mxu0 0
  %1739 = vmatpush1.bf16.msra.mxu0 0
  %1740 = vmatprep.subr.bf16.mxu0 0
  %1741 = vmatpush1.bf16.msra.mxu0 0
  %1742 = vmatprep.subr.bf16.mxu0 0
  %1743 = vmatpush1.bf16.msra.mxu0 0
  %1744 = vmatprep.subr.bf16.mxu0 0
  %1745 = vmatpush1.bf16.msra.mxu0 0
  %1746 = vmatprep.mubr.bf16.mxu0 0
  %1747 = vmatmul.mubr.bf16.gmra.mrb[0].mxu0 %v328
  %v1748 = vpop.f32.mrb[0].mxu0
  %v1749 = vadd.f32 %v1698, %v1748
  %v1750 = vpop.f32.mrb[0].mxu0
  %v1751 = vadd.f32 %v1700, %v1750
  %v1752 = vpop.f32.mrb[0].mxu0
  %v1753 = vadd.f32 %v1702, %v1752
  %v1754 = vpop.f32.mrb[0].mxu0
  %v1755 = vadd.f32 %v1704, %v1754
  %1756 = vmatprep.mubr.bf16.mxu0 0
  %1757 = vmatmul.mubr.bf16.gmra.mrb[0].mxu0 %v341
  %v1758 = vpop.f32.mrb[0].mxu0
  %v1759 = vadd.f32 %v1708, %v1758
  %v1760 = vpop.f32.mrb[0].mxu0
  %v1761 = vadd.f32 %v1710, %v1760
  %v1762 = vpop.f32.mrb[0].mxu0
  %v1763 = vpop.f32.mrb[0].mxu0
  %1764 = vdwg.mxu0
  %v1765 = vmax.f32 %v1749, 0.0
  %v1766 = vmax.f32 %v1751, 0.0
  %v1767 = vmax.f32 %v1753, 0.0
  %v1768 = vmax.f32 %v1755, 0.0
  %v1769 = vmax.f32 %v1759, 0.0
  %v1770 = vmax.f32 %v1761, 0.0
  %vm1771 = vcmp.ne.f32.partialorder %v1749, %v1749
  %vm1772 = vcmp.ne.f32.partialorder %v1751, %v1751
  %vm1773 = vcmp.ne.f32.partialorder %v1753, %v1753
  %vm1774 = vcmp.ne.f32.partialorder %v1755, %v1755
  %vm1775 = vcmp.ne.f32.partialorder %v1759, %v1759
  %vm1776 = vcmp.ne.f32.partialorder %v1761, %v1761
  %v1777 = vadd.f32 %v1749, 0.0
  %v1778 = vadd.f32 %v1751, 0.0
  %v1779 = vadd.f32 %v1753, 0.0
  %v1780 = vadd.f32 %v1755, 0.0
  %v1781 = vadd.f32 %v1759, 0.0
  %v1782 = vadd.f32 %v1761, 0.0
  %v1783 = vand.u32 2147483647, %v1749
  %v1784 = vand.u32 2147483647, %v1751
  %v1785 = vand.u32 2147483647, %v1753
  %v1786 = vand.u32 2147483647, %v1755
  %v1787 = vand.u32 2147483647, %v1759
  %v1788 = vand.u32 2147483647, %v1761
  %v1789 = vsub.f32 0.0, %v1783
  %v1790 = vsub.f32 0.0, %v1784
  %v1791 = vsub.f32 0.0, %v1785
  %v1792 = vsub.f32 0.0, %v1786
  %v1793 = vsub.f32 0.0, %v1787
  %v1794 = vsub.f32 0.0, %v1788
  %v1795 = vmul.f32 %v1789, 1.442695
  %v1796 = vpow.pop %v1795
  %v1797 = vmul.f32 %v1790, 1.442695
  %v1798 = vpow.pop %v1797
  %v1799 = vmul.f32 %v1791, 1.442695
  %v1800 = vpow.pop %v1799
  %v1801 = vmul.f32 %v1792, 1.442695
  %v1802 = vpow.pop %v1801
  %v1803 = vmul.f32 %v1793, 1.442695
  %v1804 = vpow.pop %v1803
  %v1805 = vmul.f32 %v1794, 1.442695
  %v1806 = vpow.pop %v1805
  %v1807 = vadd.f32 %v1796, 1.0
  %v1808 = vlog2.pop %v1807
  %v1809 = vmul.f32 %v1808, 0.6931472
  %v1810 = vmul.f32 -0.5, %v1796
  %v1811 = vadd.f32 %v1810, 1.0
  %v1812 = vmul.f32 %v1811, %v1796
  %v1813 = vand.u32 2147483647, %v1796
  %vm1814 = vcmp.lt.f32.partialorder %v1813, 0.0004427343
  %v1815 = vsel %vm1814, %v1812, %v1809
  %v1816 = vadd.f32 %v1798, 1.0
  %v1817 = vlog2.pop %v1816
  %v1818 = vmul.f32 %v1817, 0.6931472
  %v1819 = vmul.f32 -0.5, %v1798
  %v1820 = vadd.f32 %v1819, 1.0
  %v1821 = vmul.f32 %v1820, %v1798
  %v1822 = vand.u32 2147483647, %v1798
  %vm1823 = vcmp.lt.f32.partialorder %v1822, 0.0004427343
  %v1824 = vsel %vm1823, %v1821, %v1818
  %v1825 = vadd.f32 %v1800, 1.0
  %v1826 = vlog2.pop %v1825
  %v1827 = vmul.f32 %v1826, 0.6931472
  %v1828 = vmul.f32 -0.5, %v1800
  %v1829 = vadd.f32 %v1828, 1.0
  %v1830 = vmul.f32 %v1829, %v1800
  %v1831 = vand.u32 2147483647, %v1800
  %vm1832 = vcmp.lt.f32.partialorder %v1831, 0.0004427343
  %v1833 = vsel %vm1832, %v1830, %v1827
  %v1834 = vadd.f32 %v1802, 1.0
  %v1835 = vlog2.pop %v1834
  %v1836 = vmul.f32 %v1835, 0.6931472
  %v1837 = vmul.f32 -0.5, %v1802
  %v1838 = vadd.f32 %v1837, 1.0
  %v1839 = vmul.f32 %v1838, %v1802
  %v1840 = vand.u32 2147483647, %v1802
  %vm1841 = vcmp.lt.f32.partialorder %v1840, 0.0004427343
  %v1842 = vsel %vm1841, %v1839, %v1836
  %v1843 = vadd.f32 %v1804, 1.0
  %v1844 = vlog2.pop %v1843
  %v1845 = vmul.f32 %v1844, 0.6931472
  %v1846 = vmul.f32 -0.5, %v1804
  %v1847 = vadd.f32 %v1846, 1.0
  %v1848 = vmul.f32 %v1847, %v1804
  %v1849 = vand.u32 2147483647, %v1804
  %vm1850 = vcmp.lt.f32.partialorder %v1849, 0.0004427343
  %v1851 = vsel %vm1850, %v1848, %v1845
  %v1852 = vadd.f32 %v1806, 1.0
  %v1853 = vlog2.pop %v1852
  %v1854 = vmul.f32 %v1853, 0.6931472
  %v1855 = vmul.f32 -0.5, %v1806
  %v1856 = vadd.f32 %v1855, 1.0
  %v1857 = vmul.f32 %v1856, %v1806
  %v1858 = vand.u32 2147483647, %v1806
  %vm1859 = vcmp.lt.f32.partialorder %v1858, 0.0004427343
  %v1860 = vsel %vm1859, %v1857, %v1854
  %v1861 = vadd.f32 %v1765, %v1815
  %v1862 = vadd.f32 %v1766, %v1824
  %v1863 = vadd.f32 %v1767, %v1833
  %v1864 = vadd.f32 %v1768, %v1842
  %v1865 = vadd.f32 %v1769, %v1851
  %v1866 = vadd.f32 %v1770, %v1860
  %v1867 = vsel %vm1771, %v1777, %v1861
  %v1868 = vsel %vm1772, %v1778, %v1862
  %v1869 = vsel %vm1773, %v1779, %v1863
  %v1870 = vsel %vm1774, %v1780, %v1864
  %v1871 = vsel %vm1775, %v1781, %v1865
  %v1872 = vsel %vm1776, %v1782, %v1866
  %1873 = vst [vmem:[%s3] sm:$0xff] %v1867
  %1874 = vst [vmem:[%s3 + $0x8] sm:$0xff] %v1868
  %1875 = vst [vmem:[%s3 + $0x10] sm:$0xff] %v1869
  %1876 = vst [vmem:[%s3 + $0x18] sm:$0xff] %v1870
  %1877 = vst [vmem:[%s3 + $0x20] sm:$0xff] %v1871
  %1878 = vst [vmem:[%s3 + $0x28] sm:$0xff] %v1872
  // Predicated region
  $region14: #{_lambda_.7} parent=0 // pred_check
    _
  $region15: #{_lambda_.7} parent=0 // pred_check_branch
    %1880 = sbr.rel (0) target = $region17
  $region16: #{_lambda_.7} parent=0 // pred_region
    _
  $region17: #{_lambda_.7} parent=0 // pred_fallthru
    _
  // Predicated region
  $region18: #{_lambda_.7} parent=0 // pred_check
    _
  $region19: #{_lambda_.7} parent=0 // pred_check_branch
    %1882 = sbr.rel (0) target = $region21
  $region20: #{_lambda_.7} parent=0 // pred_region
    _
  $region21: #{_lambda_.7} parent=0 // pred_fallthru
    _

</llo_original>
